<compile_context>
chip_gen: v7x
topology: tpu7x:2x2x1
jax: 0.10.0
libtpu: 0.0.40
codegen_flags: <defaults>
</compile_context>

<pallas_src>
import functools

import numpy as np
import jax
import jax.numpy as jnp
from jax.experimental import pallas as pl
from jax.experimental.pallas import tpu as pltpu

EPS = 1e-5


# ----------------------------- activations --------------------------------- #

def _activation(y, name):
    if name == "relu":
        return jnp.maximum(y, 0.0)
    if name == "leakyrelu":
        return jnp.where(y >= 0.0, y, 0.01 * y)
    if name == "elu":
        # NOTE: exp(y)-1 (not expm1) -- matches the reference; tiny drift vs
        # PyTorch F.elu for |y| ~ 0.
        return jnp.where(y >= 0.0, y, jnp.exp(y) - 1.0)
    if name == "tanh":
        return jnp.tanh(y)
    raise ValueError(f"unknown activation {name}")


# ----------------------------- Pallas kernel ------------------------------- #

def _cae_fused_kernel(x_ref, *refs, acts):
    """Whole-network forward for one batch element.

    refs = (w0, g0, s0, ..., w5, g5, s5, o_ref), where for layer l:
      w: [K, Cout, Cin]  scale-folded, transposed tap weights
      g: [K, Lin, Lout]  constant 0/1 gather/scatter matrices (stride + pad)
      s: [Cout, 1]       folded conv-bias / BatchNorm shift
    The activation tensor is carried as [C, L] (channels x length).
    """
    o_ref = refs[-1]
    prm = refs[:-1]
    a = x_ref[...].astype(jnp.float32)                    # [C0, L0]
    n_layers = len(prm) // 3
    for layer in range(n_layers):
        w_ref = prm[3 * layer]
        g_ref = prm[3 * layer + 1]
        s_ref = prm[3 * layer + 2]
        k_sz = w_ref.shape[0]
        acc = None
        for k in range(k_sz):                             # tap-wise, MXU only
            t = jnp.dot(w_ref[k], a, preferred_element_type=jnp.float32)
            t = jnp.dot(t, g_ref[k], preferred_element_type=jnp.float32)
            acc = t if acc is None else acc + t
        y = acc + s_ref[...]                              # bias + folded BN
        if acts[layer] is not None:                       # Dropout==identity
            y = _activation(y, acts[layer])
        a = y
    o_ref[...] = a.astype(o_ref.dtype)                    # [C_final, L_final]


# ----------------------- host-side parameter prep -------------------------- #

def _conv_gmat_t(lin, k_sz, stride, pad):
    """G_k^T for Conv1d: [K, Lin, Lout], G_k^T[i, l] = 1 iff i == l*s + k - p."""
    lout = (lin + 2 * pad - k_sz) // stride + 1
    g = np.zeros((k_sz, lin, lout), np.float32)
    for k in range(k_sz):
        for l in range(lout):
            i = l * stride + k - pad
            if 0 <= i < lin:
                g[k, i, l] = 1.0
    return g, lout


def _convt_gmat_t(lin, k_sz, stride, pad):
    """G_k^T for ConvTranspose1d: [K, Lin, Lout], 1 iff o == i*s + k - p.

    Polyphase by construction: only real (non-dilated) input rows appear.
    """
    lout = (lin - 1) * stride - 2 * pad + k_sz
    g = np.zeros((k_sz, lin, lout), np.float32)
    for k in range(k_sz):
        for i in range(lin):
            o = i * stride + k - pad
            if 0 <= o < lout:
                g[k, i, o] = 1.0
    return g, lout


def _fold_bn(gamma, beta, running_mean, running_var):
    scale = gamma / jnp.sqrt(running_var + EPS)
    shift = beta - running_mean * scale
    return scale, shift


def _prepare_fused_params(params, config, l0):
    strides, pads = config["stride"], config["padding"]
    act = config["act_fn"].lower()
    args, specs, acts = [], [], []
    lin = l0
    lout = l0
    cout = config["ch_nums"][0]

    # encoder: Conv1d -> BN -> act -> Dropout  (x3)
    for i in range(3):
        W, b, scale, shift = params["enc"][i]             # W: [Cout, Cin, K]
        cout, cin, k_sz = W.shape
        g_t, lout = _conv_gmat_t(lin, k_sz, strides[i], pads[i])
        # (scale * W_k)^T = scale[:, None] * W[:, :, k]   (already [Cout, Cin])
        w_t = jnp.stack([scale[:, None] * W[:, :, k] for k in range(k_sz)], 0)
        shift_col = (shift + b * scale)[:, None]
        args += [w_t, jnp.asarray(g_t), shift_col]
        specs += [pl.BlockSpec((k_sz, cout, cin), lambda n: (0, 0, 0)),
                  pl.BlockSpec((k_sz, lin, lout), lambda n: (0, 0, 0)),
                  pl.BlockSpec((cout, 1), lambda n: (0, 0))]
        acts.append(act)
        lin = lout

    # decoder: ConvTranspose1d [+ BN + act]  (x3)
    for j in range(3):
        i = 2 - j
        W, b, scale, shift, has_bn_act = params["dec"][j]  # W: [Cin, Cout, K]
        cin, cout, k_sz = W.shape
        g_t, lout = _convt_gmat_t(lin, k_sz, strides[i], pads[i])
        if has_bn_act:
            w_t = jnp.stack([scale[:, None] * W[:, :, k].T
                             for k in range(k_sz)], 0)
            shift_col = (shift + b * scale)[:, None]
        else:                                              # last layer: bias only
            w_t = jnp.stack([W[:, :, k].T for k in range(k_sz)], 0)
            shift_col = b[:, None]
        args += [w_t, jnp.asarray(g_t), shift_col]
        specs += [pl.BlockSpec((k_sz, cout, cin), lambda n: (0, 0, 0)),
                  pl.BlockSpec((k_sz, lin, lout), lambda n: (0, 0, 0)),
                  pl.BlockSpec((cout, 1), lambda n: (0, 0))]
        acts.append(act if has_bn_act else None)
        lin = lout

    return args, specs, tuple(acts), lout, cout


# ------------------------------ forward ------------------------------------ #

def cae_forward(x_ncl, params, config):
    """x_ncl: [N, C0, L] (PyTorch NCL). Returns [N, C0, frame_length]."""
    n, c0, l = x_ncl.shape
    lf = config["frame_length"]
    xp = jnp.pad(x_ncl, ((0, 0), (0, 0), (1, 0)))          # F.pad(x, (1, 0))
    l0 = l + 1

    args, p_specs, acts, l_out, c_out = _prepare_fused_params(params, config, l0)

    kern = functools.partial(_cae_fused_kernel, acts=acts)
    out = pl.pallas_call(
        kern,
        out_shape=jax.ShapeDtypeStruct((n, c_out, l_out), jnp.float32),
        grid=(n,),
        in_specs=[pl.BlockSpec((None, c0, l0), lambda b: (b, 0, 0))] + p_specs,
        out_specs=pl.BlockSpec((None, c_out, l_out), lambda b: (b, 0, 0)),
        compiler_params=pltpu.CompilerParams(
            dimension_semantics=("parallel",)),
    )(xp, *args)
    return out[..., :lf]


# ------------------------- pure-JAX reference ------------------------------ #

def _ref_conv1d(x_ncl, W, b, stride, pad):
    y = jax.lax.conv_general_dilated(
        x_ncl, W, (stride,), [(pad, pad)],
        dimension_numbers=("NCH", "OIH", "NCH"))
    return y + b[None, :, None]


def _ref_convt1d(x_ncl, W, b, stride, pad):
    K = W.shape[-1]
    w = jnp.flip(jnp.transpose(W, (1, 0, 2)), axis=-1)     # [Cout, Cin, K]
    y = jax.lax.conv_general_dilated(
        x_ncl, w, (1,), [(K - 1 - pad, K - 1 - pad)], lhs_dilation=(stride,),
        dimension_numbers=("NCH", "OIH", "NCH"))
    return y + b[None, :, None]


def cae_forward_ref(x_ncl, params, config):
    act = config["act_fn"].lower()
    x = jnp.pad(x_ncl, ((0, 0), (0, 0), (1, 0)))
    for i in range(3):
        W, b, scale, shift = params["enc"][i]
        x = _ref_conv1d(x, W, b, config["stride"][i], config["padding"][i])
        x = x * scale[None, :, None] + shift[None, :, None]
        x = _activation(x, act)
    for j in range(3):
        i = 2 - j
        W, b, scale, shift, has_bn_act = params["dec"][j]
        x = _ref_convt1d(x, W, b, config["stride"][i], config["padding"][i])
        if has_bn_act:
            x = x * scale[None, :, None] + shift[None, :, None]
            x = _activation(x, act)
    return x[..., : config["frame_length"]]


# ------------------------------- params ------------------------------------ #

def init_params(key, config):
    ch = config["ch_nums"]
    ks = config["conv_kernel_sizes"]
    keys = jax.random.split(key, 32)
    ki = iter(range(32))

    def nrm(shape, scale=0.1):
        return scale * jax.random.normal(keys[next(ki)], shape, jnp.float32)

    enc = []
    for i in range(3):
        cin, cout, K = ch[i], ch[i + 1], ks[i]
        W = nrm((cout, cin, K))
        b = nrm((cout,))
        gamma = 1.0 + nrm((cout,))
        beta = nrm((cout,))
        rmean = nrm((cout,))
        rvar = 1.0 + 0.1 * jnp.abs(jax.random.normal(keys[next(ki)], (cout,)))
        scale, shift = _fold_bn(gamma, beta, rmean, rvar)
        enc.append((W, b, scale, shift))

    dec = []
    for j in range(3):
        i = 2 - j
        cin, cout, K = ch[i + 1], ch[i], ks[i]
        W = nrm((cin, cout, K))          # ConvTranspose1d weight layout
        b = nrm((cout,))
        if j < 2:
            gamma = 1.0 + nrm((cout,))
            beta = nrm((cout,))
            rmean = nrm((cout,))
            rvar = 1.0 + 0.1 * jnp.abs(jax.random.normal(keys[next(ki)],
                                                         (cout,)))
            scale, shift = _fold_bn(gamma, beta, rmean, rvar)
            has = True
        else:                            # final ConvTranspose1d: no BN / act
            scale = jnp.ones((cout,), jnp.float32)
            shift = jnp.zeros((cout,), jnp.float32)
            has = False
        dec.append((W, b, scale, shift, has))

    return {"enc": enc, "dec": dec}


# --------------------------------- main ------------------------------------ #

if __name__ == "__main__":
    config = {
        "act_fn": "elu",
        "ch_nums": [4, 8, 16, 32],
        "conv_kernel_sizes": [3, 3, 3],
        "stride": [2, 2, 1],
        "padding": [1, 1, 1],
        "dropout_input": 0.1,
        "dropout_hidden": 0.1,
        "frame_length": 16,
    }

    key = jax.random.PRNGKey(0)
    kx, kp = jax.random.split(key)
    x = jax.random.normal(kx, (2, config["ch_nums"][0],
                               config["frame_length"]), jnp.float32)
    params = init_params(kp, config)

    out = jax.block_until_ready(cae_forward(x, params, config))
    ref = jax.block_until_ready(cae_forward_ref(x, params, config))

    assert out.shape == (2, config["ch_nums"][0],
                         config["frame_length"]), out.shape
    assert jnp.allclose(out, ref, atol=1e-4, rtol=1e-4), float(
        jnp.max(jnp.abs(out - ref)))

    print("KERNEL_OK")
</pallas_src>

<mosaic_0001>
module attributes {stable_mosaic.version = 11 : i64} {
  func.func @_cae_fused_kernel(%arg0: i32, %arg1: memref<1x4x17xf32, #tpu.memory_space<vmem>>, %arg2: memref<3x8x4xf32, #tpu.memory_space<vmem>>, %arg3: memref<3x17x9xf32, #tpu.memory_space<vmem>>, %arg4: memref<8x1xf32, #tpu.memory_space<vmem>>, %arg5: memref<3x16x8xf32, #tpu.memory_space<vmem>>, %arg6: memref<3x9x5xf32, #tpu.memory_space<vmem>>, %arg7: memref<16x1xf32, #tpu.memory_space<vmem>>, %arg8: memref<3x32x16xf32, #tpu.memory_space<vmem>>, %arg9: memref<3x5x5xf32, #tpu.memory_space<vmem>>, %arg10: memref<32x1xf32, #tpu.memory_space<vmem>>, %arg11: memref<3x16x32xf32, #tpu.memory_space<vmem>>, %arg12: memref<3x5x5xf32, #tpu.memory_space<vmem>>, %arg13: memref<16x1xf32, #tpu.memory_space<vmem>>, %arg14: memref<3x8x16xf32, #tpu.memory_space<vmem>>, %arg15: memref<3x5x9xf32, #tpu.memory_space<vmem>>, %arg16: memref<8x1xf32, #tpu.memory_space<vmem>>, %arg17: memref<3x4x8xf32, #tpu.memory_space<vmem>>, %arg18: memref<3x9x17xf32, #tpu.memory_space<vmem>>, %arg19: memref<4x1xf32, #tpu.memory_space<vmem>>, %arg20: memref<1x4x17xf32, #tpu.memory_space<vmem>>) attributes {dimension_semantics = [#tpu.dimension_semantics<parallel>], iteration_bounds = array<i64: 2>, scalar_prefetch = 0 : i64, scratch_operands = 0 : i64, tpu.core_type = #tpu.core_type<tc>, window_params = [{transform_indices = @transform_0, window_bounds = array<i64: 1, 4, 17>}, {pipeline_mode = #tpu.pipeline_mode<synchronous>, transform_indices = @transform_1, window_bounds = array<i64: 3, 8, 4>}, {pipeline_mode = #tpu.pipeline_mode<synchronous>, transform_indices = @transform_2, window_bounds = array<i64: 3, 17, 9>}, {pipeline_mode = #tpu.pipeline_mode<synchronous>, transform_indices = @transform_3, window_bounds = array<i64: 8, 1>}, {pipeline_mode = #tpu.pipeline_mode<synchronous>, transform_indices = @transform_4, window_bounds = array<i64: 3, 16, 8>}, {pipeline_mode = #tpu.pipeline_mode<synchronous>, transform_indices = @transform_5, window_bounds = array<i64: 3, 9, 5>}, {pipeline_mode = #tpu.pipeline_mode<synchronous>, transform_indices = @transform_6, window_bounds = array<i64: 16, 1>}, {pipeline_mode = #tpu.pipeline_mode<synchronous>, transform_indices = @transform_7, window_bounds = array<i64: 3, 32, 16>}, {pipeline_mode = #tpu.pipeline_mode<synchronous>, transform_indices = @transform_8, window_bounds = array<i64: 3, 5, 5>}, {pipeline_mode = #tpu.pipeline_mode<synchronous>, transform_indices = @transform_9, window_bounds = array<i64: 32, 1>}, {pipeline_mode = #tpu.pipeline_mode<synchronous>, transform_indices = @transform_10, window_bounds = array<i64: 3, 16, 32>}, {pipeline_mode = #tpu.pipeline_mode<synchronous>, transform_indices = @transform_11, window_bounds = array<i64: 3, 5, 5>}, {pipeline_mode = #tpu.pipeline_mode<synchronous>, transform_indices = @transform_12, window_bounds = array<i64: 16, 1>}, {pipeline_mode = #tpu.pipeline_mode<synchronous>, transform_indices = @transform_13, window_bounds = array<i64: 3, 8, 16>}, {pipeline_mode = #tpu.pipeline_mode<synchronous>, transform_indices = @transform_14, window_bounds = array<i64: 3, 5, 9>}, {pipeline_mode = #tpu.pipeline_mode<synchronous>, transform_indices = @transform_15, window_bounds = array<i64: 8, 1>}, {pipeline_mode = #tpu.pipeline_mode<synchronous>, transform_indices = @transform_16, window_bounds = array<i64: 3, 4, 8>}, {pipeline_mode = #tpu.pipeline_mode<synchronous>, transform_indices = @transform_17, window_bounds = array<i64: 3, 9, 17>}, {pipeline_mode = #tpu.pipeline_mode<synchronous>, transform_indices = @transform_18, window_bounds = array<i64: 4, 1>}, {transform_indices = @transform_19, window_bounds = array<i64: 1, 4, 17>}]} {
    %c0 = arith.constant 0 : index
    %c0_0 = arith.constant 0 : index
    %c0_1 = arith.constant 0 : index
    %0 = vector.load %arg1[%c0, %c0_0, %c0_1] : memref<1x4x17xf32, #tpu.memory_space<vmem>>, vector<1x4x17xf32>
    %1 = vector.shape_cast %0 : vector<1x4x17xf32> to vector<4x17xf32>
    %c0_2 = arith.constant 0 : index
    %c0_3 = arith.constant 0 : index
    %c0_4 = arith.constant 0 : index
    %2 = vector.load %arg2[%c0_2, %c0_3, %c0_4] : memref<3x8x4xf32, #tpu.memory_space<vmem>>, vector<1x8x4xf32>
    %3 = vector.shape_cast %2 : vector<1x8x4xf32> to vector<8x4xf32>
    %cst = arith.constant dense<0.000000e+00> : vector<8x17xf32>
    %4 = tpu.matmul %3, %1, %cst {dimension_numbers = #tpu.dot_dimension_numbers<[1], [0], [0], [1], [0, 0, 1, 1], [], []>} : vector<8x4xf32>, vector<4x17xf32>, vector<8x17xf32> -> vector<8x17xf32>
    %c0_5 = arith.constant 0 : index
    %c0_6 = arith.constant 0 : index
    %c0_7 = arith.constant 0 : index
    %5 = vector.load %arg3[%c0_5, %c0_6, %c0_7] : memref<3x17x9xf32, #tpu.memory_space<vmem>>, vector<1x17x9xf32>
    %6 = vector.shape_cast %5 : vector<1x17x9xf32> to vector<17x9xf32>
    %cst_8 = arith.constant dense<0.000000e+00> : vector<8x9xf32>
    %7 = tpu.matmul %4, %6, %cst_8 {dimension_numbers = #tpu.dot_dimension_numbers<[1], [0], [0], [1], [0, 0, 1, 1], [], []>} : vector<8x17xf32>, vector<17x9xf32>, vector<8x9xf32> -> vector<8x9xf32>
    %c1 = arith.constant 1 : index
    %c0_9 = arith.constant 0 : index
    %c0_10 = arith.constant 0 : index
    %8 = vector.load %arg2[%c1, %c0_9, %c0_10] : memref<3x8x4xf32, #tpu.memory_space<vmem>>, vector<1x8x4xf32>
    %9 = vector.shape_cast %8 : vector<1x8x4xf32> to vector<8x4xf32>
    %cst_11 = arith.constant dense<0.000000e+00> : vector<8x17xf32>
    %10 = tpu.matmul %9, %1, %cst_11 {dimension_numbers = #tpu.dot_dimension_numbers<[1], [0], [0], [1], [0, 0, 1, 1], [], []>} : vector<8x4xf32>, vector<4x17xf32>, vector<8x17xf32> -> vector<8x17xf32>
    %c1_12 = arith.constant 1 : index
    %c0_13 = arith.constant 0 : index
    %c0_14 = arith.constant 0 : index
    %11 = vector.load %arg3[%c1_12, %c0_13, %c0_14] : memref<3x17x9xf32, #tpu.memory_space<vmem>>, vector<1x17x9xf32>
    %12 = vector.shape_cast %11 : vector<1x17x9xf32> to vector<17x9xf32>
    %cst_15 = arith.constant dense<0.000000e+00> : vector<8x9xf32>
    %13 = tpu.matmul %10, %12, %cst_15 {dimension_numbers = #tpu.dot_dimension_numbers<[1], [0], [0], [1], [0, 0, 1, 1], [], []>} : vector<8x17xf32>, vector<17x9xf32>, vector<8x9xf32> -> vector<8x9xf32>
    %14 = arith.addf %7, %13 : vector<8x9xf32>
    %c2 = arith.constant 2 : index
    %c0_16 = arith.constant 0 : index
    %c0_17 = arith.constant 0 : index
    %15 = vector.load %arg2[%c2, %c0_16, %c0_17] : memref<3x8x4xf32, #tpu.memory_space<vmem>>, vector<1x8x4xf32>
    %16 = vector.shape_cast %15 : vector<1x8x4xf32> to vector<8x4xf32>
    %cst_18 = arith.constant dense<0.000000e+00> : vector<8x17xf32>
    %17 = tpu.matmul %16, %1, %cst_18 {dimension_numbers = #tpu.dot_dimension_numbers<[1], [0], [0], [1], [0, 0, 1, 1], [], []>} : vector<8x4xf32>, vector<4x17xf32>, vector<8x17xf32> -> vector<8x17xf32>
    %c2_19 = arith.constant 2 : index
    %c0_20 = arith.constant 0 : index
    %c0_21 = arith.constant 0 : index
    %18 = vector.load %arg3[%c2_19, %c0_20, %c0_21] : memref<3x17x9xf32, #tpu.memory_space<vmem>>, vector<1x17x9xf32>
    %19 = vector.shape_cast %18 : vector<1x17x9xf32> to vector<17x9xf32>
    %cst_22 = arith.constant dense<0.000000e+00> : vector<8x9xf32>
    %20 = tpu.matmul %17, %19, %cst_22 {dimension_numbers = #tpu.dot_dimension_numbers<[1], [0], [0], [1], [0, 0, 1, 1], [], []>} : vector<8x17xf32>, vector<17x9xf32>, vector<8x9xf32> -> vector<8x9xf32>
    %21 = arith.addf %14, %20 : vector<8x9xf32>
    %c0_23 = arith.constant 0 : index
    %c0_24 = arith.constant 0 : index
    %22 = vector.load %arg4[%c0_23, %c0_24] : memref<8x1xf32, #tpu.memory_space<vmem>>, vector<8x1xf32>
    %23 = vector.broadcast %22 : vector<8x1xf32> to vector<8x9xf32>
    %24 = arith.addf %21, %23 : vector<8x9xf32>
    %cst_25 = arith.constant 0.000000e+00 : f32
    %25 = vector.broadcast %cst_25 : f32 to vector<8x9xf32>
    %26 = arith.cmpf oge, %24, %25 : vector<8x9xf32>
    %27 = math.exp %24 : vector<8x9xf32>
    %cst_26 = arith.constant 1.000000e+00 : f32
    %28 = vector.broadcast %cst_26 : f32 to vector<8x9xf32>
    %29 = arith.subf %27, %28 : vector<8x9xf32>
    %30 = arith.select %26, %24, %29 : vector<8x9xi1>, vector<8x9xf32>
    %c0_27 = arith.constant 0 : index
    %c0_28 = arith.constant 0 : index
    %c0_29 = arith.constant 0 : index
    %31 = vector.load %arg5[%c0_27, %c0_28, %c0_29] : memref<3x16x8xf32, #tpu.memory_space<vmem>>, vector<1x16x8xf32>
    %32 = vector.shape_cast %31 : vector<1x16x8xf32> to vector<16x8xf32>
    %cst_30 = arith.constant dense<0.000000e+00> : vector<16x9xf32>
    %33 = tpu.matmul %32, %30, %cst_30 {dimension_numbers = #tpu.dot_dimension_numbers<[1], [0], [0], [1], [0, 0, 1, 1], [], []>} : vector<16x8xf32>, vector<8x9xf32>, vector<16x9xf32> -> vector<16x9xf32>
    %c0_31 = arith.constant 0 : index
    %c0_32 = arith.constant 0 : index
    %c0_33 = arith.constant 0 : index
    %34 = vector.load %arg6[%c0_31, %c0_32, %c0_33] : memref<3x9x5xf32, #tpu.memory_space<vmem>>, vector<1x9x5xf32>
    %35 = vector.shape_cast %34 : vector<1x9x5xf32> to vector<9x5xf32>
    %cst_34 = arith.constant dense<0.000000e+00> : vector<16x5xf32>
    %36 = tpu.matmul %33, %35, %cst_34 {dimension_numbers = #tpu.dot_dimension_numbers<[1], [0], [0], [1], [0, 0, 1, 1], [], []>} : vector<16x9xf32>, vector<9x5xf32>, vector<16x5xf32> -> vector<16x5xf32>
    %c1_35 = arith.constant 1 : index
    %c0_36 = arith.constant 0 : index
    %c0_37 = arith.constant 0 : index
    %37 = vector.load %arg5[%c1_35, %c0_36, %c0_37] : memref<3x16x8xf32, #tpu.memory_space<vmem>>, vector<1x16x8xf32>
    %38 = vector.shape_cast %37 : vector<1x16x8xf32> to vector<16x8xf32>
    %cst_38 = arith.constant dense<0.000000e+00> : vector<16x9xf32>
    %39 = tpu.matmul %38, %30, %cst_38 {dimension_numbers = #tpu.dot_dimension_numbers<[1], [0], [0], [1], [0, 0, 1, 1], [], []>} : vector<16x8xf32>, vector<8x9xf32>, vector<16x9xf32> -> vector<16x9xf32>
    %c1_39 = arith.constant 1 : index
    %c0_40 = arith.constant 0 : index
    %c0_41 = arith.constant 0 : index
    %40 = vector.load %arg6[%c1_39, %c0_40, %c0_41] : memref<3x9x5xf32, #tpu.memory_space<vmem>>, vector<1x9x5xf32>
    %41 = vector.shape_cast %40 : vector<1x9x5xf32> to vector<9x5xf32>
    %cst_42 = arith.constant dense<0.000000e+00> : vector<16x5xf32>
    %42 = tpu.matmul %39, %41, %cst_42 {dimension_numbers = #tpu.dot_dimension_numbers<[1], [0], [0], [1], [0, 0, 1, 1], [], []>} : vector<16x9xf32>, vector<9x5xf32>, vector<16x5xf32> -> vector<16x5xf32>
    %43 = arith.addf %36, %42 : vector<16x5xf32>
    %c2_43 = arith.constant 2 : index
    %c0_44 = arith.constant 0 : index
    %c0_45 = arith.constant 0 : index
    %44 = vector.load %arg5[%c2_43, %c0_44, %c0_45] : memref<3x16x8xf32, #tpu.memory_space<vmem>>, vector<1x16x8xf32>
    %45 = vector.shape_cast %44 : vector<1x16x8xf32> to vector<16x8xf32>
    %cst_46 = arith.constant dense<0.000000e+00> : vector<16x9xf32>
    %46 = tpu.matmul %45, %30, %cst_46 {dimension_numbers = #tpu.dot_dimension_numbers<[1], [0], [0], [1], [0, 0, 1, 1], [], []>} : vector<16x8xf32>, vector<8x9xf32>, vector<16x9xf32> -> vector<16x9xf32>
    %c2_47 = arith.constant 2 : index
    %c0_48 = arith.constant 0 : index
    %c0_49 = arith.constant 0 : index
    %47 = vector.load %arg6[%c2_47, %c0_48, %c0_49] : memref<3x9x5xf32, #tpu.memory_space<vmem>>, vector<1x9x5xf32>
    %48 = vector.shape_cast %47 : vector<1x9x5xf32> to vector<9x5xf32>
    %cst_50 = arith.constant dense<0.000000e+00> : vector<16x5xf32>
    %49 = tpu.matmul %46, %48, %cst_50 {dimension_numbers = #tpu.dot_dimension_numbers<[1], [0], [0], [1], [0, 0, 1, 1], [], []>} : vector<16x9xf32>, vector<9x5xf32>, vector<16x5xf32> -> vector<16x5xf32>
    %50 = arith.addf %43, %49 : vector<16x5xf32>
    %c0_51 = arith.constant 0 : index
    %c0_52 = arith.constant 0 : index
    %51 = vector.load %arg7[%c0_51, %c0_52] : memref<16x1xf32, #tpu.memory_space<vmem>>, vector<16x1xf32>
    %52 = vector.broadcast %51 : vector<16x1xf32> to vector<16x5xf32>
    %53 = arith.addf %50, %52 : vector<16x5xf32>
    %cst_53 = arith.constant 0.000000e+00 : f32
    %54 = vector.broadcast %cst_53 : f32 to vector<16x5xf32>
    %55 = arith.cmpf oge, %53, %54 : vector<16x5xf32>
    %56 = math.exp %53 : vector<16x5xf32>
    %cst_54 = arith.constant 1.000000e+00 : f32
    %57 = vector.broadcast %cst_54 : f32 to vector<16x5xf32>
    %58 = arith.subf %56, %57 : vector<16x5xf32>
    %59 = arith.select %55, %53, %58 : vector<16x5xi1>, vector<16x5xf32>
    %c0_55 = arith.constant 0 : index
    %c0_56 = arith.constant 0 : index
    %c0_57 = arith.constant 0 : index
    %60 = vector.load %arg8[%c0_55, %c0_56, %c0_57] : memref<3x32x16xf32, #tpu.memory_space<vmem>>, vector<1x32x16xf32>
    %61 = vector.shape_cast %60 : vector<1x32x16xf32> to vector<32x16xf32>
    %cst_58 = arith.constant dense<0.000000e+00> : vector<32x5xf32>
    %62 = tpu.matmul %61, %59, %cst_58 {dimension_numbers = #tpu.dot_dimension_numbers<[1], [0], [0], [1], [0, 0, 1, 1], [], []>} : vector<32x16xf32>, vector<16x5xf32>, vector<32x5xf32> -> vector<32x5xf32>
    %c0_59 = arith.constant 0 : index
    %c0_60 = arith.constant 0 : index
    %c0_61 = arith.constant 0 : index
    %63 = vector.load %arg9[%c0_59, %c0_60, %c0_61] : memref<3x5x5xf32, #tpu.memory_space<vmem>>, vector<1x5x5xf32>
    %64 = vector.shape_cast %63 : vector<1x5x5xf32> to vector<5x5xf32>
    %cst_62 = arith.constant dense<0.000000e+00> : vector<32x5xf32>
    %65 = tpu.matmul %62, %64, %cst_62 {dimension_numbers = #tpu.dot_dimension_numbers<[1], [0], [0], [1], [0, 0, 1, 1], [], []>} : vector<32x5xf32>, vector<5x5xf32>, vector<32x5xf32> -> vector<32x5xf32>
    %c1_63 = arith.constant 1 : index
    %c0_64 = arith.constant 0 : index
    %c0_65 = arith.constant 0 : index
    %66 = vector.load %arg8[%c1_63, %c0_64, %c0_65] : memref<3x32x16xf32, #tpu.memory_space<vmem>>, vector<1x32x16xf32>
    %67 = vector.shape_cast %66 : vector<1x32x16xf32> to vector<32x16xf32>
    %cst_66 = arith.constant dense<0.000000e+00> : vector<32x5xf32>
    %68 = tpu.matmul %67, %59, %cst_66 {dimension_numbers = #tpu.dot_dimension_numbers<[1], [0], [0], [1], [0, 0, 1, 1], [], []>} : vector<32x16xf32>, vector<16x5xf32>, vector<32x5xf32> -> vector<32x5xf32>
    %c1_67 = arith.constant 1 : index
    %c0_68 = arith.constant 0 : index
    %c0_69 = arith.constant 0 : index
    %69 = vector.load %arg9[%c1_67, %c0_68, %c0_69] : memref<3x5x5xf32, #tpu.memory_space<vmem>>, vector<1x5x5xf32>
    %70 = vector.shape_cast %69 : vector<1x5x5xf32> to vector<5x5xf32>
    %cst_70 = arith.constant dense<0.000000e+00> : vector<32x5xf32>
    %71 = tpu.matmul %68, %70, %cst_70 {dimension_numbers = #tpu.dot_dimension_numbers<[1], [0], [0], [1], [0, 0, 1, 1], [], []>} : vector<32x5xf32>, vector<5x5xf32>, vector<32x5xf32> -> vector<32x5xf32>
    %72 = arith.addf %65, %71 : vector<32x5xf32>
    %c2_71 = arith.constant 2 : index
    %c0_72 = arith.constant 0 : index
    %c0_73 = arith.constant 0 : index
    %73 = vector.load %arg8[%c2_71, %c0_72, %c0_73] : memref<3x32x16xf32, #tpu.memory_space<vmem>>, vector<1x32x16xf32>
    %74 = vector.shape_cast %73 : vector<1x32x16xf32> to vector<32x16xf32>
    %cst_74 = arith.constant dense<0.000000e+00> : vector<32x5xf32>
    %75 = tpu.matmul %74, %59, %cst_74 {dimension_numbers = #tpu.dot_dimension_numbers<[1], [0], [0], [1], [0, 0, 1, 1], [], []>} : vector<32x16xf32>, vector<16x5xf32>, vector<32x5xf32> -> vector<32x5xf32>
    %c2_75 = arith.constant 2 : index
    %c0_76 = arith.constant 0 : index
    %c0_77 = arith.constant 0 : index
    %76 = vector.load %arg9[%c2_75, %c0_76, %c0_77] : memref<3x5x5xf32, #tpu.memory_space<vmem>>, vector<1x5x5xf32>
    %77 = vector.shape_cast %76 : vector<1x5x5xf32> to vector<5x5xf32>
    %cst_78 = arith.constant dense<0.000000e+00> : vector<32x5xf32>
    %78 = tpu.matmul %75, %77, %cst_78 {dimension_numbers = #tpu.dot_dimension_numbers<[1], [0], [0], [1], [0, 0, 1, 1], [], []>} : vector<32x5xf32>, vector<5x5xf32>, vector<32x5xf32> -> vector<32x5xf32>
    %79 = arith.addf %72, %78 : vector<32x5xf32>
    %c0_79 = arith.constant 0 : index
    %c0_80 = arith.constant 0 : index
    %80 = vector.load %arg10[%c0_79, %c0_80] : memref<32x1xf32, #tpu.memory_space<vmem>>, vector<32x1xf32>
    %81 = vector.broadcast %80 : vector<32x1xf32> to vector<32x5xf32>
    %82 = arith.addf %79, %81 : vector<32x5xf32>
    %cst_81 = arith.constant 0.000000e+00 : f32
    %83 = vector.broadcast %cst_81 : f32 to vector<32x5xf32>
    %84 = arith.cmpf oge, %82, %83 : vector<32x5xf32>
    %85 = math.exp %82 : vector<32x5xf32>
    %cst_82 = arith.constant 1.000000e+00 : f32
    %86 = vector.broadcast %cst_82 : f32 to vector<32x5xf32>
    %87 = arith.subf %85, %86 : vector<32x5xf32>
    %88 = arith.select %84, %82, %87 : vector<32x5xi1>, vector<32x5xf32>
    %c0_83 = arith.constant 0 : index
    %c0_84 = arith.constant 0 : index
    %c0_85 = arith.constant 0 : index
    %89 = vector.load %arg11[%c0_83, %c0_84, %c0_85] : memref<3x16x32xf32, #tpu.memory_space<vmem>>, vector<1x16x32xf32>
    %90 = vector.shape_cast %89 : vector<1x16x32xf32> to vector<16x32xf32>
    %cst_86 = arith.constant dense<0.000000e+00> : vector<16x5xf32>
    %91 = tpu.matmul %90, %88, %cst_86 {dimension_numbers = #tpu.dot_dimension_numbers<[1], [0], [0], [1], [0, 0, 1, 1], [], []>} : vector<16x32xf32>, vector<32x5xf32>, vector<16x5xf32> -> vector<16x5xf32>
    %c0_87 = arith.constant 0 : index
    %c0_88 = arith.constant 0 : index
    %c0_89 = arith.constant 0 : index
    %92 = vector.load %arg12[%c0_87, %c0_88, %c0_89] : memref<3x5x5xf32, #tpu.memory_space<vmem>>, vector<1x5x5xf32>
    %93 = vector.shape_cast %92 : vector<1x5x5xf32> to vector<5x5xf32>
    %cst_90 = arith.constant dense<0.000000e+00> : vector<16x5xf32>
    %94 = tpu.matmul %91, %93, %cst_90 {dimension_numbers = #tpu.dot_dimension_numbers<[1], [0], [0], [1], [0, 0, 1, 1], [], []>} : vector<16x5xf32>, vector<5x5xf32>, vector<16x5xf32> -> vector<16x5xf32>
    %c1_91 = arith.constant 1 : index
    %c0_92 = arith.constant 0 : index
    %c0_93 = arith.constant 0 : index
    %95 = vector.load %arg11[%c1_91, %c0_92, %c0_93] : memref<3x16x32xf32, #tpu.memory_space<vmem>>, vector<1x16x32xf32>
    %96 = vector.shape_cast %95 : vector<1x16x32xf32> to vector<16x32xf32>
    %cst_94 = arith.constant dense<0.000000e+00> : vector<16x5xf32>
    %97 = tpu.matmul %96, %88, %cst_94 {dimension_numbers = #tpu.dot_dimension_numbers<[1], [0], [0], [1], [0, 0, 1, 1], [], []>} : vector<16x32xf32>, vector<32x5xf32>, vector<16x5xf32> -> vector<16x5xf32>
    %c1_95 = arith.constant 1 : index
    %c0_96 = arith.constant 0 : index
    %c0_97 = arith.constant 0 : index
    %98 = vector.load %arg12[%c1_95, %c0_96, %c0_97] : memref<3x5x5xf32, #tpu.memory_space<vmem>>, vector<1x5x5xf32>
    %99 = vector.shape_cast %98 : vector<1x5x5xf32> to vector<5x5xf32>
    %cst_98 = arith.constant dense<0.000000e+00> : vector<16x5xf32>
    %100 = tpu.matmul %97, %99, %cst_98 {dimension_numbers = #tpu.dot_dimension_numbers<[1], [0], [0], [1], [0, 0, 1, 1], [], []>} : vector<16x5xf32>, vector<5x5xf32>, vector<16x5xf32> -> vector<16x5xf32>
    %101 = arith.addf %94, %100 : vector<16x5xf32>
    %c2_99 = arith.constant 2 : index
    %c0_100 = arith.constant 0 : index
    %c0_101 = arith.constant 0 : index
    %102 = vector.load %arg11[%c2_99, %c0_100, %c0_101] : memref<3x16x32xf32, #tpu.memory_space<vmem>>, vector<1x16x32xf32>
    %103 = vector.shape_cast %102 : vector<1x16x32xf32> to vector<16x32xf32>
    %cst_102 = arith.constant dense<0.000000e+00> : vector<16x5xf32>
    %104 = tpu.matmul %103, %88, %cst_102 {dimension_numbers = #tpu.dot_dimension_numbers<[1], [0], [0], [1], [0, 0, 1, 1], [], []>} : vector<16x32xf32>, vector<32x5xf32>, vector<16x5xf32> -> vector<16x5xf32>
    %c2_103 = arith.constant 2 : index
    %c0_104 = arith.constant 0 : index
    %c0_105 = arith.constant 0 : index
    %105 = vector.load %arg12[%c2_103, %c0_104, %c0_105] : memref<3x5x5xf32, #tpu.memory_space<vmem>>, vector<1x5x5xf32>
    %106 = vector.shape_cast %105 : vector<1x5x5xf32> to vector<5x5xf32>
    %cst_106 = arith.constant dense<0.000000e+00> : vector<16x5xf32>
    %107 = tpu.matmul %104, %106, %cst_106 {dimension_numbers = #tpu.dot_dimension_numbers<[1], [0], [0], [1], [0, 0, 1, 1], [], []>} : vector<16x5xf32>, vector<5x5xf32>, vector<16x5xf32> -> vector<16x5xf32>
    %108 = arith.addf %101, %107 : vector<16x5xf32>
    %c0_107 = arith.constant 0 : index
    %c0_108 = arith.constant 0 : index
    %109 = vector.load %arg13[%c0_107, %c0_108] : memref<16x1xf32, #tpu.memory_space<vmem>>, vector<16x1xf32>
    %110 = vector.broadcast %109 : vector<16x1xf32> to vector<16x5xf32>
    %111 = arith.addf %108, %110 : vector<16x5xf32>
    %cst_109 = arith.constant 0.000000e+00 : f32
    %112 = vector.broadcast %cst_109 : f32 to vector<16x5xf32>
    %113 = arith.cmpf oge, %111, %112 : vector<16x5xf32>
    %114 = math.exp %111 : vector<16x5xf32>
    %cst_110 = arith.constant 1.000000e+00 : f32
    %115 = vector.broadcast %cst_110 : f32 to vector<16x5xf32>
    %116 = arith.subf %114, %115 : vector<16x5xf32>
    %117 = arith.select %113, %111, %116 : vector<16x5xi1>, vector<16x5xf32>
    %c0_111 = arith.constant 0 : index
    %c0_112 = arith.constant 0 : index
    %c0_113 = arith.constant 0 : index
    %118 = vector.load %arg14[%c0_111, %c0_112, %c0_113] : memref<3x8x16xf32, #tpu.memory_space<vmem>>, vector<1x8x16xf32>
    %119 = vector.shape_cast %118 : vector<1x8x16xf32> to vector<8x16xf32>
    %cst_114 = arith.constant dense<0.000000e+00> : vector<8x5xf32>
    %120 = tpu.matmul %119, %117, %cst_114 {dimension_numbers = #tpu.dot_dimension_numbers<[1], [0], [0], [1], [0, 0, 1, 1], [], []>} : vector<8x16xf32>, vector<16x5xf32>, vector<8x5xf32> -> vector<8x5xf32>
    %c0_115 = arith.constant 0 : index
    %c0_116 = arith.constant 0 : index
    %c0_117 = arith.constant 0 : index
    %121 = vector.load %arg15[%c0_115, %c0_116, %c0_117] : memref<3x5x9xf32, #tpu.memory_space<vmem>>, vector<1x5x9xf32>
    %122 = vector.shape_cast %121 : vector<1x5x9xf32> to vector<5x9xf32>
    %cst_118 = arith.constant dense<0.000000e+00> : vector<8x9xf32>
    %123 = tpu.matmul %120, %122, %cst_118 {dimension_numbers = #tpu.dot_dimension_numbers<[1], [0], [0], [1], [0, 0, 1, 1], [], []>} : vector<8x5xf32>, vector<5x9xf32>, vector<8x9xf32> -> vector<8x9xf32>
    %c1_119 = arith.constant 1 : index
    %c0_120 = arith.constant 0 : index
    %c0_121 = arith.constant 0 : index
    %124 = vector.load %arg14[%c1_119, %c0_120, %c0_121] : memref<3x8x16xf32, #tpu.memory_space<vmem>>, vector<1x8x16xf32>
    %125 = vector.shape_cast %124 : vector<1x8x16xf32> to vector<8x16xf32>
    %cst_122 = arith.constant dense<0.000000e+00> : vector<8x5xf32>
    %126 = tpu.matmul %125, %117, %cst_122 {dimension_numbers = #tpu.dot_dimension_numbers<[1], [0], [0], [1], [0, 0, 1, 1], [], []>} : vector<8x16xf32>, vector<16x5xf32>, vector<8x5xf32> -> vector<8x5xf32>
    %c1_123 = arith.constant 1 : index
    %c0_124 = arith.constant 0 : index
    %c0_125 = arith.constant 0 : index
    %127 = vector.load %arg15[%c1_123, %c0_124, %c0_125] : memref<3x5x9xf32, #tpu.memory_space<vmem>>, vector<1x5x9xf32>
    %128 = vector.shape_cast %127 : vector<1x5x9xf32> to vector<5x9xf32>
    %cst_126 = arith.constant dense<0.000000e+00> : vector<8x9xf32>
    %129 = tpu.matmul %126, %128, %cst_126 {dimension_numbers = #tpu.dot_dimension_numbers<[1], [0], [0], [1], [0, 0, 1, 1], [], []>} : vector<8x5xf32>, vector<5x9xf32>, vector<8x9xf32> -> vector<8x9xf32>
    %130 = arith.addf %123, %129 : vector<8x9xf32>
    %c2_127 = arith.constant 2 : index
    %c0_128 = arith.constant 0 : index
    %c0_129 = arith.constant 0 : index
    %131 = vector.load %arg14[%c2_127, %c0_128, %c0_129] : memref<3x8x16xf32, #tpu.memory_space<vmem>>, vector<1x8x16xf32>
    %132 = vector.shape_cast %131 : vector<1x8x16xf32> to vector<8x16xf32>
    %cst_130 = arith.constant dense<0.000000e+00> : vector<8x5xf32>
    %133 = tpu.matmul %132, %117, %cst_130 {dimension_numbers = #tpu.dot_dimension_numbers<[1], [0], [0], [1], [0, 0, 1, 1], [], []>} : vector<8x16xf32>, vector<16x5xf32>, vector<8x5xf32> -> vector<8x5xf32>
    %c2_131 = arith.constant 2 : index
    %c0_132 = arith.constant 0 : index
    %c0_133 = arith.constant 0 : index
    %134 = vector.load %arg15[%c2_131, %c0_132, %c0_133] : memref<3x5x9xf32, #tpu.memory_space<vmem>>, vector<1x5x9xf32>
    %135 = vector.shape_cast %134 : vector<1x5x9xf32> to vector<5x9xf32>
    %cst_134 = arith.constant dense<0.000000e+00> : vector<8x9xf32>
    %136 = tpu.matmul %133, %135, %cst_134 {dimension_numbers = #tpu.dot_dimension_numbers<[1], [0], [0], [1], [0, 0, 1, 1], [], []>} : vector<8x5xf32>, vector<5x9xf32>, vector<8x9xf32> -> vector<8x9xf32>
    %137 = arith.addf %130, %136 : vector<8x9xf32>
    %c0_135 = arith.constant 0 : index
    %c0_136 = arith.constant 0 : index
    %138 = vector.load %arg16[%c0_135, %c0_136] : memref<8x1xf32, #tpu.memory_space<vmem>>, vector<8x1xf32>
    %139 = vector.broadcast %138 : vector<8x1xf32> to vector<8x9xf32>
    %140 = arith.addf %137, %139 : vector<8x9xf32>
    %cst_137 = arith.constant 0.000000e+00 : f32
    %141 = vector.broadcast %cst_137 : f32 to vector<8x9xf32>
    %142 = arith.cmpf oge, %140, %141 : vector<8x9xf32>
    %143 = math.exp %140 : vector<8x9xf32>
    %cst_138 = arith.constant 1.000000e+00 : f32
    %144 = vector.broadcast %cst_138 : f32 to vector<8x9xf32>
    %145 = arith.subf %143, %144 : vector<8x9xf32>
    %146 = arith.select %142, %140, %145 : vector<8x9xi1>, vector<8x9xf32>
    %c0_139 = arith.constant 0 : index
    %c0_140 = arith.constant 0 : index
    %c0_141 = arith.constant 0 : index
    %147 = vector.load %arg17[%c0_139, %c0_140, %c0_141] : memref<3x4x8xf32, #tpu.memory_space<vmem>>, vector<1x4x8xf32>
    %148 = vector.shape_cast %147 : vector<1x4x8xf32> to vector<4x8xf32>
    %cst_142 = arith.constant dense<0.000000e+00> : vector<4x9xf32>
    %149 = tpu.matmul %148, %146, %cst_142 {dimension_numbers = #tpu.dot_dimension_numbers<[1], [0], [0], [1], [0, 0, 1, 1], [], []>} : vector<4x8xf32>, vector<8x9xf32>, vector<4x9xf32> -> vector<4x9xf32>
    %c0_143 = arith.constant 0 : index
    %c0_144 = arith.constant 0 : index
    %c0_145 = arith.constant 0 : index
    %150 = vector.load %arg18[%c0_143, %c0_144, %c0_145] : memref<3x9x17xf32, #tpu.memory_space<vmem>>, vector<1x9x17xf32>
    %151 = vector.shape_cast %150 : vector<1x9x17xf32> to vector<9x17xf32>
    %cst_146 = arith.constant dense<0.000000e+00> : vector<4x17xf32>
    %152 = tpu.matmul %149, %151, %cst_146 {dimension_numbers = #tpu.dot_dimension_numbers<[1], [0], [0], [1], [0, 0, 1, 1], [], []>} : vector<4x9xf32>, vector<9x17xf32>, vector<4x17xf32> -> vector<4x17xf32>
    %c1_147 = arith.constant 1 : index
    %c0_148 = arith.constant 0 : index
    %c0_149 = arith.constant 0 : index
    %153 = vector.load %arg17[%c1_147, %c0_148, %c0_149] : memref<3x4x8xf32, #tpu.memory_space<vmem>>, vector<1x4x8xf32>
    %154 = vector.shape_cast %153 : vector<1x4x8xf32> to vector<4x8xf32>
    %cst_150 = arith.constant dense<0.000000e+00> : vector<4x9xf32>
    %155 = tpu.matmul %154, %146, %cst_150 {dimension_numbers = #tpu.dot_dimension_numbers<[1], [0], [0], [1], [0, 0, 1, 1], [], []>} : vector<4x8xf32>, vector<8x9xf32>, vector<4x9xf32> -> vector<4x9xf32>
    %c1_151 = arith.constant 1 : index
    %c0_152 = arith.constant 0 : index
    %c0_153 = arith.constant 0 : index
    %156 = vector.load %arg18[%c1_151, %c0_152, %c0_153] : memref<3x9x17xf32, #tpu.memory_space<vmem>>, vector<1x9x17xf32>
    %157 = vector.shape_cast %156 : vector<1x9x17xf32> to vector<9x17xf32>
    %cst_154 = arith.constant dense<0.000000e+00> : vector<4x17xf32>
    %158 = tpu.matmul %155, %157, %cst_154 {dimension_numbers = #tpu.dot_dimension_numbers<[1], [0], [0], [1], [0, 0, 1, 1], [], []>} : vector<4x9xf32>, vector<9x17xf32>, vector<4x17xf32> -> vector<4x17xf32>
    %159 = arith.addf %152, %158 : vector<4x17xf32>
    %c2_155 = arith.constant 2 : index
    %c0_156 = arith.constant 0 : index
    %c0_157 = arith.constant 0 : index
    %160 = vector.load %arg17[%c2_155, %c0_156, %c0_157] : memref<3x4x8xf32, #tpu.memory_space<vmem>>, vector<1x4x8xf32>
    %161 = vector.shape_cast %160 : vector<1x4x8xf32> to vector<4x8xf32>
    %cst_158 = arith.constant dense<0.000000e+00> : vector<4x9xf32>
    %162 = tpu.matmul %161, %146, %cst_158 {dimension_numbers = #tpu.dot_dimension_numbers<[1], [0], [0], [1], [0, 0, 1, 1], [], []>} : vector<4x8xf32>, vector<8x9xf32>, vector<4x9xf32> -> vector<4x9xf32>
    %c2_159 = arith.constant 2 : index
    %c0_160 = arith.constant 0 : index
    %c0_161 = arith.constant 0 : index
    %163 = vector.load %arg18[%c2_159, %c0_160, %c0_161] : memref<3x9x17xf32, #tpu.memory_space<vmem>>, vector<1x9x17xf32>
    %164 = vector.shape_cast %163 : vector<1x9x17xf32> to vector<9x17xf32>
    %cst_162 = arith.constant dense<0.000000e+00> : vector<4x17xf32>
    %165 = tpu.matmul %162, %164, %cst_162 {dimension_numbers = #tpu.dot_dimension_numbers<[1], [0], [0], [1], [0, 0, 1, 1], [], []>} : vector<4x9xf32>, vector<9x17xf32>, vector<4x17xf32> -> vector<4x17xf32>
    %166 = arith.addf %159, %165 : vector<4x17xf32>
    %c0_163 = arith.constant 0 : index
    %c0_164 = arith.constant 0 : index
    %167 = vector.load %arg19[%c0_163, %c0_164] : memref<4x1xf32, #tpu.memory_space<vmem>>, vector<4x1xf32>
    %168 = vector.broadcast %167 : vector<4x1xf32> to vector<4x17xf32>
    %169 = arith.addf %166, %168 : vector<4x17xf32>
    %c0_165 = arith.constant 0 : index
    %c0_166 = arith.constant 0 : index
    %c0_167 = arith.constant 0 : index
    %170 = vector.load %arg20[%c0_165, %c0_166, %c0_167] : memref<1x4x17xf32, #tpu.memory_space<vmem>>, vector<1x4x17xf32>
    %171 = vector.shape_cast %170 : vector<1x4x17xf32> to vector<4x17xf32>
    %172 = vector.shape_cast %169 : vector<4x17xf32> to vector<1x4x17xf32>
    tpu.vector_store %arg20[%c0_165, %c0_166, %c0_167], %172 {strides = array<i32>} : memref<1x4x17xf32, #tpu.memory_space<vmem>>, vector<1x4x17xf32>,
    return
  }
  func.func @transform_0(%arg0: i32) -> (i32, i32, i32) {
    %c0_i32 = arith.constant 0 : i32
    %c0_i32_0 = arith.constant 0 : i32
    %c0_i32_1 = arith.constant 0 : i32
    return %arg0, %c0_i32, %c0_i32_0 : i32, i32, i32
  }
  func.func @transform_1(%arg0: i32) -> (i32, i32, i32) {
    %c0_i32 = arith.constant 0 : i32
    %c0_i32_0 = arith.constant 0 : i32
    %c0_i32_1 = arith.constant 0 : i32
    %c0_i32_2 = arith.constant 0 : i32
    return %c0_i32, %c0_i32_0, %c0_i32_1 : i32, i32, i32
  }
  func.func @transform_2(%arg0: i32) -> (i32, i32, i32) {
    %c0_i32 = arith.constant 0 : i32
    %c0_i32_0 = arith.constant 0 : i32
    %c0_i32_1 = arith.constant 0 : i32
    %c0_i32_2 = arith.constant 0 : i32
    return %c0_i32, %c0_i32_0, %c0_i32_1 : i32, i32, i32
  }
  func.func @transform_3(%arg0: i32) -> (i32, i32) {
    %c0_i32 = arith.constant 0 : i32
    %c0_i32_0 = arith.constant 0 : i32
    %c0_i32_1 = arith.constant 0 : i32
    return %c0_i32, %c0_i32_0 : i32, i32
  }
  func.func @transform_4(%arg0: i32) -> (i32, i32, i32) {
    %c0_i32 = arith.constant 0 : i32
    %c0_i32_0 = arith.constant 0 : i32
    %c0_i32_1 = arith.constant 0 : i32
    %c0_i32_2 = arith.constant 0 : i32
    return %c0_i32, %c0_i32_0, %c0_i32_1 : i32, i32, i32
  }
  func.func @transform_5(%arg0: i32) -> (i32, i32, i32) {
    %c0_i32 = arith.constant 0 : i32
    %c0_i32_0 = arith.constant 0 : i32
    %c0_i32_1 = arith.constant 0 : i32
    %c0_i32_2 = arith.constant 0 : i32
    return %c0_i32, %c0_i32_0, %c0_i32_1 : i32, i32, i32
  }
  func.func @transform_6(%arg0: i32) -> (i32, i32) {
    %c0_i32 = arith.constant 0 : i32
    %c0_i32_0 = arith.constant 0 : i32
    %c0_i32_1 = arith.constant 0 : i32
    return %c0_i32, %c0_i32_0 : i32, i32
  }
  func.func @transform_7(%arg0: i32) -> (i32, i32, i32) {
    %c0_i32 = arith.constant 0 : i32
    %c0_i32_0 = arith.constant 0 : i32
    %c0_i32_1 = arith.constant 0 : i32
    %c0_i32_2 = arith.constant 0 : i32
    return %c0_i32, %c0_i32_0, %c0_i32_1 : i32, i32, i32
  }
  func.func @transform_8(%arg0: i32) -> (i32, i32, i32) {
    %c0_i32 = arith.constant 0 : i32
    %c0_i32_0 = arith.constant 0 : i32
    %c0_i32_1 = arith.constant 0 : i32
    %c0_i32_2 = arith.constant 0 : i32
    return %c0_i32, %c0_i32_0, %c0_i32_1 : i32, i32, i32
  }
  func.func @transform_9(%arg0: i32) -> (i32, i32) {
    %c0_i32 = arith.constant 0 : i32
    %c0_i32_0 = arith.constant 0 : i32
    %c0_i32_1 = arith.constant 0 : i32
    return %c0_i32, %c0_i32_0 : i32, i32
  }
  func.func @transform_10(%arg0: i32) -> (i32, i32, i32) {
    %c0_i32 = arith.constant 0 : i32
    %c0_i32_0 = arith.constant 0 : i32
    %c0_i32_1 = arith.constant 0 : i32
    %c0_i32_2 = arith.constant 0 : i32
    return %c0_i32, %c0_i32_0, %c0_i32_1 : i32, i32, i32
  }
  func.func @transform_11(%arg0: i32) -> (i32, i32, i32) {
    %c0_i32 = arith.constant 0 : i32
    %c0_i32_0 = arith.constant 0 : i32
    %c0_i32_1 = arith.constant 0 : i32
    %c0_i32_2 = arith.constant 0 : i32
    return %c0_i32, %c0_i32_0, %c0_i32_1 : i32, i32, i32
  }
  func.func @transform_12(%arg0: i32) -> (i32, i32) {
    %c0_i32 = arith.constant 0 : i32
    %c0_i32_0 = arith.constant 0 : i32
    %c0_i32_1 = arith.constant 0 : i32
    return %c0_i32, %c0_i32_0 : i32, i32
  }
  func.func @transform_13(%arg0: i32) -> (i32, i32, i32) {
    %c0_i32 = arith.constant 0 : i32
    %c0_i32_0 = arith.constant 0 : i32
    %c0_i32_1 = arith.constant 0 : i32
    %c0_i32_2 = arith.constant 0 : i32
    return %c0_i32, %c0_i32_0, %c0_i32_1 : i32, i32, i32
  }
  func.func @transform_14(%arg0: i32) -> (i32, i32, i32) {
    %c0_i32 = arith.constant 0 : i32
    %c0_i32_0 = arith.constant 0 : i32
    %c0_i32_1 = arith.constant 0 : i32
    %c0_i32_2 = arith.constant 0 : i32
    return %c0_i32, %c0_i32_0, %c0_i32_1 : i32, i32, i32
  }
  func.func @transform_15(%arg0: i32) -> (i32, i32) {
    %c0_i32 = arith.constant 0 : i32
    %c0_i32_0 = arith.constant 0 : i32
    %c0_i32_1 = arith.constant 0 : i32
    return %c0_i32, %c0_i32_0 : i32, i32
  }
  func.func @transform_16(%arg0: i32) -> (i32, i32, i32) {
    %c0_i32 = arith.constant 0 : i32
    %c0_i32_0 = arith.constant 0 : i32
    %c0_i32_1 = arith.constant 0 : i32
    %c0_i32_2 = arith.constant 0 : i32
    return %c0_i32, %c0_i32_0, %c0_i32_1 : i32, i32, i32
  }
  func.func @transform_17(%arg0: i32) -> (i32, i32, i32) {
    %c0_i32 = arith.constant 0 : i32
    %c0_i32_0 = arith.constant 0 : i32
    %c0_i32_1 = arith.constant 0 : i32
    %c0_i32_2 = arith.constant 0 : i32
    return %c0_i32, %c0_i32_0, %c0_i32_1 : i32, i32, i32
  }
  func.func @transform_18(%arg0: i32) -> (i32, i32) {
    %c0_i32 = arith.constant 0 : i32
    %c0_i32_0 = arith.constant 0 : i32
    %c0_i32_1 = arith.constant 0 : i32
    return %c0_i32, %c0_i32_0 : i32, i32
  }
  func.func @transform_19(%arg0: i32) -> (i32, i32, i32) {
    %c0_i32 = arith.constant 0 : i32
    %c0_i32_0 = arith.constant 0 : i32
    %c0_i32_1 = arith.constant 0 : i32
    return %arg0, %c0_i32, %c0_i32_0 : i32, i32, i32
  }
}

</mosaic_0001>

<llo_original>
// kernel: tpu_custom_call.1
$region0: #{tpu_custom_call.1}
  #allocation0 [shape = 'u32[]', space=smem, size = 0x4, offset = 0x4, fixed_abs, tag = 'smem constant byte address 0x4 - core index']
  #allocation1 [shape = 'u32[144,128]{1,0:T(1,128)}', space=vmem, size = 0x12000, scoped, tag = 'internal scratch']
  %s0 = inlined_call_operand.vmem [shape: f32[2,4,17], index: 0, kind: input, shape index: {}]
  %s1 = inlined_call_operand.vmem [shape: f32[3,8,4], index: 1, kind: input, shape index: {}]
  %s2 = inlined_call_operand.vmem [shape: f32[3,17,9], index: 2, kind: input, shape index: {}]
  %s3 = inlined_call_operand.vmem [shape: f32[8,1], index: 3, kind: input, shape index: {}]
  %s4 = inlined_call_operand.vmem [shape: f32[3,16,8], index: 4, kind: input, shape index: {}]
  %s5 = inlined_call_operand.vmem [shape: f32[3,9,5], index: 5, kind: input, shape index: {}]
  %s6 = inlined_call_operand.vmem [shape: f32[16,1], index: 6, kind: input, shape index: {}]
  %s7 = inlined_call_operand.vmem [shape: f32[3,32,16], index: 7, kind: input, shape index: {}]
  %s8 = inlined_call_operand.vmem [shape: f32[3,5,5], index: 8, kind: input, shape index: {}]
  %s9 = inlined_call_operand.vmem [shape: f32[32,1], index: 9, kind: input, shape index: {}]
  %s10 = inlined_call_operand.vmem [shape: f32[3,16,32], index: 10, kind: input, shape index: {}]
  %s11 = inlined_call_operand.vmem [shape: f32[3,5,5], index: 11, kind: input, shape index: {}]
  %s12 = inlined_call_operand.vmem [shape: f32[16,1], index: 12, kind: input, shape index: {}]
  %s13 = inlined_call_operand.vmem [shape: f32[3,8,16], index: 13, kind: input, shape index: {}]
  %s14 = inlined_call_operand.vmem [shape: f32[3,5,9], index: 14, kind: input, shape index: {}]
  %s15 = inlined_call_operand.vmem [shape: f32[8,1], index: 15, kind: input, shape index: {}]
  %s16 = inlined_call_operand.vmem [shape: f32[3,4,8], index: 16, kind: input, shape index: {}]
  %s17 = inlined_call_operand.vmem [shape: f32[3,9,17], index: 17, kind: input, shape index: {}]
  %s18 = inlined_call_operand.vmem [shape: f32[4,1], index: 18, kind: input, shape index: {}]
  %s19 = inlined_call_operand.hbm [shape: f32[2,4,17], index: 19, kind: output, shape index: {}]
  %s20 = sld [smem:[#allocation0]]
  $region109: #{tpu_custom_call.1} parent=0
    _
  %s22 = ssub.s32 1, %s20
  %s23 = scalar_select 0, %s22, %s20
  $region1: #{tpu_custom_call.1} parent=0
    #allocation2 [shape = 'u8[4096]{0}', space=vmem, size = 0x1000, scoped, tag = 'output window, operand 0']
    #allocation3 [shape = 's32[2]{0}', space=sflag, size = 0x8, scoped, tag = 'scoped memory for tpu_custom_call.1']
    %24 = vsyncpa [#allocation3], 0
    %s25 = scalar_lea.sflag [#allocation3], 1
    %26 = vsyncpa %s25, 0
    loop: start=0, step=1, limit=4
    $region2: #{tpu_custom_call.1} parent=1 // loop_pre_header
      _
    $region3: #{tpu_custom_call.1} parent=1 // loop_header
      %s28 = sphi 0, %s32
      %p29 = scmp.ge.s32.totalorder %s28, 4
      %s38 = sphi 0, %s40
      %s41 = sphi 0, %s38
      %s42 = sphi 0, %s41
      %s58 = sphi 0, %s42
      %s62 = sphi 0, %s62
      %s64 = sphi 0, %s62
      %s65 = sphi 0, %s64
      %s79 = sphi 0, %s65
      %s83 = sphi 0, %s83
      %s85 = sphi 0, %s83
      %s86 = sphi 0, %s85
      %s100 = sphi 0, %s86
      %s104 = sphi 0, %s104
      %s106 = sphi 0, %s104
      %s107 = sphi 0, %s106
      %s121 = sphi 0, %s107
      %s125 = sphi 0, %s125
      %s127 = sphi 0, %s125
      %s128 = sphi 0, %s127
      %s142 = sphi 0, %s128
      %s146 = sphi 0, %s146
      %s148 = sphi 0, %s146
      %s149 = sphi 0, %s148
      %s163 = sphi 0, %s149
      %s167 = sphi 0, %s167
      %s169 = sphi 0, %s167
      %s170 = sphi 0, %s169
      %s184 = sphi 0, %s170
      %s188 = sphi 0, %s188
      %s190 = sphi 0, %s188
      %s191 = sphi 0, %s190
      %s205 = sphi 0, %s191
      %s209 = sphi 0, %s209
      %s211 = sphi 0, %s209
      %s212 = sphi 0, %s211
      %s226 = sphi 0, %s212
      %s230 = sphi 0, %s230
      %s232 = sphi 0, %s230
      %s233 = sphi 0, %s232
      %s247 = sphi 0, %s233
      %s251 = sphi 0, %s251
      %s253 = sphi 0, %s251
      %s254 = sphi 0, %s253
      %s268 = sphi 0, %s254
      %s272 = sphi 0, %s272
      %s274 = sphi 0, %s272
      %s275 = sphi 0, %s274
      %s289 = sphi 0, %s275
      %s293 = sphi 0, %s293
      %s295 = sphi 0, %s293
      %s296 = sphi 0, %s295
      %s310 = sphi 0, %s296
      %s314 = sphi 0, %s314
      %s316 = sphi 0, %s314
      %s317 = sphi 0, %s316
      %s331 = sphi 0, %s317
      %s335 = sphi 0, %s335
      %s337 = sphi 0, %s335
      %s338 = sphi 0, %s337
      %s352 = sphi 0, %s338
      %s356 = sphi 0, %s356
      %s358 = sphi 0, %s356
      %s359 = sphi 0, %s358
      %s373 = sphi 0, %s359
      %s377 = sphi 0, %s377
      %s379 = sphi 0, %s377
      %s380 = sphi 0, %s379
      %s394 = sphi 0, %s380
      %s398 = sphi 0, %s398
      %s400 = sphi 0, %s398
      %s401 = sphi 0, %s400
      %s415 = sphi 0, %s401
      %s419 = sphi 0, %s419
      %s421 = sphi 0, %s419
      %s422 = sphi 0, %s421
      %s436 = sphi 0, %s422
      %s442 = sphi 0, %s444
      %s445 = sphi 0, %s442
      %s446 = sphi 0, %s445
      %s462 = sphi 0, %s446
    $region4: #{tpu_custom_call.1} parent=1 // loop_header_branch
      %31 = sbr.rel (%p29) target = $region8
    $region5: #{tpu_custom_call.1} parent=1 // loop_body
      %s33 = ssub.s32 %s28, 1
      %s34 = ssub.s32 %s28, 2
      %s35 = sadd.s32 %s28, 1
      %s36 = ssub.s32 %s28, %s35
      %p37 = scmp.eq.s32.totalorder %s36, 0
      %s39 = sadd.s32 %s38, 1
      %s40 = scalar_select %p37, %s38, %s39
      %p43 = pneg %p37
      %p44 = scmp.eq.s32.totalorder %s28, 1
      %p45 = por %p43, %p44
      %p46 = scmp.ne.s32.totalorder %s38, %s41
      %p47 = scmp.eq.s32.totalorder %s28, 0
      %p48 = por %p46, %p47
      %p49 = scmp.ne.s32.totalorder %s38, %s41
      %p50 = scmp.eq.s32.totalorder %s33, 1
      %p51 = por %p49, %p50
      %p52 = scmp.ne.s32.totalorder %s41, %s42
      %p53 = scmp.eq.s32.totalorder %s33, 0
      %p54 = por %p52, %p53
      %p55 = scmp.ne.s32.totalorder %s41, %s42
      %p56 = scmp.eq.s32.totalorder %s34, 1
      %p57 = por %p55, %p56
      %p59 = scmp.ne.s32.totalorder %s42, %s58
      %p60 = scmp.eq.s32.totalorder %s34, 0
      %p61 = por %p59, %p60
      %s63 = sadd.s32 %s62, 1
      %p66 = scmp.eq.s32.totalorder %s28, 1
      %p67 = scmp.ne.s32.totalorder %s62, %s64
      %p68 = scmp.eq.s32.totalorder %s28, 0
      %p69 = por %p67, %p68
      %p70 = scmp.ne.s32.totalorder %s62, %s64
      %p71 = scmp.eq.s32.totalorder %s33, 1
      %p72 = por %p70, %p71
      %p73 = scmp.ne.s32.totalorder %s64, %s65
      %p74 = scmp.eq.s32.totalorder %s33, 0
      %p75 = por %p73, %p74
      %p76 = scmp.ne.s32.totalorder %s64, %s65
      %p77 = scmp.eq.s32.totalorder %s34, 1
      %p78 = por %p76, %p77
      %p80 = scmp.ne.s32.totalorder %s65, %s79
      %p81 = scmp.eq.s32.totalorder %s34, 0
      %p82 = por %p80, %p81
      %s84 = sadd.s32 %s83, 1
      %p87 = scmp.eq.s32.totalorder %s28, 1
      %p88 = scmp.ne.s32.totalorder %s83, %s85
      %p89 = scmp.eq.s32.totalorder %s28, 0
      %p90 = por %p88, %p89
      %p91 = scmp.ne.s32.totalorder %s83, %s85
      %p92 = scmp.eq.s32.totalorder %s33, 1
      %p93 = por %p91, %p92
      %p94 = scmp.ne.s32.totalorder %s85, %s86
      %p95 = scmp.eq.s32.totalorder %s33, 0
      %p96 = por %p94, %p95
      %p97 = scmp.ne.s32.totalorder %s85, %s86
      %p98 = scmp.eq.s32.totalorder %s34, 1
      %p99 = por %p97, %p98
      %p101 = scmp.ne.s32.totalorder %s86, %s100
      %p102 = scmp.eq.s32.totalorder %s34, 0
      %p103 = por %p101, %p102
      %s105 = sadd.s32 %s104, 1
      %p108 = scmp.eq.s32.totalorder %s28, 1
      %p109 = scmp.ne.s32.totalorder %s104, %s106
      %p110 = scmp.eq.s32.totalorder %s28, 0
      %p111 = por %p109, %p110
      %p112 = scmp.ne.s32.totalorder %s104, %s106
      %p113 = scmp.eq.s32.totalorder %s33, 1
      %p114 = por %p112, %p113
      %p115 = scmp.ne.s32.totalorder %s106, %s107
      %p116 = scmp.eq.s32.totalorder %s33, 0
      %p117 = por %p115, %p116
      %p118 = scmp.ne.s32.totalorder %s106, %s107
      %p119 = scmp.eq.s32.totalorder %s34, 1
      %p120 = por %p118, %p119
      %p122 = scmp.ne.s32.totalorder %s107, %s121
      %p123 = scmp.eq.s32.totalorder %s34, 0
      %p124 = por %p122, %p123
      %s126 = sadd.s32 %s125, 1
      %p129 = scmp.eq.s32.totalorder %s28, 1
      %p130 = scmp.ne.s32.totalorder %s125, %s127
      %p131 = scmp.eq.s32.totalorder %s28, 0
      %p132 = por %p130, %p131
      %p133 = scmp.ne.s32.totalorder %s125, %s127
      %p134 = scmp.eq.s32.totalorder %s33, 1
      %p135 = por %p133, %p134
      %p136 = scmp.ne.s32.totalorder %s127, %s128
      %p137 = scmp.eq.s32.totalorder %s33, 0
      %p138 = por %p136, %p137
      %p139 = scmp.ne.s32.totalorder %s127, %s128
      %p140 = scmp.eq.s32.totalorder %s34, 1
      %p141 = por %p139, %p140
      %p143 = scmp.ne.s32.totalorder %s128, %s142
      %p144 = scmp.eq.s32.totalorder %s34, 0
      %p145 = por %p143, %p144
      %s147 = sadd.s32 %s146, 1
      %p150 = scmp.eq.s32.totalorder %s28, 1
      %p151 = scmp.ne.s32.totalorder %s146, %s148
      %p152 = scmp.eq.s32.totalorder %s28, 0
      %p153 = por %p151, %p152
      %p154 = scmp.ne.s32.totalorder %s146, %s148
      %p155 = scmp.eq.s32.totalorder %s33, 1
      %p156 = por %p154, %p155
      %p157 = scmp.ne.s32.totalorder %s148, %s149
      %p158 = scmp.eq.s32.totalorder %s33, 0
      %p159 = por %p157, %p158
      %p160 = scmp.ne.s32.totalorder %s148, %s149
      %p161 = scmp.eq.s32.totalorder %s34, 1
      %p162 = por %p160, %p161
      %p164 = scmp.ne.s32.totalorder %s149, %s163
      %p165 = scmp.eq.s32.totalorder %s34, 0
      %p166 = por %p164, %p165
      %s168 = sadd.s32 %s167, 1
      %p171 = scmp.eq.s32.totalorder %s28, 1
      %p172 = scmp.ne.s32.totalorder %s167, %s169
      %p173 = scmp.eq.s32.totalorder %s28, 0
      %p174 = por %p172, %p173
      %p175 = scmp.ne.s32.totalorder %s167, %s169
      %p176 = scmp.eq.s32.totalorder %s33, 1
      %p177 = por %p175, %p176
      %p178 = scmp.ne.s32.totalorder %s169, %s170
      %p179 = scmp.eq.s32.totalorder %s33, 0
      %p180 = por %p178, %p179
      %p181 = scmp.ne.s32.totalorder %s169, %s170
      %p182 = scmp.eq.s32.totalorder %s34, 1
      %p183 = por %p181, %p182
      %p185 = scmp.ne.s32.totalorder %s170, %s184
      %p186 = scmp.eq.s32.totalorder %s34, 0
      %p187 = por %p185, %p186
      %s189 = sadd.s32 %s188, 1
      %p192 = scmp.eq.s32.totalorder %s28, 1
      %p193 = scmp.ne.s32.totalorder %s188, %s190
      %p194 = scmp.eq.s32.totalorder %s28, 0
      %p195 = por %p193, %p194
      %p196 = scmp.ne.s32.totalorder %s188, %s190
      %p197 = scmp.eq.s32.totalorder %s33, 1
      %p198 = por %p196, %p197
      %p199 = scmp.ne.s32.totalorder %s190, %s191
      %p200 = scmp.eq.s32.totalorder %s33, 0
      %p201 = por %p199, %p200
      %p202 = scmp.ne.s32.totalorder %s190, %s191
      %p203 = scmp.eq.s32.totalorder %s34, 1
      %p204 = por %p202, %p203
      %p206 = scmp.ne.s32.totalorder %s191, %s205
      %p207 = scmp.eq.s32.totalorder %s34, 0
      %p208 = por %p206, %p207
      %s210 = sadd.s32 %s209, 1
      %p213 = scmp.eq.s32.totalorder %s28, 1
      %p214 = scmp.ne.s32.totalorder %s209, %s211
      %p215 = scmp.eq.s32.totalorder %s28, 0
      %p216 = por %p214, %p215
      %p217 = scmp.ne.s32.totalorder %s209, %s211
      %p218 = scmp.eq.s32.totalorder %s33, 1
      %p219 = por %p217, %p218
      %p220 = scmp.ne.s32.totalorder %s211, %s212
      %p221 = scmp.eq.s32.totalorder %s33, 0
      %p222 = por %p220, %p221
      %p223 = scmp.ne.s32.totalorder %s211, %s212
      %p224 = scmp.eq.s32.totalorder %s34, 1
      %p225 = por %p223, %p224
      %p227 = scmp.ne.s32.totalorder %s212, %s226
      %p228 = scmp.eq.s32.totalorder %s34, 0
      %p229 = por %p227, %p228
      %s231 = sadd.s32 %s230, 1
      %p234 = scmp.eq.s32.totalorder %s28, 1
      %p235 = scmp.ne.s32.totalorder %s230, %s232
      %p236 = scmp.eq.s32.totalorder %s28, 0
      %p237 = por %p235, %p236
      %p238 = scmp.ne.s32.totalorder %s230, %s232
      %p239 = scmp.eq.s32.totalorder %s33, 1
      %p240 = por %p238, %p239
      %p241 = scmp.ne.s32.totalorder %s232, %s233
      %p242 = scmp.eq.s32.totalorder %s33, 0
      %p243 = por %p241, %p242
      %p244 = scmp.ne.s32.totalorder %s232, %s233
      %p245 = scmp.eq.s32.totalorder %s34, 1
      %p246 = por %p244, %p245
      %p248 = scmp.ne.s32.totalorder %s233, %s247
      %p249 = scmp.eq.s32.totalorder %s34, 0
      %p250 = por %p248, %p249
      %s252 = sadd.s32 %s251, 1
      %p255 = scmp.eq.s32.totalorder %s28, 1
      %p256 = scmp.ne.s32.totalorder %s251, %s253
      %p257 = scmp.eq.s32.totalorder %s28, 0
      %p258 = por %p256, %p257
      %p259 = scmp.ne.s32.totalorder %s251, %s253
      %p260 = scmp.eq.s32.totalorder %s33, 1
      %p261 = por %p259, %p260
      %p262 = scmp.ne.s32.totalorder %s253, %s254
      %p263 = scmp.eq.s32.totalorder %s33, 0
      %p264 = por %p262, %p263
      %p265 = scmp.ne.s32.totalorder %s253, %s254
      %p266 = scmp.eq.s32.totalorder %s34, 1
      %p267 = por %p265, %p266
      %p269 = scmp.ne.s32.totalorder %s254, %s268
      %p270 = scmp.eq.s32.totalorder %s34, 0
      %p271 = por %p269, %p270
      %s273 = sadd.s32 %s272, 1
      %p276 = scmp.eq.s32.totalorder %s28, 1
      %p277 = scmp.ne.s32.totalorder %s272, %s274
      %p278 = scmp.eq.s32.totalorder %s28, 0
      %p279 = por %p277, %p278
      %p280 = scmp.ne.s32.totalorder %s272, %s274
      %p281 = scmp.eq.s32.totalorder %s33, 1
      %p282 = por %p280, %p281
      %p283 = scmp.ne.s32.totalorder %s274, %s275
      %p284 = scmp.eq.s32.totalorder %s33, 0
      %p285 = por %p283, %p284
      %p286 = scmp.ne.s32.totalorder %s274, %s275
      %p287 = scmp.eq.s32.totalorder %s34, 1
      %p288 = por %p286, %p287
      %p290 = scmp.ne.s32.totalorder %s275, %s289
      %p291 = scmp.eq.s32.totalorder %s34, 0
      %p292 = por %p290, %p291
      %s294 = sadd.s32 %s293, 1
      %p297 = scmp.eq.s32.totalorder %s28, 1
      %p298 = scmp.ne.s32.totalorder %s293, %s295
      %p299 = scmp.eq.s32.totalorder %s28, 0
      %p300 = por %p298, %p299
      %p301 = scmp.ne.s32.totalorder %s293, %s295
      %p302 = scmp.eq.s32.totalorder %s33, 1
      %p303 = por %p301, %p302
      %p304 = scmp.ne.s32.totalorder %s295, %s296
      %p305 = scmp.eq.s32.totalorder %s33, 0
      %p306 = por %p304, %p305
      %p307 = scmp.ne.s32.totalorder %s295, %s296
      %p308 = scmp.eq.s32.totalorder %s34, 1
      %p309 = por %p307, %p308
      %p311 = scmp.ne.s32.totalorder %s296, %s310
      %p312 = scmp.eq.s32.totalorder %s34, 0
      %p313 = por %p311, %p312
      %s315 = sadd.s32 %s314, 1
      %p318 = scmp.eq.s32.totalorder %s28, 1
      %p319 = scmp.ne.s32.totalorder %s314, %s316
      %p320 = scmp.eq.s32.totalorder %s28, 0
      %p321 = por %p319, %p320
      %p322 = scmp.ne.s32.totalorder %s314, %s316
      %p323 = scmp.eq.s32.totalorder %s33, 1
      %p324 = por %p322, %p323
      %p325 = scmp.ne.s32.totalorder %s316, %s317
      %p326 = scmp.eq.s32.totalorder %s33, 0
      %p327 = por %p325, %p326
      %p328 = scmp.ne.s32.totalorder %s316, %s317
      %p329 = scmp.eq.s32.totalorder %s34, 1
      %p330 = por %p328, %p329
      %p332 = scmp.ne.s32.totalorder %s317, %s331
      %p333 = scmp.eq.s32.totalorder %s34, 0
      %p334 = por %p332, %p333
      %s336 = sadd.s32 %s335, 1
      %p339 = scmp.eq.s32.totalorder %s28, 1
      %p340 = scmp.ne.s32.totalorder %s335, %s337
      %p341 = scmp.eq.s32.totalorder %s28, 0
      %p342 = por %p340, %p341
      %p343 = scmp.ne.s32.totalorder %s335, %s337
      %p344 = scmp.eq.s32.totalorder %s33, 1
      %p345 = por %p343, %p344
      %p346 = scmp.ne.s32.totalorder %s337, %s338
      %p347 = scmp.eq.s32.totalorder %s33, 0
      %p348 = por %p346, %p347
      %p349 = scmp.ne.s32.totalorder %s337, %s338
      %p350 = scmp.eq.s32.totalorder %s34, 1
      %p351 = por %p349, %p350
      %p353 = scmp.ne.s32.totalorder %s338, %s352
      %p354 = scmp.eq.s32.totalorder %s34, 0
      %p355 = por %p353, %p354
      %s357 = sadd.s32 %s356, 1
      %p360 = scmp.eq.s32.totalorder %s28, 1
      %p361 = scmp.ne.s32.totalorder %s356, %s358
      %p362 = scmp.eq.s32.totalorder %s28, 0
      %p363 = por %p361, %p362
      %p364 = scmp.ne.s32.totalorder %s356, %s358
      %p365 = scmp.eq.s32.totalorder %s33, 1
      %p366 = por %p364, %p365
      %p367 = scmp.ne.s32.totalorder %s358, %s359
      %p368 = scmp.eq.s32.totalorder %s33, 0
      %p369 = por %p367, %p368
      %p370 = scmp.ne.s32.totalorder %s358, %s359
      %p371 = scmp.eq.s32.totalorder %s34, 1
      %p372 = por %p370, %p371
      %p374 = scmp.ne.s32.totalorder %s359, %s373
      %p375 = scmp.eq.s32.totalorder %s34, 0
      %p376 = por %p374, %p375
      %s378 = sadd.s32 %s377, 1
      %p381 = scmp.eq.s32.totalorder %s28, 1
      %p382 = scmp.ne.s32.totalorder %s377, %s379
      %p383 = scmp.eq.s32.totalorder %s28, 0
      %p384 = por %p382, %p383
      %p385 = scmp.ne.s32.totalorder %s377, %s379
      %p386 = scmp.eq.s32.totalorder %s33, 1
      %p387 = por %p385, %p386
      %p388 = scmp.ne.s32.totalorder %s379, %s380
      %p389 = scmp.eq.s32.totalorder %s33, 0
      %p390 = por %p388, %p389
      %p391 = scmp.ne.s32.totalorder %s379, %s380
      %p392 = scmp.eq.s32.totalorder %s34, 1
      %p393 = por %p391, %p392
      %p395 = scmp.ne.s32.totalorder %s380, %s394
      %p396 = scmp.eq.s32.totalorder %s34, 0
      %p397 = por %p395, %p396
      %s399 = sadd.s32 %s398, 1
      %p402 = scmp.eq.s32.totalorder %s28, 1
      %p403 = scmp.ne.s32.totalorder %s398, %s400
      %p404 = scmp.eq.s32.totalorder %s28, 0
      %p405 = por %p403, %p404
      %p406 = scmp.ne.s32.totalorder %s398, %s400
      %p407 = scmp.eq.s32.totalorder %s33, 1
      %p408 = por %p406, %p407
      %p409 = scmp.ne.s32.totalorder %s400, %s401
      %p410 = scmp.eq.s32.totalorder %s33, 0
      %p411 = por %p409, %p410
      %p412 = scmp.ne.s32.totalorder %s400, %s401
      %p413 = scmp.eq.s32.totalorder %s34, 1
      %p414 = por %p412, %p413
      %p416 = scmp.ne.s32.totalorder %s401, %s415
      %p417 = scmp.eq.s32.totalorder %s34, 0
      %p418 = por %p416, %p417
      %s420 = sadd.s32 %s419, 1
      %p423 = scmp.eq.s32.totalorder %s28, 1
      %p424 = scmp.ne.s32.totalorder %s419, %s421
      %p425 = scmp.eq.s32.totalorder %s28, 0
      %p426 = por %p424, %p425
      %p427 = scmp.ne.s32.totalorder %s419, %s421
      %p428 = scmp.eq.s32.totalorder %s33, 1
      %p429 = por %p427, %p428
      %p430 = scmp.ne.s32.totalorder %s421, %s422
      %p431 = scmp.eq.s32.totalorder %s33, 0
      %p432 = por %p430, %p431
      %p433 = scmp.ne.s32.totalorder %s421, %s422
      %p434 = scmp.eq.s32.totalorder %s34, 1
      %p435 = por %p433, %p434
      %p437 = scmp.ne.s32.totalorder %s422, %s436
      %p438 = scmp.eq.s32.totalorder %s34, 0
      %p439 = por %p437, %p438
      %s440 = ssub.s32 %s28, %s35
      %p441 = scmp.eq.s32.totalorder %s440, 0
      %s443 = sadd.s32 %s442, 1
      %s444 = scalar_select %p441, %s442, %s443
      %p447 = pneg %p441
      %p448 = scmp.eq.s32.totalorder %s28, 1
      %p449 = por %p447, %p448
      %p450 = scmp.ne.s32.totalorder %s442, %s445
      %p451 = scmp.eq.s32.totalorder %s28, 0
      %p452 = por %p450, %p451
      %p453 = scmp.ne.s32.totalorder %s442, %s445
      %p454 = scmp.eq.s32.totalorder %s33, 1
      %p455 = por %p453, %p454
      %p456 = scmp.ne.s32.totalorder %s445, %s446
      %p457 = scmp.eq.s32.totalorder %s33, 0
      %p458 = por %p456, %p457
      %p459 = scmp.ne.s32.totalorder %s445, %s446
      %p460 = scmp.eq.s32.totalorder %s34, 1
      %p461 = por %p459, %p460
      %p463 = scmp.ne.s32.totalorder %s446, %s462
      %p464 = scmp.eq.s32.totalorder %s34, 0
      %p465 = por %p463, %p464
      %p466 = scmp.le.s32.totalorder 1, %s28
      %p467 = scmp.lt.s32.totalorder %s28, 3
      %p468 = pnand %p466, %p467
      %p469 = pneg %p468
      // Predicated region
      $region9: #{tpu_custom_call.1} parent=5 // pred_check
        _
      $region10: #{tpu_custom_call.1} parent=5 // pred_check_branch
        %471 = sbr.rel (%p468) target = $region12
      $region11: #{tpu_custom_call.1} parent=5 // pred_region
        %s472 = ssub.s32 %s28, 1
        // Predicated region
        $region13: #{tpu_custom_call.1} parent=11 // pred_check
          %p473 = pneg %p75
        $region14: #{tpu_custom_call.1} parent=11 // pred_check_branch
          %475 = sbr.rel (%p473) target = $region16
        $region15: #{tpu_custom_call.1} parent=11 // pred_region
          _
        $region16: #{tpu_custom_call.1} parent=11 // pred_fallthru
          _
        // Predicated region
        $region17: #{tpu_custom_call.1} parent=11 // pred_check
          %p476 = pneg %p96
        $region18: #{tpu_custom_call.1} parent=11 // pred_check_branch
          %478 = sbr.rel (%p476) target = $region20
        $region19: #{tpu_custom_call.1} parent=11 // pred_region
          _
        $region20: #{tpu_custom_call.1} parent=11 // pred_fallthru
          _
        // Predicated region
        $region21: #{tpu_custom_call.1} parent=11 // pred_check
          %p479 = pneg %p117
        $region22: #{tpu_custom_call.1} parent=11 // pred_check_branch
          %481 = sbr.rel (%p479) target = $region24
        $region23: #{tpu_custom_call.1} parent=11 // pred_region
          _
        $region24: #{tpu_custom_call.1} parent=11 // pred_fallthru
          _
        // Predicated region
        $region25: #{tpu_custom_call.1} parent=11 // pred_check
          %p482 = pneg %p138
        $region26: #{tpu_custom_call.1} parent=11 // pred_check_branch
          %484 = sbr.rel (%p482) target = $region28
        $region27: #{tpu_custom_call.1} parent=11 // pred_region
          _
        $region28: #{tpu_custom_call.1} parent=11 // pred_fallthru
          _
        // Predicated region
        $region29: #{tpu_custom_call.1} parent=11 // pred_check
          %p485 = pneg %p159
        $region30: #{tpu_custom_call.1} parent=11 // pred_check_branch
          %487 = sbr.rel (%p485) target = $region32
        $region31: #{tpu_custom_call.1} parent=11 // pred_region
          _
        $region32: #{tpu_custom_call.1} parent=11 // pred_fallthru
          _
        // Predicated region
        $region33: #{tpu_custom_call.1} parent=11 // pred_check
          %p488 = pneg %p180
        $region34: #{tpu_custom_call.1} parent=11 // pred_check_branch
          %490 = sbr.rel (%p488) target = $region36
        $region35: #{tpu_custom_call.1} parent=11 // pred_region
          _
        $region36: #{tpu_custom_call.1} parent=11 // pred_fallthru
          _
        // Predicated region
        $region37: #{tpu_custom_call.1} parent=11 // pred_check
          %p491 = pneg %p201
        $region38: #{tpu_custom_call.1} parent=11 // pred_check_branch
          %493 = sbr.rel (%p491) target = $region40
        $region39: #{tpu_custom_call.1} parent=11 // pred_region
          _
        $region40: #{tpu_custom_call.1} parent=11 // pred_fallthru
          _
        // Predicated region
        $region41: #{tpu_custom_call.1} parent=11 // pred_check
          %p494 = pneg %p222
        $region42: #{tpu_custom_call.1} parent=11 // pred_check_branch
          %496 = sbr.rel (%p494) target = $region44
        $region43: #{tpu_custom_call.1} parent=11 // pred_region
          _
        $region44: #{tpu_custom_call.1} parent=11 // pred_fallthru
          _
        // Predicated region
        $region45: #{tpu_custom_call.1} parent=11 // pred_check
          %p497 = pneg %p243
        $region46: #{tpu_custom_call.1} parent=11 // pred_check_branch
          %499 = sbr.rel (%p497) target = $region48
        $region47: #{tpu_custom_call.1} parent=11 // pred_region
          _
        $region48: #{tpu_custom_call.1} parent=11 // pred_fallthru
          _
        // Predicated region
        $region49: #{tpu_custom_call.1} parent=11 // pred_check
          %p500 = pneg %p264
        $region50: #{tpu_custom_call.1} parent=11 // pred_check_branch
          %502 = sbr.rel (%p500) target = $region52
        $region51: #{tpu_custom_call.1} parent=11 // pred_region
          _
        $region52: #{tpu_custom_call.1} parent=11 // pred_fallthru
          _
        // Predicated region
        $region53: #{tpu_custom_call.1} parent=11 // pred_check
          %p503 = pneg %p285
        $region54: #{tpu_custom_call.1} parent=11 // pred_check_branch
          %505 = sbr.rel (%p503) target = $region56
        $region55: #{tpu_custom_call.1} parent=11 // pred_region
          _
        $region56: #{tpu_custom_call.1} parent=11 // pred_fallthru
          _
        // Predicated region
        $region57: #{tpu_custom_call.1} parent=11 // pred_check
          %p506 = pneg %p306
        $region58: #{tpu_custom_call.1} parent=11 // pred_check_branch
          %508 = sbr.rel (%p506) target = $region60
        $region59: #{tpu_custom_call.1} parent=11 // pred_region
          _
        $region60: #{tpu_custom_call.1} parent=11 // pred_fallthru
          _
        // Predicated region
        $region61: #{tpu_custom_call.1} parent=11 // pred_check
          %p509 = pneg %p327
        $region62: #{tpu_custom_call.1} parent=11 // pred_check_branch
          %511 = sbr.rel (%p509) target = $region64
        $region63: #{tpu_custom_call.1} parent=11 // pred_region
          _
        $region64: #{tpu_custom_call.1} parent=11 // pred_fallthru
          _
        // Predicated region
        $region65: #{tpu_custom_call.1} parent=11 // pred_check
          %p512 = pneg %p348
        $region66: #{tpu_custom_call.1} parent=11 // pred_check_branch
          %514 = sbr.rel (%p512) target = $region68
        $region67: #{tpu_custom_call.1} parent=11 // pred_region
          _
        $region68: #{tpu_custom_call.1} parent=11 // pred_fallthru
          _
        // Predicated region
        $region69: #{tpu_custom_call.1} parent=11 // pred_check
          %p515 = pneg %p369
        $region70: #{tpu_custom_call.1} parent=11 // pred_check_branch
          %517 = sbr.rel (%p515) target = $region72
        $region71: #{tpu_custom_call.1} parent=11 // pred_region
          _
        $region72: #{tpu_custom_call.1} parent=11 // pred_fallthru
          _
        // Predicated region
        $region73: #{tpu_custom_call.1} parent=11 // pred_check
          %p518 = pneg %p390
        $region74: #{tpu_custom_call.1} parent=11 // pred_check_branch
          %520 = sbr.rel (%p518) target = $region76
        $region75: #{tpu_custom_call.1} parent=11 // pred_region
          _
        $region76: #{tpu_custom_call.1} parent=11 // pred_fallthru
          _
        // Predicated region
        $region77: #{tpu_custom_call.1} parent=11 // pred_check
          %p521 = pneg %p411
        $region78: #{tpu_custom_call.1} parent=11 // pred_check_branch
          %523 = sbr.rel (%p521) target = $region80
        $region79: #{tpu_custom_call.1} parent=11 // pred_region
          _
        $region80: #{tpu_custom_call.1} parent=11 // pred_fallthru
          _
        // Predicated region
        $region81: #{tpu_custom_call.1} parent=11 // pred_check
          %p524 = pneg %p432
        $region82: #{tpu_custom_call.1} parent=11 // pred_check_branch
          %526 = sbr.rel (%p524) target = $region84
        $region83: #{tpu_custom_call.1} parent=11 // pred_region
          _
        $region84: #{tpu_custom_call.1} parent=11 // pred_fallthru
          _
      $region12: #{tpu_custom_call.1} parent=5 // pred_fallthru
        _
      %p527 = scmp.lt.s32.totalorder %s28, 2
      // Predicated region
      $region85: #{tpu_custom_call.1} parent=5 // pred_check
        %p528 = pneg %p527
      $region86: #{tpu_custom_call.1} parent=5 // pred_check_branch
        %530 = sbr.rel (%p528) target = $region88
      $region87: #{tpu_custom_call.1} parent=5 // pred_region
        // Predicated region
        $region89: #{tpu_custom_call.1} parent=87 // pred_check
          %p531 = pneg %p48
        $region90: #{tpu_custom_call.1} parent=87 // pred_check_branch
          %533 = sbr.rel (%p531) target = $region92
        $region91: #{tpu_custom_call.1} parent=87 // pred_region
          %p534 = scmp.lt.s32.totalorder %s28, 1
          %s535 = scalar_select %p534, %s28, 1
          %s536 = smul.addr %s535, 4
          %s537 = scalar_lea.vmem %s0, %s536
        $region92: #{tpu_custom_call.1} parent=87 // pred_fallthru
          _
      $region88: #{tpu_custom_call.1} parent=5 // pred_fallthru
        _
      %p538 = scmp.le.s32.totalorder 1, %s28
      %p539 = scmp.lt.s32.totalorder %s28, 3
      %p540 = pnand %p538, %p539
      %p541 = pneg %p540
      // Predicated region
      $region93: #{tpu_custom_call.1} parent=5 // pred_check
        _
      $region94: #{tpu_custom_call.1} parent=5 // pred_check_branch
        %543 = sbr.rel (%p540) target = $region96
      $region95: #{tpu_custom_call.1} parent=5 // pred_region
        %s544 = ssub.s32 %s28, 1
        %p545 = scmp.lt.s32.totalorder %s33, 1
        %s546 = scalar_select %p545, %s33, 1
        %s547 = smul.addr %s546, 4
        %s548 = scalar_lea.vmem %s0, %s547
        %p549 = pneg %p54
        %p550 = pneg %p51
        %p551 = pneg %p75
        %p552 = pneg %p72
        %p553 = pneg %p96
        %p554 = pneg %p93
        %p555 = pneg %p117
        %p556 = pneg %p114
        %p557 = pneg %p138
        %p558 = pneg %p135
        %p559 = pneg %p159
        %p560 = pneg %p156
        %p561 = pneg %p180
        %p562 = pneg %p177
        %p563 = pneg %p201
        %p564 = pneg %p198
        %p565 = pneg %p222
        %p566 = pneg %p219
        %p567 = pneg %p243
        %p568 = pneg %p240
        %p569 = pneg %p264
        %p570 = pneg %p261
        %p571 = pneg %p285
        %p572 = pneg %p282
        %p573 = pneg %p306
        %p574 = pneg %p303
        %p575 = pneg %p327
        %p576 = pneg %p324
        %p577 = pneg %p348
        %p578 = pneg %p345
        %p579 = pneg %p369
        %p580 = pneg %p366
        %p581 = pneg %p390
        %p582 = pneg %p387
        %p583 = pneg %p411
        %p584 = pneg %p408
        %p585 = pneg %p432
        %p586 = pneg %p429
        %p587 = pneg %p458
        %p588 = pneg %p455
        %s589 = sand.u32 %s445, 1
        %s590 = scalar_lea.sflag [#allocation3], %s589
        %s591 = sand.u32 %s445, 1
        %s592 = smul.addr %s591, 4
        %s593 = scalar_lea.vmem [#allocation2], %s592
        %p594 = scmp.lt.s32.totalorder %s33, 1
        %s595 = scalar_select %p594, %s33, 1
        %s596 = smul.addr %s595, 4
        %s597 = scalar_lea.vmem %s0, %s596
        %v598 = vld [vmem:[%s597] sm:$0xf]
        %v599 = vld [vmem:[%s1] sm:$0xff]
        %vm600 = vcmask 31744
        %v602 = vsel %vm600, %v599, 0
        %vm604 = vcmask 1043456
        %v606 = vsel %vm604, %v598, 0
        %608 = vmatprep.subr.mxu0 0.0
        %609 = vmatpush1.msra.mxu0 %v606
        %610 = vmatprep.subr.mxu0 0.0
        %611 = vmatpush1.msra.mxu0 0.0
        %612 = vmatprep.subr.mxu0 0.0
        %613 = vmatpush1.msra.mxu0 0.0
        %614 = vmatprep.subr.mxu0 0.0
        %615 = vmatpush1.msra.mxu0 0.0
        %616 = vmatprep.subr.mxu0 0.0
        %617 = vmatpush1.msra.mxu0 0.0
        %618 = vmatprep.subr.mxu0 0.0
        %619 = vmatpush1.msra.mxu0 0.0
        %620 = vmatprep.subr.mxu0 0.0
        %621 = vmatpush1.msra.mxu0 0.0
        %622 = vmatprep.subr.mxu0 0.0
        %623 = vmatpush1.msra.mxu0 0.0
        %624 = vmatprep.subr.mxu0 0.0
        %625 = vmatpush1.msra.mxu0 0.0
        %626 = vmatprep.subr.mxu0 0.0
        %627 = vmatpush1.msra.mxu0 0.0
        %628 = vmatprep.subr.mxu0 0.0
        %629 = vmatpush1.msra.mxu0 0.0
        %630 = vmatprep.subr.mxu0 0.0
        %631 = vmatpush1.msra.mxu0 0.0
        %632 = vmatprep.subr.mxu0 0.0
        %633 = vmatpush1.msra.mxu0 0.0
        %634 = vmatprep.subr.mxu0 0.0
        %635 = vmatpush1.msra.mxu0 0.0
        %636 = vmatprep.subr.mxu0 0.0
        %637 = vmatpush1.msra.mxu0 0.0
        %638 = vmatprep.subr.mxu0 0.0
        %639 = vmatpush1.msra.mxu0 0.0
        %640 = vmatprep.subr.mxu0 0.0
        %641 = vmatpush1.msra.mxu0 0.0
        %642 = vmatprep.subr.mxu0 0.0
        %643 = vmatpush1.msra.mxu0 0.0
        %644 = vmatprep.subr.mxu0 0.0
        %645 = vmatpush1.msra.mxu0 0.0
        %646 = vmatprep.subr.mxu0 0.0
        %647 = vmatpush1.msra.mxu0 0.0
        %648 = vmatprep.subr.mxu0 0.0
        %649 = vmatpush1.msra.mxu0 0.0
        %650 = vmatprep.subr.mxu0 0.0
        %651 = vmatpush1.msra.mxu0 0.0
        %652 = vmatprep.subr.mxu0 0.0
        %653 = vmatpush1.msra.mxu0 0.0
        %654 = vmatprep.subr.mxu0 0.0
        %655 = vmatpush1.msra.mxu0 0.0
        %656 = vmatprep.subr.mxu0 0.0
        %657 = vmatpush1.msra.mxu0 0.0
        %658 = vmatprep.subr.mxu0 0.0
        %659 = vmatpush1.msra.mxu0 0.0
        %660 = vmatprep.subr.mxu0 0.0
        %661 = vmatpush1.msra.mxu0 0.0
        %662 = vmatprep.subr.mxu0 0.0
        %663 = vmatpush1.msra.mxu0 0.0
        %664 = vmatprep.subr.mxu0 0.0
        %665 = vmatpush1.msra.mxu0 0.0
        %666 = vmatprep.subr.mxu0 0.0
        %667 = vmatpush1.msra.mxu0 0.0
        %668 = vmatprep.subr.mxu0 0.0
        %669 = vmatpush1.msra.mxu0 0.0
        %670 = vmatprep.subr.mxu0 0.0
        %671 = vmatpush1.msra.mxu0 0.0
        %672 = vmatprep.mubr.f32.mxu0 0.0
        %673 = vmatmul.mubr.f32.gmra.mrb[0].mxu0 %v602
        %v674 = vpop.f32.mrb[0].mxu0
        %v675 = vadd.f32 0.0, %v674
        %v676 = vpop.f32.mrb[0].mxu0
        %677 = vdwg.mxu0
        %v678 = vld [vmem:[%s2] sm:$0xff]
        %v679 = vld [vmem:[%s2 + $0x8] sm:$0xff]
        %v680 = vld [vmem:[%s2 + $0x10] sm:$0x1]
        %s681 = scalar_lea.vmem %s1, 8
        %v682 = vld [vmem:[%s681] sm:$0xff]
        %v684 = vsel %vm600, %v682, 0
        %686 = vmatprep.subr.mxu0 0.0
        %687 = vmatpush1.msra.mxu0 %v606
        %688 = vmatprep.subr.mxu0 0.0
        %689 = vmatpush1.msra.mxu0 0.0
        %690 = vmatprep.subr.mxu0 0.0
        %691 = vmatpush1.msra.mxu0 0.0
        %692 = vmatprep.subr.mxu0 0.0
        %693 = vmatpush1.msra.mxu0 0.0
        %694 = vmatprep.subr.mxu0 0.0
        %695 = vmatpush1.msra.mxu0 0.0
        %696 = vmatprep.subr.mxu0 0.0
        %697 = vmatpush1.msra.mxu0 0.0
        %698 = vmatprep.subr.mxu0 0.0
        %699 = vmatpush1.msra.mxu0 0.0
        %700 = vmatprep.subr.mxu0 0.0
        %701 = vmatpush1.msra.mxu0 0.0
        %702 = vmatprep.subr.mxu0 0.0
        %703 = vmatpush1.msra.mxu0 0.0
        %704 = vmatprep.subr.mxu0 0.0
        %705 = vmatpush1.msra.mxu0 0.0
        %706 = vmatprep.subr.mxu0 0.0
        %707 = vmatpush1.msra.mxu0 0.0
        %708 = vmatprep.subr.mxu0 0.0
        %709 = vmatpush1.msra.mxu0 0.0
        %710 = vmatprep.subr.mxu0 0.0
        %711 = vmatpush1.msra.mxu0 0.0
        %712 = vmatprep.subr.mxu0 0.0
        %713 = vmatpush1.msra.mxu0 0.0
        %714 = vmatprep.subr.mxu0 0.0
        %715 = vmatpush1.msra.mxu0 0.0
        %716 = vmatprep.subr.mxu0 0.0
        %717 = vmatpush1.msra.mxu0 0.0
        %718 = vmatprep.subr.mxu0 0.0
        %719 = vmatpush1.msra.mxu0 0.0
        %720 = vmatprep.subr.mxu0 0.0
        %721 = vmatpush1.msra.mxu0 0.0
        %722 = vmatprep.subr.mxu0 0.0
        %723 = vmatpush1.msra.mxu0 0.0
        %724 = vmatprep.subr.mxu0 0.0
        %725 = vmatpush1.msra.mxu0 0.0
        %726 = vmatprep.subr.mxu0 0.0
        %727 = vmatpush1.msra.mxu0 0.0
        %728 = vmatprep.subr.mxu0 0.0
        %729 = vmatpush1.msra.mxu0 0.0
        %730 = vmatprep.subr.mxu0 0.0
        %731 = vmatpush1.msra.mxu0 0.0
        %732 = vmatprep.subr.mxu0 0.0
        %733 = vmatpush1.msra.mxu0 0.0
        %734 = vmatprep.subr.mxu0 0.0
        %735 = vmatpush1.msra.mxu0 0.0
        %736 = vmatprep.subr.mxu0 0.0
        %737 = vmatpush1.msra.mxu0 0.0
        %738 = vmatprep.subr.mxu0 0.0
        %739 = vmatpush1.msra.mxu0 0.0
        %740 = vmatprep.subr.mxu0 0.0
        %741 = vmatpush1.msra.mxu0 0.0
        %742 = vmatprep.subr.mxu0 0.0
        %743 = vmatpush1.msra.mxu0 0.0
        %744 = vmatprep.subr.mxu0 0.0
        %745 = vmatpush1.msra.mxu0 0.0
        %746 = vmatprep.subr.mxu0 0.0
        %747 = vmatpush1.msra.mxu0 0.0
        %748 = vmatprep.subr.mxu0 0.0
        %749 = vmatpush1.msra.mxu0 0.0
        %750 = vmatprep.mubr.f32.mxu0 0.0
        %751 = vmatmul.mubr.f32.gmra.mrb[0].mxu0 %v684
        %v752 = vpop.f32.mrb[0].mxu0
        %v753 = vadd.f32 0.0, %v752
        %v754 = vpop.f32.mrb[0].mxu0
        %755 = vdwg.mxu0
        %s756 = scalar_lea.vmem %s2, 24
        %v757 = vld [vmem:[%s756] sm:$0xff]
        %v758 = vld [vmem:[%s756 + $0x8] sm:$0xff]
        %v759 = vld [vmem:[%s756 + $0x10] sm:$0x1]
        %vm760 = vcmask 138240
        %v762 = vsel %vm760, %v753, 0
        %vm764 = vcmask 1040384
        %v766 = vsel %vm764, %v759, 0
        %768 = vmatprep.subr.mxu0 0.0
        %769 = vmatpush1.msra.mxu0 %v757
        %770 = vmatprep.subr.mxu0 0.0
        %771 = vmatpush1.msra.mxu0 %v758
        %772 = vmatprep.subr.mxu0 0.0
        %773 = vmatpush1.msra.mxu0 %v766
        %774 = vmatprep.subr.mxu0 0.0
        %775 = vmatpush1.msra.mxu0 0.0
        %776 = vmatprep.subr.mxu0 0.0
        %777 = vmatpush1.msra.mxu0 0.0
        %778 = vmatprep.subr.mxu0 0.0
        %779 = vmatpush1.msra.mxu0 0.0
        %780 = vmatprep.subr.mxu0 0.0
        %781 = vmatpush1.msra.mxu0 0.0
        %782 = vmatprep.subr.mxu0 0.0
        %783 = vmatpush1.msra.mxu0 0.0
        %784 = vmatprep.subr.mxu0 0.0
        %785 = vmatpush1.msra.mxu0 0.0
        %786 = vmatprep.subr.mxu0 0.0
        %787 = vmatpush1.msra.mxu0 0.0
        %788 = vmatprep.subr.mxu0 0.0
        %789 = vmatpush1.msra.mxu0 0.0
        %790 = vmatprep.subr.mxu0 0.0
        %791 = vmatpush1.msra.mxu0 0.0
        %792 = vmatprep.subr.mxu0 0.0
        %793 = vmatpush1.msra.mxu0 0.0
        %794 = vmatprep.subr.mxu0 0.0
        %795 = vmatpush1.msra.mxu0 0.0
        %796 = vmatprep.subr.mxu0 0.0
        %797 = vmatpush1.msra.mxu0 0.0
        %798 = vmatprep.subr.mxu0 0.0
        %799 = vmatpush1.msra.mxu0 0.0
        %800 = vmatprep.subr.mxu0 0.0
        %801 = vmatpush1.msra.mxu0 0.0
        %802 = vmatprep.subr.mxu0 0.0
        %803 = vmatpush1.msra.mxu0 0.0
        %804 = vmatprep.subr.mxu0 0.0
        %805 = vmatpush1.msra.mxu0 0.0
        %806 = vmatprep.subr.mxu0 0.0
        %807 = vmatpush1.msra.mxu0 0.0
        %808 = vmatprep.subr.mxu0 0.0
        %809 = vmatpush1.msra.mxu0 0.0
        %810 = vmatprep.subr.mxu0 0.0
        %811 = vmatpush1.msra.mxu0 0.0
        %812 = vmatprep.subr.mxu0 0.0
        %813 = vmatpush1.msra.mxu0 0.0
        %814 = vmatprep.subr.mxu0 0.0
        %815 = vmatpush1.msra.mxu0 0.0
        %816 = vmatprep.subr.mxu0 0.0
        %817 = vmatpush1.msra.mxu0 0.0
        %818 = vmatprep.subr.mxu0 0.0
        %819 = vmatpush1.msra.mxu0 0.0
        %820 = vmatprep.subr.mxu0 0.0
        %821 = vmatpush1.msra.mxu0 0.0
        %822 = vmatprep.subr.mxu0 0.0
        %823 = vmatpush1.msra.mxu0 0.0
        %824 = vmatprep.subr.mxu0 0.0
        %825 = vmatpush1.msra.mxu0 0.0
        %826 = vmatprep.subr.mxu0 0.0
        %827 = vmatpush1.msra.mxu0 0.0
        %828 = vmatprep.subr.mxu0 0.0
        %829 = vmatpush1.msra.mxu0 0.0
        %830 = vmatprep.subr.mxu0 0.0
        %831 = vmatpush1.msra.mxu0 0.0
        %832 = vmatprep.mubr.f32.mxu0 0.0
        %833 = vmatmul.mubr.f32.gmra.mrb[0].mxu0 %v762
        %v834 = vpop.f32.mrb[0].mxu0
        %v835 = vadd.f32 0.0, %v834
        %v836 = vpop.f32.mrb[0].mxu0
        %837 = vdwg.mxu0
        %v839 = vsel %vm760, %v675, 0
        %v842 = vsel %vm764, %v680, 0
        %844 = vmatprep.subr.mxu0 0.0
        %845 = vmatpush1.msra.mxu0 %v678
        %846 = vmatprep.subr.mxu0 0.0
        %847 = vmatpush1.msra.mxu0 %v679
        %848 = vmatprep.subr.mxu0 0.0
        %849 = vmatpush1.msra.mxu0 %v842
        %850 = vmatprep.subr.mxu0 0.0
        %851 = vmatpush1.msra.mxu0 0.0
        %852 = vmatprep.subr.mxu0 0.0
        %853 = vmatpush1.msra.mxu0 0.0
        %854 = vmatprep.subr.mxu0 0.0
        %855 = vmatpush1.msra.mxu0 0.0
        %856 = vmatprep.subr.mxu0 0.0
        %857 = vmatpush1.msra.mxu0 0.0
        %858 = vmatprep.subr.mxu0 0.0
        %859 = vmatpush1.msra.mxu0 0.0
        %860 = vmatprep.subr.mxu0 0.0
        %861 = vmatpush1.msra.mxu0 0.0
        %862 = vmatprep.subr.mxu0 0.0
        %863 = vmatpush1.msra.mxu0 0.0
        %864 = vmatprep.subr.mxu0 0.0
        %865 = vmatpush1.msra.mxu0 0.0
        %866 = vmatprep.subr.mxu0 0.0
        %867 = vmatpush1.msra.mxu0 0.0
        %868 = vmatprep.subr.mxu0 0.0
        %869 = vmatpush1.msra.mxu0 0.0
        %870 = vmatprep.subr.mxu0 0.0
        %871 = vmatpush1.msra.mxu0 0.0
        %872 = vmatprep.subr.mxu0 0.0
        %873 = vmatpush1.msra.mxu0 0.0
        %874 = vmatprep.subr.mxu0 0.0
        %875 = vmatpush1.msra.mxu0 0.0
        %876 = vmatprep.subr.mxu0 0.0
        %877 = vmatpush1.msra.mxu0 0.0
        %878 = vmatprep.subr.mxu0 0.0
        %879 = vmatpush1.msra.mxu0 0.0
        %880 = vmatprep.subr.mxu0 0.0
        %881 = vmatpush1.msra.mxu0 0.0
        %882 = vmatprep.subr.mxu0 0.0
        %883 = vmatpush1.msra.mxu0 0.0
        %884 = vmatprep.subr.mxu0 0.0
        %885 = vmatpush1.msra.mxu0 0.0
        %886 = vmatprep.subr.mxu0 0.0
        %887 = vmatpush1.msra.mxu0 0.0
        %888 = vmatprep.subr.mxu0 0.0
        %889 = vmatpush1.msra.mxu0 0.0
        %890 = vmatprep.subr.mxu0 0.0
        %891 = vmatpush1.msra.mxu0 0.0
        %892 = vmatprep.subr.mxu0 0.0
        %893 = vmatpush1.msra.mxu0 0.0
        %894 = vmatprep.subr.mxu0 0.0
        %895 = vmatpush1.msra.mxu0 0.0
        %896 = vmatprep.subr.mxu0 0.0
        %897 = vmatpush1.msra.mxu0 0.0
        %898 = vmatprep.subr.mxu0 0.0
        %899 = vmatpush1.msra.mxu0 0.0
        %900 = vmatprep.subr.mxu0 0.0
        %901 = vmatpush1.msra.mxu0 0.0
        %902 = vmatprep.subr.mxu0 0.0
        %903 = vmatpush1.msra.mxu0 0.0
        %904 = vmatprep.subr.mxu0 0.0
        %905 = vmatpush1.msra.mxu0 0.0
        %906 = vmatprep.subr.mxu0 0.0
        %907 = vmatpush1.msra.mxu0 0.0
        %908 = vmatprep.mubr.f32.mxu0 0.0
        %909 = vmatmul.mubr.f32.gmra.mrb[0].mxu0 %v839
        %v910 = vpop.f32.mrb[0].mxu0
        %v911 = vadd.f32 %v835, %v910
        %v912 = vpop.f32.mrb[0].mxu0
        %913 = vdwg.mxu0
        %s914 = scalar_lea.vmem %s1, 16
        %v915 = vld [vmem:[%s914] sm:$0xff]
        %v917 = vsel %vm600, %v915, 0
        %919 = vmatprep.subr.mxu0 0.0
        %920 = vmatpush1.msra.mxu0 %v606
        %921 = vmatprep.subr.mxu0 0.0
        %922 = vmatpush1.msra.mxu0 0.0
        %923 = vmatprep.subr.mxu0 0.0
        %924 = vmatpush1.msra.mxu0 0.0
        %925 = vmatprep.subr.mxu0 0.0
        %926 = vmatpush1.msra.mxu0 0.0
        %927 = vmatprep.subr.mxu0 0.0
        %928 = vmatpush1.msra.mxu0 0.0
        %929 = vmatprep.subr.mxu0 0.0
        %930 = vmatpush1.msra.mxu0 0.0
        %931 = vmatprep.subr.mxu0 0.0
        %932 = vmatpush1.msra.mxu0 0.0
        %933 = vmatprep.subr.mxu0 0.0
        %934 = vmatpush1.msra.mxu0 0.0
        %935 = vmatprep.subr.mxu0 0.0
        %936 = vmatpush1.msra.mxu0 0.0
        %937 = vmatprep.subr.mxu0 0.0
        %938 = vmatpush1.msra.mxu0 0.0
        %939 = vmatprep.subr.mxu0 0.0
        %940 = vmatpush1.msra.mxu0 0.0
        %941 = vmatprep.subr.mxu0 0.0
        %942 = vmatpush1.msra.mxu0 0.0
        %943 = vmatprep.subr.mxu0 0.0
        %944 = vmatpush1.msra.mxu0 0.0
        %945 = vmatprep.subr.mxu0 0.0
        %946 = vmatpush1.msra.mxu0 0.0
        %947 = vmatprep.subr.mxu0 0.0
        %948 = vmatpush1.msra.mxu0 0.0
        %949 = vmatprep.subr.mxu0 0.0
        %950 = vmatpush1.msra.mxu0 0.0
        %951 = vmatprep.subr.mxu0 0.0
        %952 = vmatpush1.msra.mxu0 0.0
        %953 = vmatprep.subr.mxu0 0.0
        %954 = vmatpush1.msra.mxu0 0.0
        %955 = vmatprep.subr.mxu0 0.0
        %956 = vmatpush1.msra.mxu0 0.0
        %957 = vmatprep.subr.mxu0 0.0
        %958 = vmatpush1.msra.mxu0 0.0
        %959 = vmatprep.subr.mxu0 0.0
        %960 = vmatpush1.msra.mxu0 0.0
        %961 = vmatprep.subr.mxu0 0.0
        %962 = vmatpush1.msra.mxu0 0.0
        %963 = vmatprep.subr.mxu0 0.0
        %964 = vmatpush1.msra.mxu0 0.0
        %965 = vmatprep.subr.mxu0 0.0
        %966 = vmatpush1.msra.mxu0 0.0
        %967 = vmatprep.subr.mxu0 0.0
        %968 = vmatpush1.msra.mxu0 0.0
        %969 = vmatprep.subr.mxu0 0.0
        %970 = vmatpush1.msra.mxu0 0.0
        %971 = vmatprep.subr.mxu0 0.0
        %972 = vmatpush1.msra.mxu0 0.0
        %973 = vmatprep.subr.mxu0 0.0
        %974 = vmatpush1.msra.mxu0 0.0
        %975 = vmatprep.subr.mxu0 0.0
        %976 = vmatpush1.msra.mxu0 0.0
        %977 = vmatprep.subr.mxu0 0.0
        %978 = vmatpush1.msra.mxu0 0.0
        %979 = vmatprep.subr.mxu0 0.0
        %980 = vmatpush1.msra.mxu0 0.0
        %981 = vmatprep.subr.mxu0 0.0
        %982 = vmatpush1.msra.mxu0 0.0
        %983 = vmatprep.mubr.f32.mxu0 0.0
        %984 = vmatmul.mubr.f32.gmra.mrb[0].mxu0 %v917
        %v985 = vpop.f32.mrb[0].mxu0
        %v986 = vadd.f32 0.0, %v985
        %v987 = vpop.f32.mrb[0].mxu0
        %988 = vdwg.mxu0
        %s989 = scalar_lea.vmem %s2, 48
        %v990 = vld [vmem:[%s989] sm:$0xff]
        %v991 = vld [vmem:[%s989 + $0x8] sm:$0xff]
        %v992 = vld [vmem:[%s989 + $0x10] sm:$0x1]
        %v994 = vsel %vm760, %v986, 0
        %v997 = vsel %vm764, %v992, 0
        %999 = vmatprep.subr.mxu0 0.0
        %1000 = vmatpush1.msra.mxu0 %v990
        %1001 = vmatprep.subr.mxu0 0.0
        %1002 = vmatpush1.msra.mxu0 %v991
        %1003 = vmatprep.subr.mxu0 0.0
        %1004 = vmatpush1.msra.mxu0 %v997
        %1005 = vmatprep.subr.mxu0 0.0
        %1006 = vmatpush1.msra.mxu0 0.0
        %1007 = vmatprep.subr.mxu0 0.0
        %1008 = vmatpush1.msra.mxu0 0.0
        %1009 = vmatprep.subr.mxu0 0.0
        %1010 = vmatpush1.msra.mxu0 0.0
        %1011 = vmatprep.subr.mxu0 0.0
        %1012 = vmatpush1.msra.mxu0 0.0
        %1013 = vmatprep.subr.mxu0 0.0
        %1014 = vmatpush1.msra.mxu0 0.0
        %1015 = vmatprep.subr.mxu0 0.0
        %1016 = vmatpush1.msra.mxu0 0.0
        %1017 = vmatprep.subr.mxu0 0.0
        %1018 = vmatpush1.msra.mxu0 0.0
        %1019 = vmatprep.subr.mxu0 0.0
        %1020 = vmatpush1.msra.mxu0 0.0
        %1021 = vmatprep.subr.mxu0 0.0
        %1022 = vmatpush1.msra.mxu0 0.0
        %1023 = vmatprep.subr.mxu0 0.0
        %1024 = vmatpush1.msra.mxu0 0.0
        %1025 = vmatprep.subr.mxu0 0.0
        %1026 = vmatpush1.msra.mxu0 0.0
        %1027 = vmatprep.subr.mxu0 0.0
        %1028 = vmatpush1.msra.mxu0 0.0
        %1029 = vmatprep.subr.mxu0 0.0
        %1030 = vmatpush1.msra.mxu0 0.0
        %1031 = vmatprep.subr.mxu0 0.0
        %1032 = vmatpush1.msra.mxu0 0.0
        %1033 = vmatprep.subr.mxu0 0.0
        %1034 = vmatpush1.msra.mxu0 0.0
        %1035 = vmatprep.subr.mxu0 0.0
        %1036 = vmatpush1.msra.mxu0 0.0
        %1037 = vmatprep.subr.mxu0 0.0
        %1038 = vmatpush1.msra.mxu0 0.0
        %1039 = vmatprep.subr.mxu0 0.0
        %1040 = vmatpush1.msra.mxu0 0.0
        %1041 = vmatprep.subr.mxu0 0.0
        %1042 = vmatpush1.msra.mxu0 0.0
        %1043 = vmatprep.subr.mxu0 0.0
        %1044 = vmatpush1.msra.mxu0 0.0
        %1045 = vmatprep.subr.mxu0 0.0
        %1046 = vmatpush1.msra.mxu0 0.0
        %1047 = vmatprep.subr.mxu0 0.0
        %1048 = vmatpush1.msra.mxu0 0.0
        %1049 = vmatprep.subr.mxu0 0.0
        %1050 = vmatpush1.msra.mxu0 0.0
        %1051 = vmatprep.subr.mxu0 0.0
        %1052 = vmatpush1.msra.mxu0 0.0
        %1053 = vmatprep.subr.mxu0 0.0
        %1054 = vmatpush1.msra.mxu0 0.0
        %1055 = vmatprep.subr.mxu0 0.0
        %1056 = vmatpush1.msra.mxu0 0.0
        %1057 = vmatprep.subr.mxu0 0.0
        %1058 = vmatpush1.msra.mxu0 0.0
        %1059 = vmatprep.subr.mxu0 0.0
        %1060 = vmatpush1.msra.mxu0 0.0
        %1061 = vmatprep.subr.mxu0 0.0
        %1062 = vmatpush1.msra.mxu0 0.0
        %1063 = vmatprep.mubr.f32.mxu0 0.0
        %1064 = vmatmul.mubr.f32.gmra.mrb[0].mxu0 %v994
        %v1065 = vpop.f32.mrb[0].mxu0
        %v1066 = vadd.f32 0.0, %v1065
        %v1067 = vpop.f32.mrb[0].mxu0
        %1068 = vdwg.mxu0
        %v1069 = vadd.f32 %v911, %v1066
        %v1070 = vld [vmem:[%s3] sm:$0xff]
        %1072 = vset.pattern.permute.xlu0 0
        %1073 = vperm.xlu0 %1072, %v1070
        %v1074 = vpop.permute.xlu0 %1073
        %v1076 = vadd.f32 %v1069, %v1074
        %vm1077 = vcmp.ge.f32.partialorder %v1076, 0.0
        %v1078 = vmul.f32 %v1076, 1.442695
        %v1079 = vpow.pop %v1078
        %v1080 = vsub.f32 %v1079, 1.0
        %v1081 = vsel %vm1077, %v1076, %v1080
        %v1082 = vld [vmem:[%s4] sm:$0xff]
        %v1083 = vld [vmem:[%s4 + $0x8] sm:$0xff]
        %vm1084 = vcmask 64512
        %v1086 = vsel %vm1084, %v1082, 0
        %v1089 = vsel %vm1084, %v1083, 0
        %1091 = vmatprep.subr.mxu0 0.0
        %1092 = vmatpush1.msra.mxu0 %v1081
        %1093 = vmatprep.subr.mxu0 0.0
        %1094 = vmatpush1.msra.mxu0 0.0
        %1095 = vmatprep.subr.mxu0 0.0
        %1096 = vmatpush1.msra.mxu0 0.0
        %1097 = vmatprep.subr.mxu0 0.0
        %1098 = vmatpush1.msra.mxu0 0.0
        %1099 = vmatprep.subr.mxu0 0.0
        %1100 = vmatpush1.msra.mxu0 0.0
        %1101 = vmatprep.subr.mxu0 0.0
        %1102 = vmatpush1.msra.mxu0 0.0
        %1103 = vmatprep.subr.mxu0 0.0
        %1104 = vmatpush1.msra.mxu0 0.0
        %1105 = vmatprep.subr.mxu0 0.0
        %1106 = vmatpush1.msra.mxu0 0.0
        %1107 = vmatprep.subr.mxu0 0.0
        %1108 = vmatpush1.msra.mxu0 0.0
        %1109 = vmatprep.subr.mxu0 0.0
        %1110 = vmatpush1.msra.mxu0 0.0
        %1111 = vmatprep.subr.mxu0 0.0
        %1112 = vmatpush1.msra.mxu0 0.0
        %1113 = vmatprep.subr.mxu0 0.0
        %1114 = vmatpush1.msra.mxu0 0.0
        %1115 = vmatprep.subr.mxu0 0.0
        %1116 = vmatpush1.msra.mxu0 0.0
        %1117 = vmatprep.subr.mxu0 0.0
        %1118 = vmatpush1.msra.mxu0 0.0
        %1119 = vmatprep.subr.mxu0 0.0
        %1120 = vmatpush1.msra.mxu0 0.0
        %1121 = vmatprep.subr.mxu0 0.0
        %1122 = vmatpush1.msra.mxu0 0.0
        %1123 = vmatprep.subr.mxu0 0.0
        %1124 = vmatpush1.msra.mxu0 0.0
        %1125 = vmatprep.subr.mxu0 0.0
        %1126 = vmatpush1.msra.mxu0 0.0
        %1127 = vmatprep.subr.mxu0 0.0
        %1128 = vmatpush1.msra.mxu0 0.0
        %1129 = vmatprep.subr.mxu0 0.0
        %1130 = vmatpush1.msra.mxu0 0.0
        %1131 = vmatprep.subr.mxu0 0.0
        %1132 = vmatpush1.msra.mxu0 0.0
        %1133 = vmatprep.subr.mxu0 0.0
        %1134 = vmatpush1.msra.mxu0 0.0
        %1135 = vmatprep.subr.mxu0 0.0
        %1136 = vmatpush1.msra.mxu0 0.0
        %1137 = vmatprep.subr.mxu0 0.0
        %1138 = vmatpush1.msra.mxu0 0.0
        %1139 = vmatprep.subr.mxu0 0.0
        %1140 = vmatpush1.msra.mxu0 0.0
        %1141 = vmatprep.subr.mxu0 0.0
        %1142 = vmatpush1.msra.mxu0 0.0
        %1143 = vmatprep.subr.mxu0 0.0
        %1144 = vmatpush1.msra.mxu0 0.0
        %1145 = vmatprep.subr.mxu0 0.0
        %1146 = vmatpush1.msra.mxu0 0.0
        %1147 = vmatprep.subr.mxu0 0.0
        %1148 = vmatpush1.msra.mxu0 0.0
        %1149 = vmatprep.subr.mxu0 0.0
        %1150 = vmatpush1.msra.mxu0 0.0
        %1151 = vmatprep.subr.mxu0 0.0
        %1152 = vmatpush1.msra.mxu0 0.0
        %1153 = vmatprep.subr.mxu0 0.0
        %1154 = vmatpush1.msra.mxu0 0.0
        %1155 = vmatprep.mubr.f32.mxu0 0.0
        %1156 = vmatmul.mubr.f32.gmra.mrb[0].mxu0 %v1086
        %v1157 = vpop.f32.mrb[0].mxu0
        %v1158 = vadd.f32 0.0, %v1157
        %v1159 = vpop.f32.mrb[0].mxu0
        %1160 = vmatprep.mubr.f32.mxu0 0.0
        %1161 = vmatmul.mubr.f32.gmra.mrb[0].mxu0 %v1089
        %v1162 = vpop.f32.mrb[0].mxu0
        %v1163 = vadd.f32 0.0, %v1162
        %v1164 = vpop.f32.mrb[0].mxu0
        %1165 = vdwg.mxu0
        %v1166 = vld [vmem:[%s5] sm:$0xff]
        %v1167 = vld [vmem:[%s5 + $0x8] sm:$0x1]
        %s1168 = scalar_lea.vmem %s4, 16
        %v1169 = vld [vmem:[%s1168] sm:$0xff]
        %v1170 = vld [vmem:[%s1168 + $0x8] sm:$0xff]
        %v1172 = vsel %vm1084, %v1169, 0
        %v1175 = vsel %vm1084, %v1170, 0
        %1177 = vmatprep.subr.mxu0 0.0
        %1178 = vmatpush1.msra.mxu0 %v1081
        %1179 = vmatprep.subr.mxu0 0.0
        %1180 = vmatpush1.msra.mxu0 0.0
        %1181 = vmatprep.subr.mxu0 0.0
        %1182 = vmatpush1.msra.mxu0 0.0
        %1183 = vmatprep.subr.mxu0 0.0
        %1184 = vmatpush1.msra.mxu0 0.0
        %1185 = vmatprep.subr.mxu0 0.0
        %1186 = vmatpush1.msra.mxu0 0.0
        %1187 = vmatprep.subr.mxu0 0.0
        %1188 = vmatpush1.msra.mxu0 0.0
        %1189 = vmatprep.subr.mxu0 0.0
        %1190 = vmatpush1.msra.mxu0 0.0
        %1191 = vmatprep.subr.mxu0 0.0
        %1192 = vmatpush1.msra.mxu0 0.0
        %1193 = vmatprep.subr.mxu0 0.0
        %1194 = vmatpush1.msra.mxu0 0.0
        %1195 = vmatprep.subr.mxu0 0.0
        %1196 = vmatpush1.msra.mxu0 0.0
        %1197 = vmatprep.subr.mxu0 0.0
        %1198 = vmatpush1.msra.mxu0 0.0
        %1199 = vmatprep.subr.mxu0 0.0
        %1200 = vmatpush1.msra.mxu0 0.0
        %1201 = vmatprep.subr.mxu0 0.0
        %1202 = vmatpush1.msra.mxu0 0.0
        %1203 = vmatprep.subr.mxu0 0.0
        %1204 = vmatpush1.msra.mxu0 0.0
        %1205 = vmatprep.subr.mxu0 0.0
        %1206 = vmatpush1.msra.mxu0 0.0
        %1207 = vmatprep.subr.mxu0 0.0
        %1208 = vmatpush1.msra.mxu0 0.0
        %1209 = vmatprep.subr.mxu0 0.0
        %1210 = vmatpush1.msra.mxu0 0.0
        %1211 = vmatprep.subr.mxu0 0.0
        %1212 = vmatpush1.msra.mxu0 0.0
        %1213 = vmatprep.subr.mxu0 0.0
        %1214 = vmatpush1.msra.mxu0 0.0
        %1215 = vmatprep.subr.mxu0 0.0
        %1216 = vmatpush1.msra.mxu0 0.0
        %1217 = vmatprep.subr.mxu0 0.0
        %1218 = vmatpush1.msra.mxu0 0.0
        %1219 = vmatprep.subr.mxu0 0.0
        %1220 = vmatpush1.msra.mxu0 0.0
        %1221 = vmatprep.subr.mxu0 0.0
        %1222 = vmatpush1.msra.mxu0 0.0
        %1223 = vmatprep.subr.mxu0 0.0
        %1224 = vmatpush1.msra.mxu0 0.0
        %1225 = vmatprep.subr.mxu0 0.0
        %1226 = vmatpush1.msra.mxu0 0.0
        %1227 = vmatprep.subr.mxu0 0.0
        %1228 = vmatpush1.msra.mxu0 0.0
        %1229 = vmatprep.subr.mxu0 0.0
        %1230 = vmatpush1.msra.mxu0 0.0
        %1231 = vmatprep.subr.mxu0 0.0
        %1232 = vmatpush1.msra.mxu0 0.0
        %1233 = vmatprep.subr.mxu0 0.0
        %1234 = vmatpush1.msra.mxu0 0.0
        %1235 = vmatprep.subr.mxu0 0.0
        %1236 = vmatpush1.msra.mxu0 0.0
        %1237 = vmatprep.subr.mxu0 0.0
        %1238 = vmatpush1.msra.mxu0 0.0
        %1239 = vmatprep.subr.mxu0 0.0
        %1240 = vmatpush1.msra.mxu0 0.0
        %1241 = vmatprep.mubr.f32.mxu0 0.0
        %1242 = vmatmul.mubr.f32.gmra.mrb[0].mxu0 %v1172
        %v1243 = vpop.f32.mrb[0].mxu0
        %v1244 = vadd.f32 0.0, %v1243
        %v1245 = vpop.f32.mrb[0].mxu0
        %1246 = vmatprep.mubr.f32.mxu0 0.0
        %1247 = vmatmul.mubr.f32.gmra.mrb[0].mxu0 %v1175
        %v1248 = vpop.f32.mrb[0].mxu0
        %v1249 = vadd.f32 0.0, %v1248
        %v1250 = vpop.f32.mrb[0].mxu0
        %1251 = vdwg.mxu0
        %s1252 = scalar_lea.vmem %s5, 16
        %v1253 = vld [vmem:[%s1252] sm:$0xff]
        %v1254 = vld [vmem:[%s1252 + $0x8] sm:$0x1]
        %vm1255 = vcmask 72704
        %v1257 = vsel %vm1255, %v1244, 0
        %v1260 = vsel %vm1255, %v1249, 0
        %v1263 = vsel %vm764, %v1254, 0
        %1265 = vmatprep.subr.mxu0 0.0
        %1266 = vmatpush1.msra.mxu0 %v1253
        %1267 = vmatprep.subr.mxu0 0.0
        %1268 = vmatpush1.msra.mxu0 %v1263
        %1269 = vmatprep.subr.mxu0 0.0
        %1270 = vmatpush1.msra.mxu0 0.0
        %1271 = vmatprep.subr.mxu0 0.0
        %1272 = vmatpush1.msra.mxu0 0.0
        %1273 = vmatprep.subr.mxu0 0.0
        %1274 = vmatpush1.msra.mxu0 0.0
        %1275 = vmatprep.subr.mxu0 0.0
        %1276 = vmatpush1.msra.mxu0 0.0
        %1277 = vmatprep.subr.mxu0 0.0
        %1278 = vmatpush1.msra.mxu0 0.0
        %1279 = vmatprep.subr.mxu0 0.0
        %1280 = vmatpush1.msra.mxu0 0.0
        %1281 = vmatprep.subr.mxu0 0.0
        %1282 = vmatpush1.msra.mxu0 0.0
        %1283 = vmatprep.subr.mxu0 0.0
        %1284 = vmatpush1.msra.mxu0 0.0
        %1285 = vmatprep.subr.mxu0 0.0
        %1286 = vmatpush1.msra.mxu0 0.0
        %1287 = vmatprep.subr.mxu0 0.0
        %1288 = vmatpush1.msra.mxu0 0.0
        %1289 = vmatprep.subr.mxu0 0.0
        %1290 = vmatpush1.msra.mxu0 0.0
        %1291 = vmatprep.subr.mxu0 0.0
        %1292 = vmatpush1.msra.mxu0 0.0
        %1293 = vmatprep.subr.mxu0 0.0
        %1294 = vmatpush1.msra.mxu0 0.0
        %1295 = vmatprep.subr.mxu0 0.0
        %1296 = vmatpush1.msra.mxu0 0.0
        %1297 = vmatprep.subr.mxu0 0.0
        %1298 = vmatpush1.msra.mxu0 0.0
        %1299 = vmatprep.subr.mxu0 0.0
        %1300 = vmatpush1.msra.mxu0 0.0
        %1301 = vmatprep.subr.mxu0 0.0
        %1302 = vmatpush1.msra.mxu0 0.0
        %1303 = vmatprep.subr.mxu0 0.0
        %1304 = vmatpush1.msra.mxu0 0.0
        %1305 = vmatprep.subr.mxu0 0.0
        %1306 = vmatpush1.msra.mxu0 0.0
        %1307 = vmatprep.subr.mxu0 0.0
        %1308 = vmatpush1.msra.mxu0 0.0
        %1309 = vmatprep.subr.mxu0 0.0
        %1310 = vmatpush1.msra.mxu0 0.0
        %1311 = vmatprep.subr.mxu0 0.0
        %1312 = vmatpush1.msra.mxu0 0.0
        %1313 = vmatprep.subr.mxu0 0.0
        %1314 = vmatpush1.msra.mxu0 0.0
        %1315 = vmatprep.subr.mxu0 0.0
        %1316 = vmatpush1.msra.mxu0 0.0
        %1317 = vmatprep.subr.mxu0 0.0
        %1318 = vmatpush1.msra.mxu0 0.0
        %1319 = vmatprep.subr.mxu0 0.0
        %1320 = vmatpush1.msra.mxu0 0.0
        %1321 = vmatprep.subr.mxu0 0.0
        %1322 = vmatpush1.msra.mxu0 0.0
        %1323 = vmatprep.subr.mxu0 0.0
        %1324 = vmatpush1.msra.mxu0 0.0
        %1325 = vmatprep.subr.mxu0 0.0
        %1326 = vmatpush1.msra.mxu0 0.0
        %1327 = vmatprep.subr.mxu0 0.0
        %1328 = vmatpush1.msra.mxu0 0.0
        %1329 = vmatprep.mubr.f32.mxu0 0.0
        %1330 = vmatmul.mubr.f32.gmra.mrb[0].mxu0 %v1257
        %v1331 = vpop.f32.mrb[0].mxu0
        %v1332 = vadd.f32 0.0, %v1331
        %v1333 = vpop.f32.mrb[0].mxu0
        %1334 = vmatprep.mubr.f32.mxu0 0.0
        %1335 = vmatmul.mubr.f32.gmra.mrb[0].mxu0 %v1260
        %v1336 = vpop.f32.mrb[0].mxu0
        %v1337 = vadd.f32 0.0, %v1336
        %v1338 = vpop.f32.mrb[0].mxu0
        %1339 = vdwg.mxu0
        %v1341 = vsel %vm1255, %v1158, 0
        %v1344 = vsel %vm1255, %v1163, 0
        %v1347 = vsel %vm764, %v1167, 0
        %1349 = vmatprep.subr.mxu0 0.0
        %1350 = vmatpush1.msra.mxu0 %v1166
        %1351 = vmatprep.subr.mxu0 0.0
        %1352 = vmatpush1.msra.mxu0 %v1347
        %1353 = vmatprep.subr.mxu0 0.0
        %1354 = vmatpush1.msra.mxu0 0.0
        %1355 = vmatprep.subr.mxu0 0.0
        %1356 = vmatpush1.msra.mxu0 0.0
        %1357 = vmatprep.subr.mxu0 0.0
        %1358 = vmatpush1.msra.mxu0 0.0
        %1359 = vmatprep.subr.mxu0 0.0
        %1360 = vmatpush1.msra.mxu0 0.0
        %1361 = vmatprep.subr.mxu0 0.0
        %1362 = vmatpush1.msra.mxu0 0.0
        %1363 = vmatprep.subr.mxu0 0.0
        %1364 = vmatpush1.msra.mxu0 0.0
        %1365 = vmatprep.subr.mxu0 0.0
        %1366 = vmatpush1.msra.mxu0 0.0
        %1367 = vmatprep.subr.mxu0 0.0
        %1368 = vmatpush1.msra.mxu0 0.0
        %1369 = vmatprep.subr.mxu0 0.0
        %1370 = vmatpush1.msra.mxu0 0.0
        %1371 = vmatprep.subr.mxu0 0.0
        %1372 = vmatpush1.msra.mxu0 0.0
        %1373 = vmatprep.subr.mxu0 0.0
        %1374 = vmatpush1.msra.mxu0 0.0
        %1375 = vmatprep.subr.mxu0 0.0
        %1376 = vmatpush1.msra.mxu0 0.0
        %1377 = vmatprep.subr.mxu0 0.0
        %1378 = vmatpush1.msra.mxu0 0.0
        %1379 = vmatprep.subr.mxu0 0.0
        %1380 = vmatpush1.msra.mxu0 0.0
        %1381 = vmatprep.subr.mxu0 0.0
        %1382 = vmatpush1.msra.mxu0 0.0
        %1383 = vmatprep.subr.mxu0 0.0
        %1384 = vmatpush1.msra.mxu0 0.0
        %1385 = vmatprep.subr.mxu0 0.0
        %1386 = vmatpush1.msra.mxu0 0.0
        %1387 = vmatprep.subr.mxu0 0.0
        %1388 = vmatpush1.msra.mxu0 0.0
        %1389 = vmatprep.subr.mxu0 0.0
        %1390 = vmatpush1.msra.mxu0 0.0
        %1391 = vmatprep.subr.mxu0 0.0
        %1392 = vmatpush1.msra.mxu0 0.0
        %1393 = vmatprep.subr.mxu0 0.0
        %1394 = vmatpush1.msra.mxu0 0.0
        %1395 = vmatprep.subr.mxu0 0.0
        %1396 = vmatpush1.msra.mxu0 0.0
        %1397 = vmatprep.subr.mxu0 0.0
        %1398 = vmatpush1.msra.mxu0 0.0
        %1399 = vmatprep.subr.mxu0 0.0
        %1400 = vmatpush1.msra.mxu0 0.0
        %1401 = vmatprep.subr.mxu0 0.0
        %1402 = vmatpush1.msra.mxu0 0.0
        %1403 = vmatprep.subr.mxu0 0.0
        %1404 = vmatpush1.msra.mxu0 0.0
        %1405 = vmatprep.subr.mxu0 0.0
        %1406 = vmatpush1.msra.mxu0 0.0
        %1407 = vmatprep.subr.mxu0 0.0
        %1408 = vmatpush1.msra.mxu0 0.0
        %1409 = vmatprep.subr.mxu0 0.0
        %1410 = vmatpush1.msra.mxu0 0.0
        %1411 = vmatprep.subr.mxu0 0.0
        %1412 = vmatpush1.msra.mxu0 0.0
        %1413 = vmatprep.mubr.f32.mxu0 0.0
        %1414 = vmatmul.mubr.f32.gmra.mrb[0].mxu0 %v1341
        %v1415 = vpop.f32.mrb[0].mxu0
        %v1416 = vadd.f32 %v1332, %v1415
        %v1417 = vpop.f32.mrb[0].mxu0
        %1418 = vmatprep.mubr.f32.mxu0 0.0
        %1419 = vmatmul.mubr.f32.gmra.mrb[0].mxu0 %v1344
        %v1420 = vpop.f32.mrb[0].mxu0
        %v1421 = vadd.f32 %v1337, %v1420
        %v1422 = vpop.f32.mrb[0].mxu0
        %1423 = vdwg.mxu0
        %s1424 = scalar_lea.vmem %s4, 32
        %v1425 = vld [vmem:[%s1424] sm:$0xff]
        %v1426 = vld [vmem:[%s1424 + $0x8] sm:$0xff]
        %v1428 = vsel %vm1084, %v1425, 0
        %v1431 = vsel %vm1084, %v1426, 0
        %1433 = vmatprep.subr.mxu0 0.0
        %1434 = vmatpush1.msra.mxu0 %v1081
        %1435 = vmatprep.subr.mxu0 0.0
        %1436 = vmatpush1.msra.mxu0 0.0
        %1437 = vmatprep.subr.mxu0 0.0
        %1438 = vmatpush1.msra.mxu0 0.0
        %1439 = vmatprep.subr.mxu0 0.0
        %1440 = vmatpush1.msra.mxu0 0.0
        %1441 = vmatprep.subr.mxu0 0.0
        %1442 = vmatpush1.msra.mxu0 0.0
        %1443 = vmatprep.subr.mxu0 0.0
        %1444 = vmatpush1.msra.mxu0 0.0
        %1445 = vmatprep.subr.mxu0 0.0
        %1446 = vmatpush1.msra.mxu0 0.0
        %1447 = vmatprep.subr.mxu0 0.0
        %1448 = vmatpush1.msra.mxu0 0.0
        %1449 = vmatprep.subr.mxu0 0.0
        %1450 = vmatpush1.msra.mxu0 0.0
        %1451 = vmatprep.subr.mxu0 0.0
        %1452 = vmatpush1.msra.mxu0 0.0
        %1453 = vmatprep.subr.mxu0 0.0
        %1454 = vmatpush1.msra.mxu0 0.0
        %1455 = vmatprep.subr.mxu0 0.0
        %1456 = vmatpush1.msra.mxu0 0.0
        %1457 = vmatprep.subr.mxu0 0.0
        %1458 = vmatpush1.msra.mxu0 0.0
        %1459 = vmatprep.subr.mxu0 0.0
        %1460 = vmatpush1.msra.mxu0 0.0
        %1461 = vmatprep.subr.mxu0 0.0
        %1462 = vmatpush1.msra.mxu0 0.0
        %1463 = vmatprep.subr.mxu0 0.0
        %1464 = vmatpush1.msra.mxu0 0.0
        %1465 = vmatprep.subr.mxu0 0.0
        %1466 = vmatpush1.msra.mxu0 0.0
        %1467 = vmatprep.subr.mxu0 0.0
        %1468 = vmatpush1.msra.mxu0 0.0
        %1469 = vmatprep.subr.mxu0 0.0
        %1470 = vmatpush1.msra.mxu0 0.0
        %1471 = vmatprep.subr.mxu0 0.0
        %1472 = vmatpush1.msra.mxu0 0.0
        %1473 = vmatprep.subr.mxu0 0.0
        %1474 = vmatpush1.msra.mxu0 0.0
        %1475 = vmatprep.subr.mxu0 0.0
        %1476 = vmatpush1.msra.mxu0 0.0
        %1477 = vmatprep.subr.mxu0 0.0
        %1478 = vmatpush1.msra.mxu0 0.0
        %1479 = vmatprep.subr.mxu0 0.0
        %1480 = vmatpush1.msra.mxu0 0.0
        %1481 = vmatprep.subr.mxu0 0.0
        %1482 = vmatpush1.msra.mxu0 0.0
        %1483 = vmatprep.subr.mxu0 0.0
        %1484 = vmatpush1.msra.mxu0 0.0
        %1485 = vmatprep.subr.mxu0 0.0
        %1486 = vmatpush1.msra.mxu0 0.0
        %1487 = vmatprep.subr.mxu0 0.0
        %1488 = vmatpush1.msra.mxu0 0.0
        %1489 = vmatprep.subr.mxu0 0.0
        %1490 = vmatpush1.msra.mxu0 0.0
        %1491 = vmatprep.subr.mxu0 0.0
        %1492 = vmatpush1.msra.mxu0 0.0
        %1493 = vmatprep.subr.mxu0 0.0
        %1494 = vmatpush1.msra.mxu0 0.0
        %1495 = vmatprep.subr.mxu0 0.0
        %1496 = vmatpush1.msra.mxu0 0.0
        %1497 = vmatprep.mubr.f32.mxu0 0.0
        %1498 = vmatmul.mubr.f32.gmra.mrb[0].mxu0 %v1428
        %v1499 = vpop.f32.mrb[0].mxu0
        %v1500 = vadd.f32 0.0, %v1499
        %v1501 = vpop.f32.mrb[0].mxu0
        %1502 = vmatprep.mubr.f32.mxu0 0.0
        %1503 = vmatmul.mubr.f32.gmra.mrb[0].mxu0 %v1431
        %v1504 = vpop.f32.mrb[0].mxu0
        %v1505 = vadd.f32 0.0, %v1504
        %v1506 = vpop.f32.mrb[0].mxu0
        %1507 = vdwg.mxu0
        %s1508 = scalar_lea.vmem %s5, 32
        %v1509 = vld [vmem:[%s1508] sm:$0xff]
        %v1510 = vld [vmem:[%s1508 + $0x8] sm:$0x1]
        %v1512 = vsel %vm1255, %v1500, 0
        %v1515 = vsel %vm1255, %v1505, 0
        %v1518 = vsel %vm764, %v1510, 0
        %1520 = vmatprep.subr.mxu0 0.0
        %1521 = vmatpush1.msra.mxu0 %v1509
        %1522 = vmatprep.subr.mxu0 0.0
        %1523 = vmatpush1.msra.mxu0 %v1518
        %1524 = vmatprep.subr.mxu0 0.0
        %1525 = vmatpush1.msra.mxu0 0.0
        %1526 = vmatprep.subr.mxu0 0.0
        %1527 = vmatpush1.msra.mxu0 0.0
        %1528 = vmatprep.subr.mxu0 0.0
        %1529 = vmatpush1.msra.mxu0 0.0
        %1530 = vmatprep.subr.mxu0 0.0
        %1531 = vmatpush1.msra.mxu0 0.0
        %1532 = vmatprep.subr.mxu0 0.0
        %1533 = vmatpush1.msra.mxu0 0.0
        %1534 = vmatprep.subr.mxu0 0.0
        %1535 = vmatpush1.msra.mxu0 0.0
        %1536 = vmatprep.subr.mxu0 0.0
        %1537 = vmatpush1.msra.mxu0 0.0
        %1538 = vmatprep.subr.mxu0 0.0
        %1539 = vmatpush1.msra.mxu0 0.0
        %1540 = vmatprep.subr.mxu0 0.0
        %1541 = vmatpush1.msra.mxu0 0.0
        %1542 = vmatprep.subr.mxu0 0.0
        %1543 = vmatpush1.msra.mxu0 0.0
        %1544 = vmatprep.subr.mxu0 0.0
        %1545 = vmatpush1.msra.mxu0 0.0
        %1546 = vmatprep.subr.mxu0 0.0
        %1547 = vmatpush1.msra.mxu0 0.0
        %1548 = vmatprep.subr.mxu0 0.0
        %1549 = vmatpush1.msra.mxu0 0.0
        %1550 = vmatprep.subr.mxu0 0.0
        %1551 = vmatpush1.msra.mxu0 0.0
        %1552 = vmatprep.subr.mxu0 0.0
        %1553 = vmatpush1.msra.mxu0 0.0
        %1554 = vmatprep.subr.mxu0 0.0
        %1555 = vmatpush1.msra.mxu0 0.0
        %1556 = vmatprep.subr.mxu0 0.0
        %1557 = vmatpush1.msra.mxu0 0.0
        %1558 = vmatprep.subr.mxu0 0.0
        %1559 = vmatpush1.msra.mxu0 0.0
        %1560 = vmatprep.subr.mxu0 0.0
        %1561 = vmatpush1.msra.mxu0 0.0
        %1562 = vmatprep.subr.mxu0 0.0
        %1563 = vmatpush1.msra.mxu0 0.0
        %1564 = vmatprep.subr.mxu0 0.0
        %1565 = vmatpush1.msra.mxu0 0.0
        %1566 = vmatprep.subr.mxu0 0.0
        %1567 = vmatpush1.msra.mxu0 0.0
        %1568 = vmatprep.subr.mxu0 0.0
        %1569 = vmatpush1.msra.mxu0 0.0
        %1570 = vmatprep.subr.mxu0 0.0
        %1571 = vmatpush1.msra.mxu0 0.0
        %1572 = vmatprep.subr.mxu0 0.0
        %1573 = vmatpush1.msra.mxu0 0.0
        %1574 = vmatprep.subr.mxu0 0.0
        %1575 = vmatpush1.msra.mxu0 0.0
        %1576 = vmatprep.subr.mxu0 0.0
        %1577 = vmatpush1.msra.mxu0 0.0
        %1578 = vmatprep.subr.mxu0 0.0
        %1579 = vmatpush1.msra.mxu0 0.0
        %1580 = vmatprep.subr.mxu0 0.0
        %1581 = vmatpush1.msra.mxu0 0.0
        %1582 = vmatprep.subr.mxu0 0.0
        %1583 = vmatpush1.msra.mxu0 0.0
        %1584 = vmatprep.mubr.f32.mxu0 0.0
        %1585 = vmatmul.mubr.f32.gmra.mrb[0].mxu0 %v1512
        %v1586 = vpop.f32.mrb[0].mxu0
        %v1587 = vadd.f32 0.0, %v1586
        %v1588 = vpop.f32.mrb[0].mxu0
        %1589 = vmatprep.mubr.f32.mxu0 0.0
        %1590 = vmatmul.mubr.f32.gmra.mrb[0].mxu0 %v1515
        %v1591 = vpop.f32.mrb[0].mxu0
        %v1592 = vadd.f32 0.0, %v1591
        %v1593 = vpop.f32.mrb[0].mxu0
        %1594 = vdwg.mxu0
        %v1595 = vadd.f32 %v1416, %v1587
        %v1596 = vadd.f32 %v1421, %v1592
        %v1597 = vld [vmem:[%s6] sm:$0xff]
        %v1598 = vld [vmem:[%s6 + $0x8] sm:$0xff]
        %1600 = vset.pattern.permute.xlu0 0
        %1601 = vperm.xlu0 %1600, %v1597
        %v1602 = vpop.permute.xlu0 %1601
        %1605 = vset.pattern.permute.xlu0 0
        %1606 = vperm.xlu0 %1605, %v1598
        %v1607 = vpop.permute.xlu0 %1606
        %v1609 = vadd.f32 %v1595, %v1602
        %v1610 = vadd.f32 %v1596, %v1607
        %vm1611 = vcmp.ge.f32.partialorder %v1609, 0.0
        %vm1612 = vcmp.ge.f32.partialorder %v1610, 0.0
        %v1613 = vmul.f32 %v1609, 1.442695
        %v1614 = vpow.pop %v1613
        %v1615 = vmul.f32 %v1610, 1.442695
        %v1616 = vpow.pop %v1615
        %v1617 = vsub.f32 %v1614, 1.0
        %v1618 = vsub.f32 %v1616, 1.0
        %v1619 = vsel %vm1611, %v1609, %v1617
        %v1620 = vsel %vm1612, %v1610, %v1618
        %v1621 = vld [vmem:[%s7] sm:$0xff]
        %v1622 = vld [vmem:[%s7 + $0x8] sm:$0xff]
        %v1623 = vld [vmem:[%s7 + $0x10] sm:$0xff]
        %v1624 = vld [vmem:[%s7 + $0x18] sm:$0xff]
        %vm1625 = vcmask 130048
        %v1627 = vsel %vm1625, %v1621, 0
        %v1630 = vsel %vm1625, %v1622, 0
        %v1633 = vsel %vm1625, %v1623, 0
        %v1636 = vsel %vm1625, %v1624, 0
        %1638 = vmatprep.subr.mxu0 0.0
        %1639 = vmatpush1.msra.mxu0 %v1619
        %1640 = vmatprep.subr.mxu0 0.0
        %1641 = vmatpush1.msra.mxu0 %v1620
        %1642 = vmatprep.subr.mxu0 0.0
        %1643 = vmatpush1.msra.mxu0 0.0
        %1644 = vmatprep.subr.mxu0 0.0
        %1645 = vmatpush1.msra.mxu0 0.0
        %1646 = vmatprep.subr.mxu0 0.0
        %1647 = vmatpush1.msra.mxu0 0.0
        %1648 = vmatprep.subr.mxu0 0.0
        %1649 = vmatpush1.msra.mxu0 0.0
        %1650 = vmatprep.subr.mxu0 0.0
        %1651 = vmatpush1.msra.mxu0 0.0
        %1652 = vmatprep.subr.mxu0 0.0
        %1653 = vmatpush1.msra.mxu0 0.0
        %1654 = vmatprep.subr.mxu0 0.0
        %1655 = vmatpush1.msra.mxu0 0.0
        %1656 = vmatprep.subr.mxu0 0.0
        %1657 = vmatpush1.msra.mxu0 0.0
        %1658 = vmatprep.subr.mxu0 0.0
        %1659 = vmatpush1.msra.mxu0 0.0
        %1660 = vmatprep.subr.mxu0 0.0
        %1661 = vmatpush1.msra.mxu0 0.0
        %1662 = vmatprep.subr.mxu0 0.0
        %1663 = vmatpush1.msra.mxu0 0.0
        %1664 = vmatprep.subr.mxu0 0.0
        %1665 = vmatpush1.msra.mxu0 0.0
        %1666 = vmatprep.subr.mxu0 0.0
        %1667 = vmatpush1.msra.mxu0 0.0
        %1668 = vmatprep.subr.mxu0 0.0
        %1669 = vmatpush1.msra.mxu0 0.0
        %1670 = vmatprep.subr.mxu0 0.0
        %1671 = vmatpush1.msra.mxu0 0.0
        %1672 = vmatprep.subr.mxu0 0.0
        %1673 = vmatpush1.msra.mxu0 0.0
        %1674 = vmatprep.subr.mxu0 0.0
        %1675 = vmatpush1.msra.mxu0 0.0
        %1676 = vmatprep.subr.mxu0 0.0
        %1677 = vmatpush1.msra.mxu0 0.0
        %1678 = vmatprep.subr.mxu0 0.0
        %1679 = vmatpush1.msra.mxu0 0.0
        %1680 = vmatprep.subr.mxu0 0.0
        %1681 = vmatpush1.msra.mxu0 0.0
        %1682 = vmatprep.subr.mxu0 0.0
        %1683 = vmatpush1.msra.mxu0 0.0
        %1684 = vmatprep.subr.mxu0 0.0
        %1685 = vmatpush1.msra.mxu0 0.0
        %1686 = vmatprep.subr.mxu0 0.0
        %1687 = vmatpush1.msra.mxu0 0.0
        %1688 = vmatprep.subr.mxu0 0.0
        %1689 = vmatpush1.msra.mxu0 0.0
        %1690 = vmatprep.subr.mxu0 0.0
        %1691 = vmatpush1.msra.mxu0 0.0
        %1692 = vmatprep.subr.mxu0 0.0
        %1693 = vmatpush1.msra.mxu0 0.0
        %1694 = vmatprep.subr.mxu0 0.0
        %1695 = vmatpush1.msra.mxu0 0.0
        %1696 = vmatprep.subr.mxu0 0.0
        %1697 = vmatpush1.msra.mxu0 0.0
        %1698 = vmatprep.subr.mxu0 0.0
        %1699 = vmatpush1.msra.mxu0 0.0
        %1700 = vmatprep.subr.mxu0 0.0
        %1701 = vmatpush1.msra.mxu0 0.0
        %1702 = vmatprep.mubr.f32.mxu0 0.0
        %1703 = vmatmul.mubr.f32.gmra.mrb[0].mxu0 %v1627
        %v1704 = vpop.f32.mrb[0].mxu0
        %v1705 = vadd.f32 0.0, %v1704
        %v1706 = vpop.f32.mrb[0].mxu0
        %1707 = vmatprep.mubr.f32.mxu0 0.0
        %1708 = vmatmul.mubr.f32.gmra.mrb[0].mxu0 %v1630
        %v1709 = vpop.f32.mrb[0].mxu0
        %v1710 = vadd.f32 0.0, %v1709
        %v1711 = vpop.f32.mrb[0].mxu0
        %1712 = vmatprep.mubr.f32.mxu0 0.0
        %1713 = vmatmul.mubr.f32.gmra.mrb[0].mxu0 %v1633
        %v1714 = vpop.f32.mrb[0].mxu0
        %v1715 = vadd.f32 0.0, %v1714
        %v1716 = vpop.f32.mrb[0].mxu0
        %1717 = vmatprep.mubr.f32.mxu0 0.0
        %1718 = vmatmul.mubr.f32.gmra.mrb[0].mxu0 %v1636
        %v1719 = vpop.f32.mrb[0].mxu0
        %v1720 = vadd.f32 0.0, %v1719
        %v1721 = vpop.f32.mrb[0].mxu0
        %1722 = vdwg.mxu0
        %v1723 = vld [vmem:[%s8] sm:$0x1f]
        %s1724 = scalar_lea.vmem %s7, 32
        %v1725 = vld [vmem:[%s1724] sm:$0xff]
        %v1726 = vld [vmem:[%s1724 + $0x8] sm:$0xff]
        %v1727 = vld [vmem:[%s1724 + $0x10] sm:$0xff]
        %v1728 = vld [vmem:[%s1724 + $0x18] sm:$0xff]
        %v1730 = vsel %vm1625, %v1725, 0
        %v1733 = vsel %vm1625, %v1726, 0
        %v1736 = vsel %vm1625, %v1727, 0
        %v1739 = vsel %vm1625, %v1728, 0
        %1741 = vmatprep.subr.mxu0 0.0
        %1742 = vmatpush1.msra.mxu0 %v1619
        %1743 = vmatprep.subr.mxu0 0.0
        %1744 = vmatpush1.msra.mxu0 %v1620
        %1745 = vmatprep.subr.mxu0 0.0
        %1746 = vmatpush1.msra.mxu0 0.0
        %1747 = vmatprep.subr.mxu0 0.0
        %1748 = vmatpush1.msra.mxu0 0.0
        %1749 = vmatprep.subr.mxu0 0.0
        %1750 = vmatpush1.msra.mxu0 0.0
        %1751 = vmatprep.subr.mxu0 0.0
        %1752 = vmatpush1.msra.mxu0 0.0
        %1753 = vmatprep.subr.mxu0 0.0
        %1754 = vmatpush1.msra.mxu0 0.0
        %1755 = vmatprep.subr.mxu0 0.0
        %1756 = vmatpush1.msra.mxu0 0.0
        %1757 = vmatprep.subr.mxu0 0.0
        %1758 = vmatpush1.msra.mxu0 0.0
        %1759 = vmatprep.subr.mxu0 0.0
        %1760 = vmatpush1.msra.mxu0 0.0
        %1761 = vmatprep.subr.mxu0 0.0
        %1762 = vmatpush1.msra.mxu0 0.0
        %1763 = vmatprep.subr.mxu0 0.0
        %1764 = vmatpush1.msra.mxu0 0.0
        %1765 = vmatprep.subr.mxu0 0.0
        %1766 = vmatpush1.msra.mxu0 0.0
        %1767 = vmatprep.subr.mxu0 0.0
        %1768 = vmatpush1.msra.mxu0 0.0
        %1769 = vmatprep.subr.mxu0 0.0
        %1770 = vmatpush1.msra.mxu0 0.0
        %1771 = vmatprep.subr.mxu0 0.0
        %1772 = vmatpush1.msra.mxu0 0.0
        %1773 = vmatprep.subr.mxu0 0.0
        %1774 = vmatpush1.msra.mxu0 0.0
        %1775 = vmatprep.subr.mxu0 0.0
        %1776 = vmatpush1.msra.mxu0 0.0
        %1777 = vmatprep.subr.mxu0 0.0
        %1778 = vmatpush1.msra.mxu0 0.0
        %1779 = vmatprep.subr.mxu0 0.0
        %1780 = vmatpush1.msra.mxu0 0.0
        %1781 = vmatprep.subr.mxu0 0.0
        %1782 = vmatpush1.msra.mxu0 0.0
        %1783 = vmatprep.subr.mxu0 0.0
        %1784 = vmatpush1.msra.mxu0 0.0
        %1785 = vmatprep.subr.mxu0 0.0
        %1786 = vmatpush1.msra.mxu0 0.0
        %1787 = vmatprep.subr.mxu0 0.0
        %1788 = vmatpush1.msra.mxu0 0.0
        %1789 = vmatprep.subr.mxu0 0.0
        %1790 = vmatpush1.msra.mxu0 0.0
        %1791 = vmatprep.subr.mxu0 0.0
        %1792 = vmatpush1.msra.mxu0 0.0
        %1793 = vmatprep.subr.mxu0 0.0
        %1794 = vmatpush1.msra.mxu0 0.0
        %1795 = vmatprep.subr.mxu0 0.0
        %1796 = vmatpush1.msra.mxu0 0.0
        %1797 = vmatprep.subr.mxu0 0.0
        %1798 = vmatpush1.msra.mxu0 0.0
        %1799 = vmatprep.subr.mxu0 0.0
        %1800 = vmatpush1.msra.mxu0 0.0
        %1801 = vmatprep.subr.mxu0 0.0
        %1802 = vmatpush1.msra.mxu0 0.0
        %1803 = vmatprep.subr.mxu0 0.0
        %1804 = vmatpush1.msra.mxu0 0.0
        %1805 = vmatprep.mubr.f32.mxu0 0.0
        %1806 = vmatmul.mubr.f32.gmra.mrb[0].mxu0 %v1730
        %v1807 = vpop.f32.mrb[0].mxu0
        %v1808 = vadd.f32 0.0, %v1807
        %v1809 = vpop.f32.mrb[0].mxu0
        %1810 = vmatprep.mubr.f32.mxu0 0.0
        %1811 = vmatmul.mubr.f32.gmra.mrb[0].mxu0 %v1733
        %v1812 = vpop.f32.mrb[0].mxu0
        %v1813 = vadd.f32 0.0, %v1812
        %v1814 = vpop.f32.mrb[0].mxu0
        %1815 = vmatprep.mubr.f32.mxu0 0.0
        %1816 = vmatmul.mubr.f32.gmra.mrb[0].mxu0 %v1736
        %v1817 = vpop.f32.mrb[0].mxu0
        %v1818 = vadd.f32 0.0, %v1817
        %v1819 = vpop.f32.mrb[0].mxu0
        %1820 = vmatprep.mubr.f32.mxu0 0.0
        %1821 = vmatmul.mubr.f32.gmra.mrb[0].mxu0 %v1739
        %v1822 = vpop.f32.mrb[0].mxu0
        %v1823 = vadd.f32 0.0, %v1822
        %v1824 = vpop.f32.mrb[0].mxu0
        %1825 = vdwg.mxu0
        %s1826 = scalar_lea.vmem %s8, 8
        %v1827 = vld [vmem:[%s1826] sm:$0x1f]
        %vm1828 = vcmask 39936
        %v1830 = vsel %vm1828, %v1808, 0
        %v1833 = vsel %vm1828, %v1813, 0
        %v1836 = vsel %vm1828, %v1818, 0
        %v1839 = vsel %vm1828, %v1823, 0
        %vm1841 = vcmask 1044480
        %v1843 = vsel %vm1841, %v1827, 0
        %1845 = vmatprep.subr.mxu0 0.0
        %1846 = vmatpush1.msra.mxu0 %v1843
        %1847 = vmatprep.subr.mxu0 0.0
        %1848 = vmatpush1.msra.mxu0 0.0
        %1849 = vmatprep.subr.mxu0 0.0
        %1850 = vmatpush1.msra.mxu0 0.0
        %1851 = vmatprep.subr.mxu0 0.0
        %1852 = vmatpush1.msra.mxu0 0.0
        %1853 = vmatprep.subr.mxu0 0.0
        %1854 = vmatpush1.msra.mxu0 0.0
        %1855 = vmatprep.subr.mxu0 0.0
        %1856 = vmatpush1.msra.mxu0 0.0
        %1857 = vmatprep.subr.mxu0 0.0
        %1858 = vmatpush1.msra.mxu0 0.0
        %1859 = vmatprep.subr.mxu0 0.0
        %1860 = vmatpush1.msra.mxu0 0.0
        %1861 = vmatprep.subr.mxu0 0.0
        %1862 = vmatpush1.msra.mxu0 0.0
        %1863 = vmatprep.subr.mxu0 0.0
        %1864 = vmatpush1.msra.mxu0 0.0
        %1865 = vmatprep.subr.mxu0 0.0
        %1866 = vmatpush1.msra.mxu0 0.0
        %1867 = vmatprep.subr.mxu0 0.0
        %1868 = vmatpush1.msra.mxu0 0.0
        %1869 = vmatprep.subr.mxu0 0.0
        %1870 = vmatpush1.msra.mxu0 0.0
        %1871 = vmatprep.subr.mxu0 0.0
        %1872 = vmatpush1.msra.mxu0 0.0
        %1873 = vmatprep.subr.mxu0 0.0
        %1874 = vmatpush1.msra.mxu0 0.0
        %1875 = vmatprep.subr.mxu0 0.0
        %1876 = vmatpush1.msra.mxu0 0.0
        %1877 = vmatprep.subr.mxu0 0.0
        %1878 = vmatpush1.msra.mxu0 0.0
        %1879 = vmatprep.subr.mxu0 0.0
        %1880 = vmatpush1.msra.mxu0 0.0
        %1881 = vmatprep.subr.mxu0 0.0
        %1882 = vmatpush1.msra.mxu0 0.0
        %1883 = vmatprep.subr.mxu0 0.0
        %1884 = vmatpush1.msra.mxu0 0.0
        %1885 = vmatprep.subr.mxu0 0.0
        %1886 = vmatpush1.msra.mxu0 0.0
        %1887 = vmatprep.subr.mxu0 0.0
        %1888 = vmatpush1.msra.mxu0 0.0
        %1889 = vmatprep.subr.mxu0 0.0
        %1890 = vmatpush1.msra.mxu0 0.0
        %1891 = vmatprep.subr.mxu0 0.0
        %1892 = vmatpush1.msra.mxu0 0.0
        %1893 = vmatprep.subr.mxu0 0.0
        %1894 = vmatpush1.msra.mxu0 0.0
        %1895 = vmatprep.subr.mxu0 0.0
        %1896 = vmatpush1.msra.mxu0 0.0
        %1897 = vmatprep.subr.mxu0 0.0
        %1898 = vmatpush1.msra.mxu0 0.0
        %1899 = vmatprep.subr.mxu0 0.0
        %1900 = vmatpush1.msra.mxu0 0.0
        %1901 = vmatprep.subr.mxu0 0.0
        %1902 = vmatpush1.msra.mxu0 0.0
        %1903 = vmatprep.subr.mxu0 0.0
        %1904 = vmatpush1.msra.mxu0 0.0
        %1905 = vmatprep.subr.mxu0 0.0
        %1906 = vmatpush1.msra.mxu0 0.0
        %1907 = vmatprep.subr.mxu0 0.0
        %1908 = vmatpush1.msra.mxu0 0.0
        %1909 = vmatprep.mubr.f32.mxu0 0.0
        %1910 = vmatmul.mubr.f32.gmra.mrb[0].mxu0 %v1830
        %v1911 = vpop.f32.mrb[0].mxu0
        %v1912 = vadd.f32 0.0, %v1911
        %v1913 = vpop.f32.mrb[0].mxu0
        %1914 = vmatprep.mubr.f32.mxu0 0.0
        %1915 = vmatmul.mubr.f32.gmra.mrb[0].mxu0 %v1833
        %v1916 = vpop.f32.mrb[0].mxu0
        %v1917 = vadd.f32 0.0, %v1916
        %v1918 = vpop.f32.mrb[0].mxu0
        %1919 = vmatprep.mubr.f32.mxu0 0.0
        %1920 = vmatmul.mubr.f32.gmra.mrb[0].mxu0 %v1836
        %v1921 = vpop.f32.mrb[0].mxu0
        %v1922 = vadd.f32 0.0, %v1921
        %v1923 = vpop.f32.mrb[0].mxu0
        %1924 = vmatprep.mubr.f32.mxu0 0.0
        %1925 = vmatmul.mubr.f32.gmra.mrb[0].mxu0 %v1839
        %v1926 = vpop.f32.mrb[0].mxu0
        %v1927 = vadd.f32 0.0, %v1926
        %v1928 = vpop.f32.mrb[0].mxu0
        %1929 = vdwg.mxu0
        %v1931 = vsel %vm1828, %v1705, 0
        %v1934 = vsel %vm1828, %v1710, 0
        %v1937 = vsel %vm1828, %v1715, 0
        %v1940 = vsel %vm1828, %v1720, 0
        %v1943 = vsel %vm1841, %v1723, 0
        %1945 = vmatprep.subr.mxu0 0.0
        %1946 = vmatpush1.msra.mxu0 %v1943
        %1947 = vmatprep.subr.mxu0 0.0
        %1948 = vmatpush1.msra.mxu0 0.0
        %1949 = vmatprep.subr.mxu0 0.0
        %1950 = vmatpush1.msra.mxu0 0.0
        %1951 = vmatprep.subr.mxu0 0.0
        %1952 = vmatpush1.msra.mxu0 0.0
        %1953 = vmatprep.subr.mxu0 0.0
        %1954 = vmatpush1.msra.mxu0 0.0
        %1955 = vmatprep.subr.mxu0 0.0
        %1956 = vmatpush1.msra.mxu0 0.0
        %1957 = vmatprep.subr.mxu0 0.0
        %1958 = vmatpush1.msra.mxu0 0.0
        %1959 = vmatprep.subr.mxu0 0.0
        %1960 = vmatpush1.msra.mxu0 0.0
        %1961 = vmatprep.subr.mxu0 0.0
        %1962 = vmatpush1.msra.mxu0 0.0
        %1963 = vmatprep.subr.mxu0 0.0
        %1964 = vmatpush1.msra.mxu0 0.0
        %1965 = vmatprep.subr.mxu0 0.0
        %1966 = vmatpush1.msra.mxu0 0.0
        %1967 = vmatprep.subr.mxu0 0.0
        %1968 = vmatpush1.msra.mxu0 0.0
        %1969 = vmatprep.subr.mxu0 0.0
        %1970 = vmatpush1.msra.mxu0 0.0
        %1971 = vmatprep.subr.mxu0 0.0
        %1972 = vmatpush1.msra.mxu0 0.0
        %1973 = vmatprep.subr.mxu0 0.0
        %1974 = vmatpush1.msra.mxu0 0.0
        %1975 = vmatprep.subr.mxu0 0.0
        %1976 = vmatpush1.msra.mxu0 0.0
        %1977 = vmatprep.subr.mxu0 0.0
        %1978 = vmatpush1.msra.mxu0 0.0
        %1979 = vmatprep.subr.mxu0 0.0
        %1980 = vmatpush1.msra.mxu0 0.0
        %1981 = vmatprep.subr.mxu0 0.0
        %1982 = vmatpush1.msra.mxu0 0.0
        %1983 = vmatprep.subr.mxu0 0.0
        %1984 = vmatpush1.msra.mxu0 0.0
        %1985 = vmatprep.subr.mxu0 0.0
        %1986 = vmatpush1.msra.mxu0 0.0
        %1987 = vmatprep.subr.mxu0 0.0
        %1988 = vmatpush1.msra.mxu0 0.0
        %1989 = vmatprep.subr.mxu0 0.0
        %1990 = vmatpush1.msra.mxu0 0.0
        %1991 = vmatprep.subr.mxu0 0.0
        %1992 = vmatpush1.msra.mxu0 0.0
        %1993 = vmatprep.subr.mxu0 0.0
        %1994 = vmatpush1.msra.mxu0 0.0
        %1995 = vmatprep.subr.mxu0 0.0
        %1996 = vmatpush1.msra.mxu0 0.0
        %1997 = vmatprep.subr.mxu0 0.0
        %1998 = vmatpush1.msra.mxu0 0.0
        %1999 = vmatprep.subr.mxu0 0.0
        %2000 = vmatpush1.msra.mxu0 0.0
        %2001 = vmatprep.subr.mxu0 0.0
        %2002 = vmatpush1.msra.mxu0 0.0
        %2003 = vmatprep.subr.mxu0 0.0
        %2004 = vmatpush1.msra.mxu0 0.0
        %2005 = vmatprep.subr.mxu0 0.0
        %2006 = vmatpush1.msra.mxu0 0.0
        %2007 = vmatprep.subr.mxu0 0.0
        %2008 = vmatpush1.msra.mxu0 0.0
        %2009 = vmatprep.mubr.f32.mxu0 0.0
        %2010 = vmatmul.mubr.f32.gmra.mrb[0].mxu0 %v1931
        %v2011 = vpop.f32.mrb[0].mxu0
        %v2012 = vadd.f32 %v1912, %v2011
        %v2013 = vpop.f32.mrb[0].mxu0
        %2014 = vmatprep.mubr.f32.mxu0 0.0
        %2015 = vmatmul.mubr.f32.gmra.mrb[0].mxu0 %v1934
        %v2016 = vpop.f32.mrb[0].mxu0
        %v2017 = vadd.f32 %v1917, %v2016
        %v2018 = vpop.f32.mrb[0].mxu0
        %2019 = vmatprep.mubr.f32.mxu0 0.0
        %2020 = vmatmul.mubr.f32.gmra.mrb[0].mxu0 %v1937
        %v2021 = vpop.f32.mrb[0].mxu0
        %v2022 = vadd.f32 %v1922, %v2021
        %v2023 = vpop.f32.mrb[0].mxu0
        %2024 = vmatprep.mubr.f32.mxu0 0.0
        %2025 = vmatmul.mubr.f32.gmra.mrb[0].mxu0 %v1940
        %v2026 = vpop.f32.mrb[0].mxu0
        %v2027 = vadd.f32 %v1927, %v2026
        %v2028 = vpop.f32.mrb[0].mxu0
        %2029 = vdwg.mxu0
        %s2030 = scalar_lea.vmem %s7, 64
        %v2031 = vld [vmem:[%s2030] sm:$0xff]
        %v2032 = vld [vmem:[%s2030 + $0x8] sm:$0xff]
        %v2033 = vld [vmem:[%s2030 + $0x10] sm:$0xff]
        %v2034 = vld [vmem:[%s2030 + $0x18] sm:$0xff]
        %v2036 = vsel %vm1625, %v2031, 0
        %v2039 = vsel %vm1625, %v2032, 0
        %v2042 = vsel %vm1625, %v2033, 0
        %v2045 = vsel %vm1625, %v2034, 0
        %2047 = vmatprep.subr.mxu0 0.0
        %2048 = vmatpush1.msra.mxu0 %v1619
        %2049 = vmatprep.subr.mxu0 0.0
        %2050 = vmatpush1.msra.mxu0 %v1620
        %2051 = vmatprep.subr.mxu0 0.0
        %2052 = vmatpush1.msra.mxu0 0.0
        %2053 = vmatprep.subr.mxu0 0.0
        %2054 = vmatpush1.msra.mxu0 0.0
        %2055 = vmatprep.subr.mxu0 0.0
        %2056 = vmatpush1.msra.mxu0 0.0
        %2057 = vmatprep.subr.mxu0 0.0
        %2058 = vmatpush1.msra.mxu0 0.0
        %2059 = vmatprep.subr.mxu0 0.0
        %2060 = vmatpush1.msra.mxu0 0.0
        %2061 = vmatprep.subr.mxu0 0.0
        %2062 = vmatpush1.msra.mxu0 0.0
        %2063 = vmatprep.subr.mxu0 0.0
        %2064 = vmatpush1.msra.mxu0 0.0
        %2065 = vmatprep.subr.mxu0 0.0
        %2066 = vmatpush1.msra.mxu0 0.0
        %2067 = vmatprep.subr.mxu0 0.0
        %2068 = vmatpush1.msra.mxu0 0.0
        %2069 = vmatprep.subr.mxu0 0.0
        %2070 = vmatpush1.msra.mxu0 0.0
        %2071 = vmatprep.subr.mxu0 0.0
        %2072 = vmatpush1.msra.mxu0 0.0
        %2073 = vmatprep.subr.mxu0 0.0
        %2074 = vmatpush1.msra.mxu0 0.0
        %2075 = vmatprep.subr.mxu0 0.0
        %2076 = vmatpush1.msra.mxu0 0.0
        %2077 = vmatprep.subr.mxu0 0.0
        %2078 = vmatpush1.msra.mxu0 0.0
        %2079 = vmatprep.subr.mxu0 0.0
        %2080 = vmatpush1.msra.mxu0 0.0
        %2081 = vmatprep.subr.mxu0 0.0
        %2082 = vmatpush1.msra.mxu0 0.0
        %2083 = vmatprep.subr.mxu0 0.0
        %2084 = vmatpush1.msra.mxu0 0.0
        %2085 = vmatprep.subr.mxu0 0.0
        %2086 = vmatpush1.msra.mxu0 0.0
        %2087 = vmatprep.subr.mxu0 0.0
        %2088 = vmatpush1.msra.mxu0 0.0
        %2089 = vmatprep.subr.mxu0 0.0
        %2090 = vmatpush1.msra.mxu0 0.0
        %2091 = vmatprep.subr.mxu0 0.0
        %2092 = vmatpush1.msra.mxu0 0.0
        %2093 = vmatprep.subr.mxu0 0.0
        %2094 = vmatpush1.msra.mxu0 0.0
        %2095 = vmatprep.subr.mxu0 0.0
        %2096 = vmatpush1.msra.mxu0 0.0
        %2097 = vmatprep.subr.mxu0 0.0
        %2098 = vmatpush1.msra.mxu0 0.0
        %2099 = vmatprep.subr.mxu0 0.0
        %2100 = vmatpush1.msra.mxu0 0.0
        %2101 = vmatprep.subr.mxu0 0.0
        %2102 = vmatpush1.msra.mxu0 0.0
        %2103 = vmatprep.subr.mxu0 0.0
        %2104 = vmatpush1.msra.mxu0 0.0
        %2105 = vmatprep.subr.mxu0 0.0
        %2106 = vmatpush1.msra.mxu0 0.0
        %2107 = vmatprep.subr.mxu0 0.0
        %2108 = vmatpush1.msra.mxu0 0.0
        %2109 = vmatprep.subr.mxu0 0.0
        %2110 = vmatpush1.msra.mxu0 0.0
        %2111 = vmatprep.mubr.f32.mxu0 0.0
        %2112 = vmatmul.mubr.f32.gmra.mrb[0].mxu0 %v2036
        %v2113 = vpop.f32.mrb[0].mxu0
        %v2114 = vadd.f32 0.0, %v2113
        %v2115 = vpop.f32.mrb[0].mxu0
        %2116 = vmatprep.mubr.f32.mxu0 0.0
        %2117 = vmatmul.mubr.f32.gmra.mrb[0].mxu0 %v2039
        %v2118 = vpop.f32.mrb[0].mxu0
        %v2119 = vadd.f32 0.0, %v2118
        %v2120 = vpop.f32.mrb[0].mxu0
        %2121 = vmatprep.mubr.f32.mxu0 0.0
        %2122 = vmatmul.mubr.f32.gmra.mrb[0].mxu0 %v2042
        %v2123 = vpop.f32.mrb[0].mxu0
        %v2124 = vadd.f32 0.0, %v2123
        %v2125 = vpop.f32.mrb[0].mxu0
        %2126 = vmatprep.mubr.f32.mxu0 0.0
        %2127 = vmatmul.mubr.f32.gmra.mrb[0].mxu0 %v2045
        %v2128 = vpop.f32.mrb[0].mxu0
        %v2129 = vadd.f32 0.0, %v2128
        %v2130 = vpop.f32.mrb[0].mxu0
        %2131 = vdwg.mxu0
        %s2132 = scalar_lea.vmem %s8, 16
        %v2133 = vld [vmem:[%s2132] sm:$0x1f]
        %v2135 = vsel %vm1828, %v2114, 0
        %v2138 = vsel %vm1828, %v2119, 0
        %v2141 = vsel %vm1828, %v2124, 0
        %v2144 = vsel %vm1828, %v2129, 0
        %v2147 = vsel %vm1841, %v2133, 0
        %2149 = vmatprep.subr.mxu0 0.0
        %2150 = vmatpush1.msra.mxu0 %v2147
        %2151 = vmatprep.subr.mxu0 0.0
        %2152 = vmatpush1.msra.mxu0 0.0
        %2153 = vmatprep.subr.mxu0 0.0
        %2154 = vmatpush1.msra.mxu0 0.0
        %2155 = vmatprep.subr.mxu0 0.0
        %2156 = vmatpush1.msra.mxu0 0.0
        %2157 = vmatprep.subr.mxu0 0.0
        %2158 = vmatpush1.msra.mxu0 0.0
        %2159 = vmatprep.subr.mxu0 0.0
        %2160 = vmatpush1.msra.mxu0 0.0
        %2161 = vmatprep.subr.mxu0 0.0
        %2162 = vmatpush1.msra.mxu0 0.0
        %2163 = vmatprep.subr.mxu0 0.0
        %2164 = vmatpush1.msra.mxu0 0.0
        %2165 = vmatprep.subr.mxu0 0.0
        %2166 = vmatpush1.msra.mxu0 0.0
        %2167 = vmatprep.subr.mxu0 0.0
        %2168 = vmatpush1.msra.mxu0 0.0
        %2169 = vmatprep.subr.mxu0 0.0
        %2170 = vmatpush1.msra.mxu0 0.0
        %2171 = vmatprep.subr.mxu0 0.0
        %2172 = vmatpush1.msra.mxu0 0.0
        %2173 = vmatprep.subr.mxu0 0.0
        %2174 = vmatpush1.msra.mxu0 0.0
        %2175 = vmatprep.subr.mxu0 0.0
        %2176 = vmatpush1.msra.mxu0 0.0
        %2177 = vmatprep.subr.mxu0 0.0
        %2178 = vmatpush1.msra.mxu0 0.0
        %2179 = vmatprep.subr.mxu0 0.0
        %2180 = vmatpush1.msra.mxu0 0.0
        %2181 = vmatprep.subr.mxu0 0.0
        %2182 = vmatpush1.msra.mxu0 0.0
        %2183 = vmatprep.subr.mxu0 0.0
        %2184 = vmatpush1.msra.mxu0 0.0
        %2185 = vmatprep.subr.mxu0 0.0
        %2186 = vmatpush1.msra.mxu0 0.0
        %2187 = vmatprep.subr.mxu0 0.0
        %2188 = vmatpush1.msra.mxu0 0.0
        %2189 = vmatprep.subr.mxu0 0.0
        %2190 = vmatpush1.msra.mxu0 0.0
        %2191 = vmatprep.subr.mxu0 0.0
        %2192 = vmatpush1.msra.mxu0 0.0
        %2193 = vmatprep.subr.mxu0 0.0
        %2194 = vmatpush1.msra.mxu0 0.0
        %2195 = vmatprep.subr.mxu0 0.0
        %2196 = vmatpush1.msra.mxu0 0.0
        %2197 = vmatprep.subr.mxu0 0.0
        %2198 = vmatpush1.msra.mxu0 0.0
        %2199 = vmatprep.subr.mxu0 0.0
        %2200 = vmatpush1.msra.mxu0 0.0
        %2201 = vmatprep.subr.mxu0 0.0
        %2202 = vmatpush1.msra.mxu0 0.0
        %2203 = vmatprep.subr.mxu0 0.0
        %2204 = vmatpush1.msra.mxu0 0.0
        %2205 = vmatprep.subr.mxu0 0.0
        %2206 = vmatpush1.msra.mxu0 0.0
        %2207 = vmatprep.subr.mxu0 0.0
        %2208 = vmatpush1.msra.mxu0 0.0
        %2209 = vmatprep.subr.mxu0 0.0
        %2210 = vmatpush1.msra.mxu0 0.0
        %2211 = vmatprep.subr.mxu0 0.0
        %2212 = vmatpush1.msra.mxu0 0.0
        %2213 = vmatprep.mubr.f32.mxu0 0.0
        %2214 = vmatmul.mubr.f32.gmra.mrb[0].mxu0 %v2135
        %v2215 = vpop.f32.mrb[0].mxu0
        %v2216 = vadd.f32 0.0, %v2215
        %v2217 = vpop.f32.mrb[0].mxu0
        %2218 = vmatprep.mubr.f32.mxu0 0.0
        %2219 = vmatmul.mubr.f32.gmra.mrb[0].mxu0 %v2138
        %v2220 = vpop.f32.mrb[0].mxu0
        %v2221 = vadd.f32 0.0, %v2220
        %v2222 = vpop.f32.mrb[0].mxu0
        %2223 = vmatprep.mubr.f32.mxu0 0.0
        %2224 = vmatmul.mubr.f32.gmra.mrb[0].mxu0 %v2141
        %v2225 = vpop.f32.mrb[0].mxu0
        %v2226 = vadd.f32 0.0, %v2225
        %v2227 = vpop.f32.mrb[0].mxu0
        %2228 = vmatprep.mubr.f32.mxu0 0.0
        %2229 = vmatmul.mubr.f32.gmra.mrb[0].mxu0 %v2144
        %v2230 = vpop.f32.mrb[0].mxu0
        %v2231 = vadd.f32 0.0, %v2230
        %v2232 = vpop.f32.mrb[0].mxu0
        %2233 = vdwg.mxu0
        %v2234 = vadd.f32 %v2012, %v2216
        %v2235 = vadd.f32 %v2017, %v2221
        %v2236 = vadd.f32 %v2022, %v2226
        %v2237 = vadd.f32 %v2027, %v2231
        %v2238 = vld [vmem:[%s9] sm:$0xff]
        %v2239 = vld [vmem:[%s9 + $0x8] sm:$0xff]
        %v2240 = vld [vmem:[%s9 + $0x10] sm:$0xff]
        %v2241 = vld [vmem:[%s9 + $0x18] sm:$0xff]
        %2243 = vset.pattern.permute.xlu0 0
        %2244 = vperm.xlu0 %2243, %v2238
        %v2245 = vpop.permute.xlu0 %2244
        %2248 = vset.pattern.permute.xlu0 0
        %2249 = vperm.xlu0 %2248, %v2239
        %v2250 = vpop.permute.xlu0 %2249
        %2253 = vset.pattern.permute.xlu0 0
        %2254 = vperm.xlu0 %2253, %v2240
        %v2255 = vpop.permute.xlu0 %2254
        %2258 = vset.pattern.permute.xlu0 0
        %2259 = vperm.xlu0 %2258, %v2241
        %v2260 = vpop.permute.xlu0 %2259
        %v2262 = vadd.f32 %v2234, %v2245
        %v2263 = vadd.f32 %v2235, %v2250
        %v2264 = vadd.f32 %v2236, %v2255
        %v2265 = vadd.f32 %v2237, %v2260
        %vm2266 = vcmp.ge.f32.partialorder %v2262, 0.0
        %vm2267 = vcmp.ge.f32.partialorder %v2263, 0.0
        %vm2268 = vcmp.ge.f32.partialorder %v2264, 0.0
        %vm2269 = vcmp.ge.f32.partialorder %v2265, 0.0
        %v2270 = vmul.f32 %v2262, 1.442695
        %v2271 = vpow.pop %v2270
        %v2272 = vmul.f32 %v2263, 1.442695
        %v2273 = vpow.pop %v2272
        %v2274 = vmul.f32 %v2264, 1.442695
        %v2275 = vpow.pop %v2274
        %v2276 = vmul.f32 %v2265, 1.442695
        %v2277 = vpow.pop %v2276
        %v2278 = vsub.f32 %v2271, 1.0
        %v2279 = vsub.f32 %v2273, 1.0
        %v2280 = vsub.f32 %v2275, 1.0
        %v2281 = vsub.f32 %v2277, 1.0
        %v2282 = vsel %vm2266, %v2262, %v2278
        %v2283 = vsel %vm2267, %v2263, %v2279
        %v2284 = vsel %vm2268, %v2264, %v2280
        %v2285 = vsel %vm2269, %v2265, %v2281
        %v2286 = vld [vmem:[%s10] sm:$0xff]
        %v2287 = vld [vmem:[%s10 + $0x8] sm:$0xff]
        %vm2288 = vcmask 261120
        %v2290 = vsel %vm2288, %v2286, 0
        %v2293 = vsel %vm2288, %v2287, 0
        %2295 = vmatprep.subr.mxu0 0.0
        %2296 = vmatpush1.msra.mxu0 %v2282
        %2297 = vmatprep.subr.mxu0 0.0
        %2298 = vmatpush1.msra.mxu0 %v2283
        %2299 = vmatprep.subr.mxu0 0.0
        %2300 = vmatpush1.msra.mxu0 %v2284
        %2301 = vmatprep.subr.mxu0 0.0
        %2302 = vmatpush1.msra.mxu0 %v2285
        %2303 = vmatprep.subr.mxu0 0.0
        %2304 = vmatpush1.msra.mxu0 0.0
        %2305 = vmatprep.subr.mxu0 0.0
        %2306 = vmatpush1.msra.mxu0 0.0
        %2307 = vmatprep.subr.mxu0 0.0
        %2308 = vmatpush1.msra.mxu0 0.0
        %2309 = vmatprep.subr.mxu0 0.0
        %2310 = vmatpush1.msra.mxu0 0.0
        %2311 = vmatprep.subr.mxu0 0.0
        %2312 = vmatpush1.msra.mxu0 0.0
        %2313 = vmatprep.subr.mxu0 0.0
        %2314 = vmatpush1.msra.mxu0 0.0
        %2315 = vmatprep.subr.mxu0 0.0
        %2316 = vmatpush1.msra.mxu0 0.0
        %2317 = vmatprep.subr.mxu0 0.0
        %2318 = vmatpush1.msra.mxu0 0.0
        %2319 = vmatprep.subr.mxu0 0.0
        %2320 = vmatpush1.msra.mxu0 0.0
        %2321 = vmatprep.subr.mxu0 0.0
        %2322 = vmatpush1.msra.mxu0 0.0
        %2323 = vmatprep.subr.mxu0 0.0
        %2324 = vmatpush1.msra.mxu0 0.0
        %2325 = vmatprep.subr.mxu0 0.0
        %2326 = vmatpush1.msra.mxu0 0.0
        %2327 = vmatprep.subr.mxu0 0.0
        %2328 = vmatpush1.msra.mxu0 0.0
        %2329 = vmatprep.subr.mxu0 0.0
        %2330 = vmatpush1.msra.mxu0 0.0
        %2331 = vmatprep.subr.mxu0 0.0
        %2332 = vmatpush1.msra.mxu0 0.0
        %2333 = vmatprep.subr.mxu0 0.0
        %2334 = vmatpush1.msra.mxu0 0.0
        %2335 = vmatprep.subr.mxu0 0.0
        %2336 = vmatpush1.msra.mxu0 0.0
        %2337 = vmatprep.subr.mxu0 0.0
        %2338 = vmatpush1.msra.mxu0 0.0
        %2339 = vmatprep.subr.mxu0 0.0
        %2340 = vmatpush1.msra.mxu0 0.0
        %2341 = vmatprep.subr.mxu0 0.0
        %2342 = vmatpush1.msra.mxu0 0.0
        %2343 = vmatprep.subr.mxu0 0.0
        %2344 = vmatpush1.msra.mxu0 0.0
        %2345 = vmatprep.subr.mxu0 0.0
        %2346 = vmatpush1.msra.mxu0 0.0
        %2347 = vmatprep.subr.mxu0 0.0
        %2348 = vmatpush1.msra.mxu0 0.0
        %2349 = vmatprep.subr.mxu0 0.0
        %2350 = vmatpush1.msra.mxu0 0.0
        %2351 = vmatprep.subr.mxu0 0.0
        %2352 = vmatpush1.msra.mxu0 0.0
        %2353 = vmatprep.subr.mxu0 0.0
        %2354 = vmatpush1.msra.mxu0 0.0
        %2355 = vmatprep.subr.mxu0 0.0
        %2356 = vmatpush1.msra.mxu0 0.0
        %2357 = vmatprep.subr.mxu0 0.0
        %2358 = vmatpush1.msra.mxu0 0.0
        %2359 = vmatprep.mubr.f32.mxu0 0.0
        %2360 = vmatmul.mubr.f32.gmra.mrb[0].mxu0 %v2290
        %v2361 = vpop.f32.mrb[0].mxu0
        %v2362 = vadd.f32 0.0, %v2361
        %v2363 = vpop.f32.mrb[0].mxu0
        %2364 = vmatprep.mubr.f32.mxu0 0.0
        %2365 = vmatmul.mubr.f32.gmra.mrb[0].mxu0 %v2293
        %v2366 = vpop.f32.mrb[0].mxu0
        %v2367 = vadd.f32 0.0, %v2366
        %v2368 = vpop.f32.mrb[0].mxu0
        %2369 = vdwg.mxu0
        %v2370 = vld [vmem:[%s11] sm:$0x1f]
        %s2371 = scalar_lea.vmem %s10, 16
        %v2372 = vld [vmem:[%s2371] sm:$0xff]
        %v2373 = vld [vmem:[%s2371 + $0x8] sm:$0xff]
        %v2375 = vsel %vm2288, %v2372, 0
        %v2378 = vsel %vm2288, %v2373, 0
        %2380 = vmatprep.subr.mxu0 0.0
        %2381 = vmatpush1.msra.mxu0 %v2282
        %2382 = vmatprep.subr.mxu0 0.0
        %2383 = vmatpush1.msra.mxu0 %v2283
        %2384 = vmatprep.subr.mxu0 0.0
        %2385 = vmatpush1.msra.mxu0 %v2284
        %2386 = vmatprep.subr.mxu0 0.0
        %2387 = vmatpush1.msra.mxu0 %v2285
        %2388 = vmatprep.subr.mxu0 0.0
        %2389 = vmatpush1.msra.mxu0 0.0
        %2390 = vmatprep.subr.mxu0 0.0
        %2391 = vmatpush1.msra.mxu0 0.0
        %2392 = vmatprep.subr.mxu0 0.0
        %2393 = vmatpush1.msra.mxu0 0.0
        %2394 = vmatprep.subr.mxu0 0.0
        %2395 = vmatpush1.msra.mxu0 0.0
        %2396 = vmatprep.subr.mxu0 0.0
        %2397 = vmatpush1.msra.mxu0 0.0
        %2398 = vmatprep.subr.mxu0 0.0
        %2399 = vmatpush1.msra.mxu0 0.0
        %2400 = vmatprep.subr.mxu0 0.0
        %2401 = vmatpush1.msra.mxu0 0.0
        %2402 = vmatprep.subr.mxu0 0.0
        %2403 = vmatpush1.msra.mxu0 0.0
        %2404 = vmatprep.subr.mxu0 0.0
        %2405 = vmatpush1.msra.mxu0 0.0
        %2406 = vmatprep.subr.mxu0 0.0
        %2407 = vmatpush1.msra.mxu0 0.0
        %2408 = vmatprep.subr.mxu0 0.0
        %2409 = vmatpush1.msra.mxu0 0.0
        %2410 = vmatprep.subr.mxu0 0.0
        %2411 = vmatpush1.msra.mxu0 0.0
        %2412 = vmatprep.subr.mxu0 0.0
        %2413 = vmatpush1.msra.mxu0 0.0
        %2414 = vmatprep.subr.mxu0 0.0
        %2415 = vmatpush1.msra.mxu0 0.0
        %2416 = vmatprep.subr.mxu0 0.0
        %2417 = vmatpush1.msra.mxu0 0.0
        %2418 = vmatprep.subr.mxu0 0.0
        %2419 = vmatpush1.msra.mxu0 0.0
        %2420 = vmatprep.subr.mxu0 0.0
        %2421 = vmatpush1.msra.mxu0 0.0
        %2422 = vmatprep.subr.mxu0 0.0
        %2423 = vmatpush1.msra.mxu0 0.0
        %2424 = vmatprep.subr.mxu0 0.0
        %2425 = vmatpush1.msra.mxu0 0.0
        %2426 = vmatprep.subr.mxu0 0.0
        %2427 = vmatpush1.msra.mxu0 0.0
        %2428 = vmatprep.subr.mxu0 0.0
        %2429 = vmatpush1.msra.mxu0 0.0
        %2430 = vmatprep.subr.mxu0 0.0
        %2431 = vmatpush1.msra.mxu0 0.0
        %2432 = vmatprep.subr.mxu0 0.0
        %2433 = vmatpush1.msra.mxu0 0.0
        %2434 = vmatprep.subr.mxu0 0.0
        %2435 = vmatpush1.msra.mxu0 0.0
        %2436 = vmatprep.subr.mxu0 0.0
        %2437 = vmatpush1.msra.mxu0 0.0
        %2438 = vmatprep.subr.mxu0 0.0
        %2439 = vmatpush1.msra.mxu0 0.0
        %2440 = vmatprep.subr.mxu0 0.0
        %2441 = vmatpush1.msra.mxu0 0.0
        %2442 = vmatprep.subr.mxu0 0.0
        %2443 = vmatpush1.msra.mxu0 0.0
        %2444 = vmatprep.mubr.f32.mxu0 0.0
        %2445 = vmatmul.mubr.f32.gmra.mrb[0].mxu0 %v2375
        %v2446 = vpop.f32.mrb[0].mxu0
        %v2447 = vadd.f32 0.0, %v2446
        %v2448 = vpop.f32.mrb[0].mxu0
        %2449 = vmatprep.mubr.f32.mxu0 0.0
        %2450 = vmatmul.mubr.f32.gmra.mrb[0].mxu0 %v2378
        %v2451 = vpop.f32.mrb[0].mxu0
        %v2452 = vadd.f32 0.0, %v2451
        %v2453 = vpop.f32.mrb[0].mxu0
        %2454 = vdwg.mxu0
        %s2455 = scalar_lea.vmem %s11, 8
        %v2456 = vld [vmem:[%s2455] sm:$0x1f]
        %v2458 = vsel %vm1828, %v2447, 0
        %v2461 = vsel %vm1828, %v2452, 0
        %v2464 = vsel %vm1841, %v2456, 0
        %2466 = vmatprep.subr.mxu0 0.0
        %2467 = vmatpush1.msra.mxu0 %v2464
        %2468 = vmatprep.subr.mxu0 0.0
        %2469 = vmatpush1.msra.mxu0 0.0
        %2470 = vmatprep.subr.mxu0 0.0
        %2471 = vmatpush1.msra.mxu0 0.0
        %2472 = vmatprep.subr.mxu0 0.0
        %2473 = vmatpush1.msra.mxu0 0.0
        %2474 = vmatprep.subr.mxu0 0.0
        %2475 = vmatpush1.msra.mxu0 0.0
        %2476 = vmatprep.subr.mxu0 0.0
        %2477 = vmatpush1.msra.mxu0 0.0
        %2478 = vmatprep.subr.mxu0 0.0
        %2479 = vmatpush1.msra.mxu0 0.0
        %2480 = vmatprep.subr.mxu0 0.0
        %2481 = vmatpush1.msra.mxu0 0.0
        %2482 = vmatprep.subr.mxu0 0.0
        %2483 = vmatpush1.msra.mxu0 0.0
        %2484 = vmatprep.subr.mxu0 0.0
        %2485 = vmatpush1.msra.mxu0 0.0
        %2486 = vmatprep.subr.mxu0 0.0
        %2487 = vmatpush1.msra.mxu0 0.0
        %2488 = vmatprep.subr.mxu0 0.0
        %2489 = vmatpush1.msra.mxu0 0.0
        %2490 = vmatprep.subr.mxu0 0.0
        %2491 = vmatpush1.msra.mxu0 0.0
        %2492 = vmatprep.subr.mxu0 0.0
        %2493 = vmatpush1.msra.mxu0 0.0
        %2494 = vmatprep.subr.mxu0 0.0
        %2495 = vmatpush1.msra.mxu0 0.0
        %2496 = vmatprep.subr.mxu0 0.0
        %2497 = vmatpush1.msra.mxu0 0.0
        %2498 = vmatprep.subr.mxu0 0.0
        %2499 = vmatpush1.msra.mxu0 0.0
        %2500 = vmatprep.subr.mxu0 0.0
        %2501 = vmatpush1.msra.mxu0 0.0
        %2502 = vmatprep.subr.mxu0 0.0
        %2503 = vmatpush1.msra.mxu0 0.0
        %2504 = vmatprep.subr.mxu0 0.0
        %2505 = vmatpush1.msra.mxu0 0.0
        %2506 = vmatprep.subr.mxu0 0.0
        %2507 = vmatpush1.msra.mxu0 0.0
        %2508 = vmatprep.subr.mxu0 0.0
        %2509 = vmatpush1.msra.mxu0 0.0
        %2510 = vmatprep.subr.mxu0 0.0
        %2511 = vmatpush1.msra.mxu0 0.0
        %2512 = vmatprep.subr.mxu0 0.0
        %2513 = vmatpush1.msra.mxu0 0.0
        %2514 = vmatprep.subr.mxu0 0.0
        %2515 = vmatpush1.msra.mxu0 0.0
        %2516 = vmatprep.subr.mxu0 0.0
        %2517 = vmatpush1.msra.mxu0 0.0
        %2518 = vmatprep.subr.mxu0 0.0
        %2519 = vmatpush1.msra.mxu0 0.0
        %2520 = vmatprep.subr.mxu0 0.0
        %2521 = vmatpush1.msra.mxu0 0.0
        %2522 = vmatprep.subr.mxu0 0.0
        %2523 = vmatpush1.msra.mxu0 0.0
        %2524 = vmatprep.subr.mxu0 0.0
        %2525 = vmatpush1.msra.mxu0 0.0
        %2526 = vmatprep.subr.mxu0 0.0
        %2527 = vmatpush1.msra.mxu0 0.0
        %2528 = vmatprep.subr.mxu0 0.0
        %2529 = vmatpush1.msra.mxu0 0.0
        %2530 = vmatprep.mubr.f32.mxu0 0.0
        %2531 = vmatmul.mubr.f32.gmra.mrb[0].mxu0 %v2458
        %v2532 = vpop.f32.mrb[0].mxu0
        %v2533 = vadd.f32 0.0, %v2532
        %v2534 = vpop.f32.mrb[0].mxu0
        %2535 = vmatprep.mubr.f32.mxu0 0.0
        %2536 = vmatmul.mubr.f32.gmra.mrb[0].mxu0 %v2461
        %v2537 = vpop.f32.mrb[0].mxu0
        %v2538 = vadd.f32 0.0, %v2537
        %v2539 = vpop.f32.mrb[0].mxu0
        %2540 = vdwg.mxu0
        %v2542 = vsel %vm1828, %v2362, 0
        %v2545 = vsel %vm1828, %v2367, 0
        %v2548 = vsel %vm1841, %v2370, 0
        %2550 = vmatprep.subr.mxu0 0.0
        %2551 = vmatpush1.msra.mxu0 %v2548
        %2552 = vmatprep.subr.mxu0 0.0
        %2553 = vmatpush1.msra.mxu0 0.0
        %2554 = vmatprep.subr.mxu0 0.0
        %2555 = vmatpush1.msra.mxu0 0.0
        %2556 = vmatprep.subr.mxu0 0.0
        %2557 = vmatpush1.msra.mxu0 0.0
        %2558 = vmatprep.subr.mxu0 0.0
        %2559 = vmatpush1.msra.mxu0 0.0
        %2560 = vmatprep.subr.mxu0 0.0
        %2561 = vmatpush1.msra.mxu0 0.0
        %2562 = vmatprep.subr.mxu0 0.0
        %2563 = vmatpush1.msra.mxu0 0.0
        %2564 = vmatprep.subr.mxu0 0.0
        %2565 = vmatpush1.msra.mxu0 0.0
        %2566 = vmatprep.subr.mxu0 0.0
        %2567 = vmatpush1.msra.mxu0 0.0
        %2568 = vmatprep.subr.mxu0 0.0
        %2569 = vmatpush1.msra.mxu0 0.0
        %2570 = vmatprep.subr.mxu0 0.0
        %2571 = vmatpush1.msra.mxu0 0.0
        %2572 = vmatprep.subr.mxu0 0.0
        %2573 = vmatpush1.msra.mxu0 0.0
        %2574 = vmatprep.subr.mxu0 0.0
        %2575 = vmatpush1.msra.mxu0 0.0
        %2576 = vmatprep.subr.mxu0 0.0
        %2577 = vmatpush1.msra.mxu0 0.0
        %2578 = vmatprep.subr.mxu0 0.0
        %2579 = vmatpush1.msra.mxu0 0.0
        %2580 = vmatprep.subr.mxu0 0.0
        %2581 = vmatpush1.msra.mxu0 0.0
        %2582 = vmatprep.subr.mxu0 0.0
        %2583 = vmatpush1.msra.mxu0 0.0
        %2584 = vmatprep.subr.mxu0 0.0
        %2585 = vmatpush1.msra.mxu0 0.0
        %2586 = vmatprep.subr.mxu0 0.0
        %2587 = vmatpush1.msra.mxu0 0.0
        %2588 = vmatprep.subr.mxu0 0.0
        %2589 = vmatpush1.msra.mxu0 0.0
        %2590 = vmatprep.subr.mxu0 0.0
        %2591 = vmatpush1.msra.mxu0 0.0
        %2592 = vmatprep.subr.mxu0 0.0
        %2593 = vmatpush1.msra.mxu0 0.0
        %2594 = vmatprep.subr.mxu0 0.0
        %2595 = vmatpush1.msra.mxu0 0.0
        %2596 = vmatprep.subr.mxu0 0.0
        %2597 = vmatpush1.msra.mxu0 0.0
        %2598 = vmatprep.subr.mxu0 0.0
        %2599 = vmatpush1.msra.mxu0 0.0
        %2600 = vmatprep.subr.mxu0 0.0
        %2601 = vmatpush1.msra.mxu0 0.0
        %2602 = vmatprep.subr.mxu0 0.0
        %2603 = vmatpush1.msra.mxu0 0.0
        %2604 = vmatprep.subr.mxu0 0.0
        %2605 = vmatpush1.msra.mxu0 0.0
        %2606 = vmatprep.subr.mxu0 0.0
        %2607 = vmatpush1.msra.mxu0 0.0
        %2608 = vmatprep.subr.mxu0 0.0
        %2609 = vmatpush1.msra.mxu0 0.0
        %2610 = vmatprep.subr.mxu0 0.0
        %2611 = vmatpush1.msra.mxu0 0.0
        %2612 = vmatprep.subr.mxu0 0.0
        %2613 = vmatpush1.msra.mxu0 0.0
        %2614 = vmatprep.mubr.f32.mxu0 0.0
        %2615 = vmatmul.mubr.f32.gmra.mrb[0].mxu0 %v2542
        %v2616 = vpop.f32.mrb[0].mxu0
        %v2617 = vadd.f32 %v2533, %v2616
        %v2618 = vpop.f32.mrb[0].mxu0
        %2619 = vmatprep.mubr.f32.mxu0 0.0
        %2620 = vmatmul.mubr.f32.gmra.mrb[0].mxu0 %v2545
        %v2621 = vpop.f32.mrb[0].mxu0
        %v2622 = vadd.f32 %v2538, %v2621
        %v2623 = vpop.f32.mrb[0].mxu0
        %2624 = vdwg.mxu0
        %s2625 = scalar_lea.vmem %s10, 32
        %v2626 = vld [vmem:[%s2625] sm:$0xff]
        %v2627 = vld [vmem:[%s2625 + $0x8] sm:$0xff]
        %v2629 = vsel %vm2288, %v2626, 0
        %v2632 = vsel %vm2288, %v2627, 0
        %2634 = vmatprep.subr.mxu0 0.0
        %2635 = vmatpush1.msra.mxu0 %v2282
        %2636 = vmatprep.subr.mxu0 0.0
        %2637 = vmatpush1.msra.mxu0 %v2283
        %2638 = vmatprep.subr.mxu0 0.0
        %2639 = vmatpush1.msra.mxu0 %v2284
        %2640 = vmatprep.subr.mxu0 0.0
        %2641 = vmatpush1.msra.mxu0 %v2285
        %2642 = vmatprep.subr.mxu0 0.0
        %2643 = vmatpush1.msra.mxu0 0.0
        %2644 = vmatprep.subr.mxu0 0.0
        %2645 = vmatpush1.msra.mxu0 0.0
        %2646 = vmatprep.subr.mxu0 0.0
        %2647 = vmatpush1.msra.mxu0 0.0
        %2648 = vmatprep.subr.mxu0 0.0
        %2649 = vmatpush1.msra.mxu0 0.0
        %2650 = vmatprep.subr.mxu0 0.0
        %2651 = vmatpush1.msra.mxu0 0.0
        %2652 = vmatprep.subr.mxu0 0.0
        %2653 = vmatpush1.msra.mxu0 0.0
        %2654 = vmatprep.subr.mxu0 0.0
        %2655 = vmatpush1.msra.mxu0 0.0
        %2656 = vmatprep.subr.mxu0 0.0
        %2657 = vmatpush1.msra.mxu0 0.0
        %2658 = vmatprep.subr.mxu0 0.0
        %2659 = vmatpush1.msra.mxu0 0.0
        %2660 = vmatprep.subr.mxu0 0.0
        %2661 = vmatpush1.msra.mxu0 0.0
        %2662 = vmatprep.subr.mxu0 0.0
        %2663 = vmatpush1.msra.mxu0 0.0
        %2664 = vmatprep.subr.mxu0 0.0
        %2665 = vmatpush1.msra.mxu0 0.0
        %2666 = vmatprep.subr.mxu0 0.0
        %2667 = vmatpush1.msra.mxu0 0.0
        %2668 = vmatprep.subr.mxu0 0.0
        %2669 = vmatpush1.msra.mxu0 0.0
        %2670 = vmatprep.subr.mxu0 0.0
        %2671 = vmatpush1.msra.mxu0 0.0
        %2672 = vmatprep.subr.mxu0 0.0
        %2673 = vmatpush1.msra.mxu0 0.0
        %2674 = vmatprep.subr.mxu0 0.0
        %2675 = vmatpush1.msra.mxu0 0.0
        %2676 = vmatprep.subr.mxu0 0.0
        %2677 = vmatpush1.msra.mxu0 0.0
        %2678 = vmatprep.subr.mxu0 0.0
        %2679 = vmatpush1.msra.mxu0 0.0
        %2680 = vmatprep.subr.mxu0 0.0
        %2681 = vmatpush1.msra.mxu0 0.0
        %2682 = vmatprep.subr.mxu0 0.0
        %2683 = vmatpush1.msra.mxu0 0.0
        %2684 = vmatprep.subr.mxu0 0.0
        %2685 = vmatpush1.msra.mxu0 0.0
        %2686 = vmatprep.subr.mxu0 0.0
        %2687 = vmatpush1.msra.mxu0 0.0
        %2688 = vmatprep.subr.mxu0 0.0
        %2689 = vmatpush1.msra.mxu0 0.0
        %2690 = vmatprep.subr.mxu0 0.0
        %2691 = vmatpush1.msra.mxu0 0.0
        %2692 = vmatprep.subr.mxu0 0.0
        %2693 = vmatpush1.msra.mxu0 0.0
        %2694 = vmatprep.subr.mxu0 0.0
        %2695 = vmatpush1.msra.mxu0 0.0
        %2696 = vmatprep.subr.mxu0 0.0
        %2697 = vmatpush1.msra.mxu0 0.0
        %2698 = vmatprep.mubr.f32.mxu0 0.0
        %2699 = vmatmul.mubr.f32.gmra.mrb[0].mxu0 %v2629
        %v2700 = vpop.f32.mrb[0].mxu0
        %v2701 = vadd.f32 0.0, %v2700
        %v2702 = vpop.f32.mrb[0].mxu0
        %2703 = vmatprep.mubr.f32.mxu0 0.0
        %2704 = vmatmul.mubr.f32.gmra.mrb[0].mxu0 %v2632
        %v2705 = vpop.f32.mrb[0].mxu0
        %v2706 = vadd.f32 0.0, %v2705
        %v2707 = vpop.f32.mrb[0].mxu0
        %2708 = vdwg.mxu0
        %s2709 = scalar_lea.vmem %s11, 16
        %v2710 = vld [vmem:[%s2709] sm:$0x1f]
        %v2712 = vsel %vm1828, %v2701, 0
        %v2715 = vsel %vm1828, %v2706, 0
        %v2718 = vsel %vm1841, %v2710, 0
        %2720 = vmatprep.subr.mxu0 0.0
        %2721 = vmatpush1.msra.mxu0 %v2718
        %2722 = vmatprep.subr.mxu0 0.0
        %2723 = vmatpush1.msra.mxu0 0.0
        %2724 = vmatprep.subr.mxu0 0.0
        %2725 = vmatpush1.msra.mxu0 0.0
        %2726 = vmatprep.subr.mxu0 0.0
        %2727 = vmatpush1.msra.mxu0 0.0
        %2728 = vmatprep.subr.mxu0 0.0
        %2729 = vmatpush1.msra.mxu0 0.0
        %2730 = vmatprep.subr.mxu0 0.0
        %2731 = vmatpush1.msra.mxu0 0.0
        %2732 = vmatprep.subr.mxu0 0.0
        %2733 = vmatpush1.msra.mxu0 0.0
        %2734 = vmatprep.subr.mxu0 0.0
        %2735 = vmatpush1.msra.mxu0 0.0
        %2736 = vmatprep.subr.mxu0 0.0
        %2737 = vmatpush1.msra.mxu0 0.0
        %2738 = vmatprep.subr.mxu0 0.0
        %2739 = vmatpush1.msra.mxu0 0.0
        %2740 = vmatprep.subr.mxu0 0.0
        %2741 = vmatpush1.msra.mxu0 0.0
        %2742 = vmatprep.subr.mxu0 0.0
        %2743 = vmatpush1.msra.mxu0 0.0
        %2744 = vmatprep.subr.mxu0 0.0
        %2745 = vmatpush1.msra.mxu0 0.0
        %2746 = vmatprep.subr.mxu0 0.0
        %2747 = vmatpush1.msra.mxu0 0.0
        %2748 = vmatprep.subr.mxu0 0.0
        %2749 = vmatpush1.msra.mxu0 0.0
        %2750 = vmatprep.subr.mxu0 0.0
        %2751 = vmatpush1.msra.mxu0 0.0
        %2752 = vmatprep.subr.mxu0 0.0
        %2753 = vmatpush1.msra.mxu0 0.0
        %2754 = vmatprep.subr.mxu0 0.0
        %2755 = vmatpush1.msra.mxu0 0.0
        %2756 = vmatprep.subr.mxu0 0.0
        %2757 = vmatpush1.msra.mxu0 0.0
        %2758 = vmatprep.subr.mxu0 0.0
        %2759 = vmatpush1.msra.mxu0 0.0
        %2760 = vmatprep.subr.mxu0 0.0
        %2761 = vmatpush1.msra.mxu0 0.0
        %2762 = vmatprep.subr.mxu0 0.0
        %2763 = vmatpush1.msra.mxu0 0.0
        %2764 = vmatprep.subr.mxu0 0.0
        %2765 = vmatpush1.msra.mxu0 0.0
        %2766 = vmatprep.subr.mxu0 0.0
        %2767 = vmatpush1.msra.mxu0 0.0
        %2768 = vmatprep.subr.mxu0 0.0
        %2769 = vmatpush1.msra.mxu0 0.0
        %2770 = vmatprep.subr.mxu0 0.0
        %2771 = vmatpush1.msra.mxu0 0.0
        %2772 = vmatprep.subr.mxu0 0.0
        %2773 = vmatpush1.msra.mxu0 0.0
        %2774 = vmatprep.subr.mxu0 0.0
        %2775 = vmatpush1.msra.mxu0 0.0
        %2776 = vmatprep.subr.mxu0 0.0
        %2777 = vmatpush1.msra.mxu0 0.0
        %2778 = vmatprep.subr.mxu0 0.0
        %2779 = vmatpush1.msra.mxu0 0.0
        %2780 = vmatprep.subr.mxu0 0.0
        %2781 = vmatpush1.msra.mxu0 0.0
        %2782 = vmatprep.subr.mxu0 0.0
        %2783 = vmatpush1.msra.mxu0 0.0
        %2784 = vmatprep.mubr.f32.mxu0 0.0
        %2785 = vmatmul.mubr.f32.gmra.mrb[0].mxu0 %v2712
        %v2786 = vpop.f32.mrb[0].mxu0
        %v2787 = vadd.f32 0.0, %v2786
        %v2788 = vpop.f32.mrb[0].mxu0
        %2789 = vmatprep.mubr.f32.mxu0 0.0
        %2790 = vmatmul.mubr.f32.gmra.mrb[0].mxu0 %v2715
        %v2791 = vpop.f32.mrb[0].mxu0
        %v2792 = vadd.f32 0.0, %v2791
        %v2793 = vpop.f32.mrb[0].mxu0
        %2794 = vdwg.mxu0
        %v2795 = vadd.f32 %v2617, %v2787
        %v2796 = vadd.f32 %v2622, %v2792
        %v2797 = vld [vmem:[%s12] sm:$0xff]
        %v2798 = vld [vmem:[%s12 + $0x8] sm:$0xff]
        %2800 = vset.pattern.permute.xlu0 0
        %2801 = vperm.xlu0 %2800, %v2797
        %v2802 = vpop.permute.xlu0 %2801
        %2805 = vset.pattern.permute.xlu0 0
        %2806 = vperm.xlu0 %2805, %v2798
        %v2807 = vpop.permute.xlu0 %2806
        %v2809 = vadd.f32 %v2795, %v2802
        %v2810 = vadd.f32 %v2796, %v2807
        %vm2811 = vcmp.ge.f32.partialorder %v2809, 0.0
        %vm2812 = vcmp.ge.f32.partialorder %v2810, 0.0
        %v2813 = vmul.f32 %v2809, 1.442695
        %v2814 = vpow.pop %v2813
        %v2815 = vmul.f32 %v2810, 1.442695
        %v2816 = vpow.pop %v2815
        %v2817 = vsub.f32 %v2814, 1.0
        %v2818 = vsub.f32 %v2816, 1.0
        %v2819 = vsel %vm2811, %v2809, %v2817
        %v2820 = vsel %vm2812, %v2810, %v2818
        %v2821 = vld [vmem:[%s13] sm:$0xff]
        %v2823 = vsel %vm1625, %v2821, 0
        %2825 = vmatprep.subr.mxu0 0.0
        %2826 = vmatpush1.msra.mxu0 %v2819
        %2827 = vmatprep.subr.mxu0 0.0
        %2828 = vmatpush1.msra.mxu0 %v2820
        %2829 = vmatprep.subr.mxu0 0.0
        %2830 = vmatpush1.msra.mxu0 0.0
        %2831 = vmatprep.subr.mxu0 0.0
        %2832 = vmatpush1.msra.mxu0 0.0
        %2833 = vmatprep.subr.mxu0 0.0
        %2834 = vmatpush1.msra.mxu0 0.0
        %2835 = vmatprep.subr.mxu0 0.0
        %2836 = vmatpush1.msra.mxu0 0.0
        %2837 = vmatprep.subr.mxu0 0.0
        %2838 = vmatpush1.msra.mxu0 0.0
        %2839 = vmatprep.subr.mxu0 0.0
        %2840 = vmatpush1.msra.mxu0 0.0
        %2841 = vmatprep.subr.mxu0 0.0
        %2842 = vmatpush1.msra.mxu0 0.0
        %2843 = vmatprep.subr.mxu0 0.0
        %2844 = vmatpush1.msra.mxu0 0.0
        %2845 = vmatprep.subr.mxu0 0.0
        %2846 = vmatpush1.msra.mxu0 0.0
        %2847 = vmatprep.subr.mxu0 0.0
        %2848 = vmatpush1.msra.mxu0 0.0
        %2849 = vmatprep.subr.mxu0 0.0
        %2850 = vmatpush1.msra.mxu0 0.0
        %2851 = vmatprep.subr.mxu0 0.0
        %2852 = vmatpush1.msra.mxu0 0.0
        %2853 = vmatprep.subr.mxu0 0.0
        %2854 = vmatpush1.msra.mxu0 0.0
        %2855 = vmatprep.subr.mxu0 0.0
        %2856 = vmatpush1.msra.mxu0 0.0
        %2857 = vmatprep.subr.mxu0 0.0
        %2858 = vmatpush1.msra.mxu0 0.0
        %2859 = vmatprep.subr.mxu0 0.0
        %2860 = vmatpush1.msra.mxu0 0.0
        %2861 = vmatprep.subr.mxu0 0.0
        %2862 = vmatpush1.msra.mxu0 0.0
        %2863 = vmatprep.subr.mxu0 0.0
        %2864 = vmatpush1.msra.mxu0 0.0
        %2865 = vmatprep.subr.mxu0 0.0
        %2866 = vmatpush1.msra.mxu0 0.0
        %2867 = vmatprep.subr.mxu0 0.0
        %2868 = vmatpush1.msra.mxu0 0.0
        %2869 = vmatprep.subr.mxu0 0.0
        %2870 = vmatpush1.msra.mxu0 0.0
        %2871 = vmatprep.subr.mxu0 0.0
        %2872 = vmatpush1.msra.mxu0 0.0
        %2873 = vmatprep.subr.mxu0 0.0
        %2874 = vmatpush1.msra.mxu0 0.0
        %2875 = vmatprep.subr.mxu0 0.0
        %2876 = vmatpush1.msra.mxu0 0.0
        %2877 = vmatprep.subr.mxu0 0.0
        %2878 = vmatpush1.msra.mxu0 0.0
        %2879 = vmatprep.subr.mxu0 0.0
        %2880 = vmatpush1.msra.mxu0 0.0
        %2881 = vmatprep.subr.mxu0 0.0
        %2882 = vmatpush1.msra.mxu0 0.0
        %2883 = vmatprep.subr.mxu0 0.0
        %2884 = vmatpush1.msra.mxu0 0.0
        %2885 = vmatprep.subr.mxu0 0.0
        %2886 = vmatpush1.msra.mxu0 0.0
        %2887 = vmatprep.subr.mxu0 0.0
        %2888 = vmatpush1.msra.mxu0 0.0
        %2889 = vmatprep.mubr.f32.mxu0 0.0
        %2890 = vmatmul.mubr.f32.gmra.mrb[0].mxu0 %v2823
        %v2891 = vpop.f32.mrb[0].mxu0
        %v2892 = vadd.f32 0.0, %v2891
        %v2893 = vpop.f32.mrb[0].mxu0
        %2894 = vdwg.mxu0
        %v2895 = vld [vmem:[%s14] sm:$0x1f]
        %s2896 = scalar_lea.vmem %s13, 8
        %v2897 = vld [vmem:[%s2896] sm:$0xff]
        %v2899 = vsel %vm1625, %v2897, 0
        %2901 = vmatprep.subr.mxu0 0.0
        %2902 = vmatpush1.msra.mxu0 %v2819
        %2903 = vmatprep.subr.mxu0 0.0
        %2904 = vmatpush1.msra.mxu0 %v2820
        %2905 = vmatprep.subr.mxu0 0.0
        %2906 = vmatpush1.msra.mxu0 0.0
        %2907 = vmatprep.subr.mxu0 0.0
        %2908 = vmatpush1.msra.mxu0 0.0
        %2909 = vmatprep.subr.mxu0 0.0
        %2910 = vmatpush1.msra.mxu0 0.0
        %2911 = vmatprep.subr.mxu0 0.0
        %2912 = vmatpush1.msra.mxu0 0.0
        %2913 = vmatprep.subr.mxu0 0.0
        %2914 = vmatpush1.msra.mxu0 0.0
        %2915 = vmatprep.subr.mxu0 0.0
        %2916 = vmatpush1.msra.mxu0 0.0
        %2917 = vmatprep.subr.mxu0 0.0
        %2918 = vmatpush1.msra.mxu0 0.0
        %2919 = vmatprep.subr.mxu0 0.0
        %2920 = vmatpush1.msra.mxu0 0.0
        %2921 = vmatprep.subr.mxu0 0.0
        %2922 = vmatpush1.msra.mxu0 0.0
        %2923 = vmatprep.subr.mxu0 0.0
        %2924 = vmatpush1.msra.mxu0 0.0
        %2925 = vmatprep.subr.mxu0 0.0
        %2926 = vmatpush1.msra.mxu0 0.0
        %2927 = vmatprep.subr.mxu0 0.0
        %2928 = vmatpush1.msra.mxu0 0.0
        %2929 = vmatprep.subr.mxu0 0.0
        %2930 = vmatpush1.msra.mxu0 0.0
        %2931 = vmatprep.subr.mxu0 0.0
        %2932 = vmatpush1.msra.mxu0 0.0
        %2933 = vmatprep.subr.mxu0 0.0
        %2934 = vmatpush1.msra.mxu0 0.0
        %2935 = vmatprep.subr.mxu0 0.0
        %2936 = vmatpush1.msra.mxu0 0.0
        %2937 = vmatprep.subr.mxu0 0.0
        %2938 = vmatpush1.msra.mxu0 0.0
        %2939 = vmatprep.subr.mxu0 0.0
        %2940 = vmatpush1.msra.mxu0 0.0
        %2941 = vmatprep.subr.mxu0 0.0
        %2942 = vmatpush1.msra.mxu0 0.0
        %2943 = vmatprep.subr.mxu0 0.0
        %2944 = vmatpush1.msra.mxu0 0.0
        %2945 = vmatprep.subr.mxu0 0.0
        %2946 = vmatpush1.msra.mxu0 0.0
        %2947 = vmatprep.subr.mxu0 0.0
        %2948 = vmatpush1.msra.mxu0 0.0
        %2949 = vmatprep.subr.mxu0 0.0
        %2950 = vmatpush1.msra.mxu0 0.0
        %2951 = vmatprep.subr.mxu0 0.0
        %2952 = vmatpush1.msra.mxu0 0.0
        %2953 = vmatprep.subr.mxu0 0.0
        %2954 = vmatpush1.msra.mxu0 0.0
        %2955 = vmatprep.subr.mxu0 0.0
        %2956 = vmatpush1.msra.mxu0 0.0
        %2957 = vmatprep.subr.mxu0 0.0
        %2958 = vmatpush1.msra.mxu0 0.0
        %2959 = vmatprep.subr.mxu0 0.0
        %2960 = vmatpush1.msra.mxu0 0.0
        %2961 = vmatprep.subr.mxu0 0.0
        %2962 = vmatpush1.msra.mxu0 0.0
        %2963 = vmatprep.subr.mxu0 0.0
        %2964 = vmatpush1.msra.mxu0 0.0
        %2965 = vmatprep.mubr.f32.mxu0 0.0
        %2966 = vmatmul.mubr.f32.gmra.mrb[0].mxu0 %v2899
        %v2967 = vpop.f32.mrb[0].mxu0
        %v2968 = vadd.f32 0.0, %v2967
        %v2969 = vpop.f32.mrb[0].mxu0
        %2970 = vdwg.mxu0
        %s2971 = scalar_lea.vmem %s14, 8
        %v2972 = vld [vmem:[%s2971] sm:$0x1f]
        %v2974 = vsel %vm1828, %v2968, 0
        %v2977 = vsel %vm1841, %v2972, 0
        %2979 = vmatprep.subr.mxu0 0.0
        %2980 = vmatpush1.msra.mxu0 %v2977
        %2981 = vmatprep.subr.mxu0 0.0
        %2982 = vmatpush1.msra.mxu0 0.0
        %2983 = vmatprep.subr.mxu0 0.0
        %2984 = vmatpush1.msra.mxu0 0.0
        %2985 = vmatprep.subr.mxu0 0.0
        %2986 = vmatpush1.msra.mxu0 0.0
        %2987 = vmatprep.subr.mxu0 0.0
        %2988 = vmatpush1.msra.mxu0 0.0
        %2989 = vmatprep.subr.mxu0 0.0
        %2990 = vmatpush1.msra.mxu0 0.0
        %2991 = vmatprep.subr.mxu0 0.0
        %2992 = vmatpush1.msra.mxu0 0.0
        %2993 = vmatprep.subr.mxu0 0.0
        %2994 = vmatpush1.msra.mxu0 0.0
        %2995 = vmatprep.subr.mxu0 0.0
        %2996 = vmatpush1.msra.mxu0 0.0
        %2997 = vmatprep.subr.mxu0 0.0
        %2998 = vmatpush1.msra.mxu0 0.0
        %2999 = vmatprep.subr.mxu0 0.0
        %3000 = vmatpush1.msra.mxu0 0.0
        %3001 = vmatprep.subr.mxu0 0.0
        %3002 = vmatpush1.msra.mxu0 0.0
        %3003 = vmatprep.subr.mxu0 0.0
        %3004 = vmatpush1.msra.mxu0 0.0
        %3005 = vmatprep.subr.mxu0 0.0
        %3006 = vmatpush1.msra.mxu0 0.0
        %3007 = vmatprep.subr.mxu0 0.0
        %3008 = vmatpush1.msra.mxu0 0.0
        %3009 = vmatprep.subr.mxu0 0.0
        %3010 = vmatpush1.msra.mxu0 0.0
        %3011 = vmatprep.subr.mxu0 0.0
        %3012 = vmatpush1.msra.mxu0 0.0
        %3013 = vmatprep.subr.mxu0 0.0
        %3014 = vmatpush1.msra.mxu0 0.0
        %3015 = vmatprep.subr.mxu0 0.0
        %3016 = vmatpush1.msra.mxu0 0.0
        %3017 = vmatprep.subr.mxu0 0.0
        %3018 = vmatpush1.msra.mxu0 0.0
        %3019 = vmatprep.subr.mxu0 0.0
        %3020 = vmatpush1.msra.mxu0 0.0
        %3021 = vmatprep.subr.mxu0 0.0
        %3022 = vmatpush1.msra.mxu0 0.0
        %3023 = vmatprep.subr.mxu0 0.0
        %3024 = vmatpush1.msra.mxu0 0.0
        %3025 = vmatprep.subr.mxu0 0.0
        %3026 = vmatpush1.msra.mxu0 0.0
        %3027 = vmatprep.subr.mxu0 0.0
        %3028 = vmatpush1.msra.mxu0 0.0
        %3029 = vmatprep.subr.mxu0 0.0
        %3030 = vmatpush1.msra.mxu0 0.0
        %3031 = vmatprep.subr.mxu0 0.0
        %3032 = vmatpush1.msra.mxu0 0.0
        %3033 = vmatprep.subr.mxu0 0.0
        %3034 = vmatpush1.msra.mxu0 0.0
        %3035 = vmatprep.subr.mxu0 0.0
        %3036 = vmatpush1.msra.mxu0 0.0
        %3037 = vmatprep.subr.mxu0 0.0
        %3038 = vmatpush1.msra.mxu0 0.0
        %3039 = vmatprep.subr.mxu0 0.0
        %3040 = vmatpush1.msra.mxu0 0.0
        %3041 = vmatprep.subr.mxu0 0.0
        %3042 = vmatpush1.msra.mxu0 0.0
        %3043 = vmatprep.mubr.f32.mxu0 0.0
        %3044 = vmatmul.mubr.f32.gmra.mrb[0].mxu0 %v2974
        %v3045 = vpop.f32.mrb[0].mxu0
        %v3046 = vadd.f32 0.0, %v3045
        %v3047 = vpop.f32.mrb[0].mxu0
        %3048 = vdwg.mxu0
        %v3050 = vsel %vm1828, %v2892, 0
        %v3053 = vsel %vm1841, %v2895, 0
        %3055 = vmatprep.subr.mxu0 0.0
        %3056 = vmatpush1.msra.mxu0 %v3053
        %3057 = vmatprep.subr.mxu0 0.0
        %3058 = vmatpush1.msra.mxu0 0.0
        %3059 = vmatprep.subr.mxu0 0.0
        %3060 = vmatpush1.msra.mxu0 0.0
        %3061 = vmatprep.subr.mxu0 0.0
        %3062 = vmatpush1.msra.mxu0 0.0
        %3063 = vmatprep.subr.mxu0 0.0
        %3064 = vmatpush1.msra.mxu0 0.0
        %3065 = vmatprep.subr.mxu0 0.0
        %3066 = vmatpush1.msra.mxu0 0.0
        %3067 = vmatprep.subr.mxu0 0.0
        %3068 = vmatpush1.msra.mxu0 0.0
        %3069 = vmatprep.subr.mxu0 0.0
        %3070 = vmatpush1.msra.mxu0 0.0
        %3071 = vmatprep.subr.mxu0 0.0
        %3072 = vmatpush1.msra.mxu0 0.0
        %3073 = vmatprep.subr.mxu0 0.0
        %3074 = vmatpush1.msra.mxu0 0.0
        %3075 = vmatprep.subr.mxu0 0.0
        %3076 = vmatpush1.msra.mxu0 0.0
        %3077 = vmatprep.subr.mxu0 0.0
        %3078 = vmatpush1.msra.mxu0 0.0
        %3079 = vmatprep.subr.mxu0 0.0
        %3080 = vmatpush1.msra.mxu0 0.0
        %3081 = vmatprep.subr.mxu0 0.0
        %3082 = vmatpush1.msra.mxu0 0.0
        %3083 = vmatprep.subr.mxu0 0.0
        %3084 = vmatpush1.msra.mxu0 0.0
        %3085 = vmatprep.subr.mxu0 0.0
        %3086 = vmatpush1.msra.mxu0 0.0
        %3087 = vmatprep.subr.mxu0 0.0
        %3088 = vmatpush1.msra.mxu0 0.0
        %3089 = vmatprep.subr.mxu0 0.0
        %3090 = vmatpush1.msra.mxu0 0.0
        %3091 = vmatprep.subr.mxu0 0.0
        %3092 = vmatpush1.msra.mxu0 0.0
        %3093 = vmatprep.subr.mxu0 0.0
        %3094 = vmatpush1.msra.mxu0 0.0
        %3095 = vmatprep.subr.mxu0 0.0
        %3096 = vmatpush1.msra.mxu0 0.0
        %3097 = vmatprep.subr.mxu0 0.0
        %3098 = vmatpush1.msra.mxu0 0.0
        %3099 = vmatprep.subr.mxu0 0.0
        %3100 = vmatpush1.msra.mxu0 0.0
        %3101 = vmatprep.subr.mxu0 0.0
        %3102 = vmatpush1.msra.mxu0 0.0
        %3103 = vmatprep.subr.mxu0 0.0
        %3104 = vmatpush1.msra.mxu0 0.0
        %3105 = vmatprep.subr.mxu0 0.0
        %3106 = vmatpush1.msra.mxu0 0.0
        %3107 = vmatprep.subr.mxu0 0.0
        %3108 = vmatpush1.msra.mxu0 0.0
        %3109 = vmatprep.subr.mxu0 0.0
        %3110 = vmatpush1.msra.mxu0 0.0
        %3111 = vmatprep.subr.mxu0 0.0
        %3112 = vmatpush1.msra.mxu0 0.0
        %3113 = vmatprep.subr.mxu0 0.0
        %3114 = vmatpush1.msra.mxu0 0.0
        %3115 = vmatprep.subr.mxu0 0.0
        %3116 = vmatpush1.msra.mxu0 0.0
        %3117 = vmatprep.subr.mxu0 0.0
        %3118 = vmatpush1.msra.mxu0 0.0
        %3119 = vmatprep.mubr.f32.mxu0 0.0
        %3120 = vmatmul.mubr.f32.gmra.mrb[0].mxu0 %v3050
        %v3121 = vpop.f32.mrb[0].mxu0
        %v3122 = vadd.f32 %v3046, %v3121
        %v3123 = vpop.f32.mrb[0].mxu0
        %3124 = vdwg.mxu0
        %s3125 = scalar_lea.vmem %s13, 16
        %v3126 = vld [vmem:[%s3125] sm:$0xff]
        %v3128 = vsel %vm1625, %v3126, 0
        %3130 = vmatprep.subr.mxu0 0.0
        %3131 = vmatpush1.msra.mxu0 %v2819
        %3132 = vmatprep.subr.mxu0 0.0
        %3133 = vmatpush1.msra.mxu0 %v2820
        %3134 = vmatprep.subr.mxu0 0.0
        %3135 = vmatpush1.msra.mxu0 0.0
        %3136 = vmatprep.subr.mxu0 0.0
        %3137 = vmatpush1.msra.mxu0 0.0
        %3138 = vmatprep.subr.mxu0 0.0
        %3139 = vmatpush1.msra.mxu0 0.0
        %3140 = vmatprep.subr.mxu0 0.0
        %3141 = vmatpush1.msra.mxu0 0.0
        %3142 = vmatprep.subr.mxu0 0.0
        %3143 = vmatpush1.msra.mxu0 0.0
        %3144 = vmatprep.subr.mxu0 0.0
        %3145 = vmatpush1.msra.mxu0 0.0
        %3146 = vmatprep.subr.mxu0 0.0
        %3147 = vmatpush1.msra.mxu0 0.0
        %3148 = vmatprep.subr.mxu0 0.0
        %3149 = vmatpush1.msra.mxu0 0.0
        %3150 = vmatprep.subr.mxu0 0.0
        %3151 = vmatpush1.msra.mxu0 0.0
        %3152 = vmatprep.subr.mxu0 0.0
        %3153 = vmatpush1.msra.mxu0 0.0
        %3154 = vmatprep.subr.mxu0 0.0
        %3155 = vmatpush1.msra.mxu0 0.0
        %3156 = vmatprep.subr.mxu0 0.0
        %3157 = vmatpush1.msra.mxu0 0.0
        %3158 = vmatprep.subr.mxu0 0.0
        %3159 = vmatpush1.msra.mxu0 0.0
        %3160 = vmatprep.subr.mxu0 0.0
        %3161 = vmatpush1.msra.mxu0 0.0
        %3162 = vmatprep.subr.mxu0 0.0
        %3163 = vmatpush1.msra.mxu0 0.0
        %3164 = vmatprep.subr.mxu0 0.0
        %3165 = vmatpush1.msra.mxu0 0.0
        %3166 = vmatprep.subr.mxu0 0.0
        %3167 = vmatpush1.msra.mxu0 0.0
        %3168 = vmatprep.subr.mxu0 0.0
        %3169 = vmatpush1.msra.mxu0 0.0
        %3170 = vmatprep.subr.mxu0 0.0
        %3171 = vmatpush1.msra.mxu0 0.0
        %3172 = vmatprep.subr.mxu0 0.0
        %3173 = vmatpush1.msra.mxu0 0.0
        %3174 = vmatprep.subr.mxu0 0.0
        %3175 = vmatpush1.msra.mxu0 0.0
        %3176 = vmatprep.subr.mxu0 0.0
        %3177 = vmatpush1.msra.mxu0 0.0
        %3178 = vmatprep.subr.mxu0 0.0
        %3179 = vmatpush1.msra.mxu0 0.0
        %3180 = vmatprep.subr.mxu0 0.0
        %3181 = vmatpush1.msra.mxu0 0.0
        %3182 = vmatprep.subr.mxu0 0.0
        %3183 = vmatpush1.msra.mxu0 0.0
        %3184 = vmatprep.subr.mxu0 0.0
        %3185 = vmatpush1.msra.mxu0 0.0
        %3186 = vmatprep.subr.mxu0 0.0
        %3187 = vmatpush1.msra.mxu0 0.0
        %3188 = vmatprep.subr.mxu0 0.0
        %3189 = vmatpush1.msra.mxu0 0.0
        %3190 = vmatprep.subr.mxu0 0.0
        %3191 = vmatpush1.msra.mxu0 0.0
        %3192 = vmatprep.subr.mxu0 0.0
        %3193 = vmatpush1.msra.mxu0 0.0
        %3194 = vmatprep.mubr.f32.mxu0 0.0
        %3195 = vmatmul.mubr.f32.gmra.mrb[0].mxu0 %v3128
        %v3196 = vpop.f32.mrb[0].mxu0
        %v3197 = vadd.f32 0.0, %v3196
        %v3198 = vpop.f32.mrb[0].mxu0
        %3199 = vdwg.mxu0
        %s3200 = scalar_lea.vmem %s14, 16
        %v3201 = vld [vmem:[%s3200] sm:$0x1f]
        %v3203 = vsel %vm1828, %v3197, 0
        %v3206 = vsel %vm1841, %v3201, 0
        %3208 = vmatprep.subr.mxu0 0.0
        %3209 = vmatpush1.msra.mxu0 %v3206
        %3210 = vmatprep.subr.mxu0 0.0
        %3211 = vmatpush1.msra.mxu0 0.0
        %3212 = vmatprep.subr.mxu0 0.0
        %3213 = vmatpush1.msra.mxu0 0.0
        %3214 = vmatprep.subr.mxu0 0.0
        %3215 = vmatpush1.msra.mxu0 0.0
        %3216 = vmatprep.subr.mxu0 0.0
        %3217 = vmatpush1.msra.mxu0 0.0
        %3218 = vmatprep.subr.mxu0 0.0
        %3219 = vmatpush1.msra.mxu0 0.0
        %3220 = vmatprep.subr.mxu0 0.0
        %3221 = vmatpush1.msra.mxu0 0.0
        %3222 = vmatprep.subr.mxu0 0.0
        %3223 = vmatpush1.msra.mxu0 0.0
        %3224 = vmatprep.subr.mxu0 0.0
        %3225 = vmatpush1.msra.mxu0 0.0
        %3226 = vmatprep.subr.mxu0 0.0
        %3227 = vmatpush1.msra.mxu0 0.0
        %3228 = vmatprep.subr.mxu0 0.0
        %3229 = vmatpush1.msra.mxu0 0.0
        %3230 = vmatprep.subr.mxu0 0.0
        %3231 = vmatpush1.msra.mxu0 0.0
        %3232 = vmatprep.subr.mxu0 0.0
        %3233 = vmatpush1.msra.mxu0 0.0
        %3234 = vmatprep.subr.mxu0 0.0
        %3235 = vmatpush1.msra.mxu0 0.0
        %3236 = vmatprep.subr.mxu0 0.0
        %3237 = vmatpush1.msra.mxu0 0.0
        %3238 = vmatprep.subr.mxu0 0.0
        %3239 = vmatpush1.msra.mxu0 0.0
        %3240 = vmatprep.subr.mxu0 0.0
        %3241 = vmatpush1.msra.mxu0 0.0
        %3242 = vmatprep.subr.mxu0 0.0
        %3243 = vmatpush1.msra.mxu0 0.0
        %3244 = vmatprep.subr.mxu0 0.0
        %3245 = vmatpush1.msra.mxu0 0.0
        %3246 = vmatprep.subr.mxu0 0.0
        %3247 = vmatpush1.msra.mxu0 0.0
        %3248 = vmatprep.subr.mxu0 0.0
        %3249 = vmatpush1.msra.mxu0 0.0
        %3250 = vmatprep.subr.mxu0 0.0
        %3251 = vmatpush1.msra.mxu0 0.0
        %3252 = vmatprep.subr.mxu0 0.0
        %3253 = vmatpush1.msra.mxu0 0.0
        %3254 = vmatprep.subr.mxu0 0.0
        %3255 = vmatpush1.msra.mxu0 0.0
        %3256 = vmatprep.subr.mxu0 0.0
        %3257 = vmatpush1.msra.mxu0 0.0
        %3258 = vmatprep.subr.mxu0 0.0
        %3259 = vmatpush1.msra.mxu0 0.0
        %3260 = vmatprep.subr.mxu0 0.0
        %3261 = vmatpush1.msra.mxu0 0.0
        %3262 = vmatprep.subr.mxu0 0.0
        %3263 = vmatpush1.msra.mxu0 0.0
        %3264 = vmatprep.subr.mxu0 0.0
        %3265 = vmatpush1.msra.mxu0 0.0
        %3266 = vmatprep.subr.mxu0 0.0
        %3267 = vmatpush1.msra.mxu0 0.0
        %3268 = vmatprep.subr.mxu0 0.0
        %3269 = vmatpush1.msra.mxu0 0.0
        %3270 = vmatprep.subr.mxu0 0.0
        %3271 = vmatpush1.msra.mxu0 0.0
        %3272 = vmatprep.mubr.f32.mxu0 0.0
        %3273 = vmatmul.mubr.f32.gmra.mrb[0].mxu0 %v3203
        %v3274 = vpop.f32.mrb[0].mxu0
        %v3275 = vadd.f32 0.0, %v3274
        %v3276 = vpop.f32.mrb[0].mxu0
        %3277 = vdwg.mxu0
        %v3278 = vadd.f32 %v3122, %v3275
        %v3279 = vld [vmem:[%s15] sm:$0xff]
        %3281 = vset.pattern.permute.xlu0 0
        %3282 = vperm.xlu0 %3281, %v3279
        %v3283 = vpop.permute.xlu0 %3282
        %v3285 = vadd.f32 %v3278, %v3283
        %vm3286 = vcmp.ge.f32.partialorder %v3285, 0.0
        %v3287 = vmul.f32 %v3285, 1.442695
        %v3288 = vpow.pop %v3287
        %v3289 = vsub.f32 %v3288, 1.0
        %v3290 = vsel %vm3286, %v3285, %v3289
        %v3291 = vld [vmem:[%s16] sm:$0xf]
        %v3293 = vsel %vm1084, %v3291, 0
        %3295 = vmatprep.subr.mxu0 0.0
        %3296 = vmatpush1.msra.mxu0 %v3290
        %3297 = vmatprep.subr.mxu0 0.0
        %3298 = vmatpush1.msra.mxu0 0.0
        %3299 = vmatprep.subr.mxu0 0.0
        %3300 = vmatpush1.msra.mxu0 0.0
        %3301 = vmatprep.subr.mxu0 0.0
        %3302 = vmatpush1.msra.mxu0 0.0
        %3303 = vmatprep.subr.mxu0 0.0
        %3304 = vmatpush1.msra.mxu0 0.0
        %3305 = vmatprep.subr.mxu0 0.0
        %3306 = vmatpush1.msra.mxu0 0.0
        %3307 = vmatprep.subr.mxu0 0.0
        %3308 = vmatpush1.msra.mxu0 0.0
        %3309 = vmatprep.subr.mxu0 0.0
        %3310 = vmatpush1.msra.mxu0 0.0
        %3311 = vmatprep.subr.mxu0 0.0
        %3312 = vmatpush1.msra.mxu0 0.0
        %3313 = vmatprep.subr.mxu0 0.0
        %3314 = vmatpush1.msra.mxu0 0.0
        %3315 = vmatprep.subr.mxu0 0.0
        %3316 = vmatpush1.msra.mxu0 0.0
        %3317 = vmatprep.subr.mxu0 0.0
        %3318 = vmatpush1.msra.mxu0 0.0
        %3319 = vmatprep.subr.mxu0 0.0
        %3320 = vmatpush1.msra.mxu0 0.0
        %3321 = vmatprep.subr.mxu0 0.0
        %3322 = vmatpush1.msra.mxu0 0.0
        %3323 = vmatprep.subr.mxu0 0.0
        %3324 = vmatpush1.msra.mxu0 0.0
        %3325 = vmatprep.subr.mxu0 0.0
        %3326 = vmatpush1.msra.mxu0 0.0
        %3327 = vmatprep.subr.mxu0 0.0
        %3328 = vmatpush1.msra.mxu0 0.0
        %3329 = vmatprep.subr.mxu0 0.0
        %3330 = vmatpush1.msra.mxu0 0.0
        %3331 = vmatprep.subr.mxu0 0.0
        %3332 = vmatpush1.msra.mxu0 0.0
        %3333 = vmatprep.subr.mxu0 0.0
        %3334 = vmatpush1.msra.mxu0 0.0
        %3335 = vmatprep.subr.mxu0 0.0
        %3336 = vmatpush1.msra.mxu0 0.0
        %3337 = vmatprep.subr.mxu0 0.0
        %3338 = vmatpush1.msra.mxu0 0.0
        %3339 = vmatprep.subr.mxu0 0.0
        %3340 = vmatpush1.msra.mxu0 0.0
        %3341 = vmatprep.subr.mxu0 0.0
        %3342 = vmatpush1.msra.mxu0 0.0
        %3343 = vmatprep.subr.mxu0 0.0
        %3344 = vmatpush1.msra.mxu0 0.0
        %3345 = vmatprep.subr.mxu0 0.0
        %3346 = vmatpush1.msra.mxu0 0.0
        %3347 = vmatprep.subr.mxu0 0.0
        %3348 = vmatpush1.msra.mxu0 0.0
        %3349 = vmatprep.subr.mxu0 0.0
        %3350 = vmatpush1.msra.mxu0 0.0
        %3351 = vmatprep.subr.mxu0 0.0
        %3352 = vmatpush1.msra.mxu0 0.0
        %3353 = vmatprep.subr.mxu0 0.0
        %3354 = vmatpush1.msra.mxu0 0.0
        %3355 = vmatprep.subr.mxu0 0.0
        %3356 = vmatpush1.msra.mxu0 0.0
        %3357 = vmatprep.subr.mxu0 0.0
        %3358 = vmatpush1.msra.mxu0 0.0
        %3359 = vmatprep.mubr.f32.mxu0 0.0
        %3360 = vmatmul.mubr.f32.gmra.mrb[0].mxu0 %v3293
        %v3361 = vpop.f32.mrb[0].mxu0
        %v3362 = vadd.f32 0.0, %v3361
        %v3363 = vpop.f32.mrb[0].mxu0
        %3364 = vdwg.mxu0
        %v3365 = vld [vmem:[%s17] sm:$0xff]
        %v3366 = vld [vmem:[%s17 + $0x8] sm:$0x1]
        %s3367 = scalar_lea.vmem %s16, 4
        %v3368 = vld [vmem:[%s3367] sm:$0xf]
        %v3370 = vsel %vm1084, %v3368, 0
        %3372 = vmatprep.subr.mxu0 0.0
        %3373 = vmatpush1.msra.mxu0 %v3290
        %3374 = vmatprep.subr.mxu0 0.0
        %3375 = vmatpush1.msra.mxu0 0.0
        %3376 = vmatprep.subr.mxu0 0.0
        %3377 = vmatpush1.msra.mxu0 0.0
        %3378 = vmatprep.subr.mxu0 0.0
        %3379 = vmatpush1.msra.mxu0 0.0
        %3380 = vmatprep.subr.mxu0 0.0
        %3381 = vmatpush1.msra.mxu0 0.0
        %3382 = vmatprep.subr.mxu0 0.0
        %3383 = vmatpush1.msra.mxu0 0.0
        %3384 = vmatprep.subr.mxu0 0.0
        %3385 = vmatpush1.msra.mxu0 0.0
        %3386 = vmatprep.subr.mxu0 0.0
        %3387 = vmatpush1.msra.mxu0 0.0
        %3388 = vmatprep.subr.mxu0 0.0
        %3389 = vmatpush1.msra.mxu0 0.0
        %3390 = vmatprep.subr.mxu0 0.0
        %3391 = vmatpush1.msra.mxu0 0.0
        %3392 = vmatprep.subr.mxu0 0.0
        %3393 = vmatpush1.msra.mxu0 0.0
        %3394 = vmatprep.subr.mxu0 0.0
        %3395 = vmatpush1.msra.mxu0 0.0
        %3396 = vmatprep.subr.mxu0 0.0
        %3397 = vmatpush1.msra.mxu0 0.0
        %3398 = vmatprep.subr.mxu0 0.0
        %3399 = vmatpush1.msra.mxu0 0.0
        %3400 = vmatprep.subr.mxu0 0.0
        %3401 = vmatpush1.msra.mxu0 0.0
        %3402 = vmatprep.subr.mxu0 0.0
        %3403 = vmatpush1.msra.mxu0 0.0
        %3404 = vmatprep.subr.mxu0 0.0
        %3405 = vmatpush1.msra.mxu0 0.0
        %3406 = vmatprep.subr.mxu0 0.0
        %3407 = vmatpush1.msra.mxu0 0.0
        %3408 = vmatprep.subr.mxu0 0.0
        %3409 = vmatpush1.msra.mxu0 0.0
        %3410 = vmatprep.subr.mxu0 0.0
        %3411 = vmatpush1.msra.mxu0 0.0
        %3412 = vmatprep.subr.mxu0 0.0
        %3413 = vmatpush1.msra.mxu0 0.0
        %3414 = vmatprep.subr.mxu0 0.0
        %3415 = vmatpush1.msra.mxu0 0.0
        %3416 = vmatprep.subr.mxu0 0.0
        %3417 = vmatpush1.msra.mxu0 0.0
        %3418 = vmatprep.subr.mxu0 0.0
        %3419 = vmatpush1.msra.mxu0 0.0
        %3420 = vmatprep.subr.mxu0 0.0
        %3421 = vmatpush1.msra.mxu0 0.0
        %3422 = vmatprep.subr.mxu0 0.0
        %3423 = vmatpush1.msra.mxu0 0.0
        %3424 = vmatprep.subr.mxu0 0.0
        %3425 = vmatpush1.msra.mxu0 0.0
        %3426 = vmatprep.subr.mxu0 0.0
        %3427 = vmatpush1.msra.mxu0 0.0
        %3428 = vmatprep.subr.mxu0 0.0
        %3429 = vmatpush1.msra.mxu0 0.0
        %3430 = vmatprep.subr.mxu0 0.0
        %3431 = vmatpush1.msra.mxu0 0.0
        %3432 = vmatprep.subr.mxu0 0.0
        %3433 = vmatpush1.msra.mxu0 0.0
        %3434 = vmatprep.subr.mxu0 0.0
        %3435 = vmatpush1.msra.mxu0 0.0
        %3436 = vmatprep.mubr.f32.mxu0 0.0
        %3437 = vmatmul.mubr.f32.gmra.mrb[0].mxu0 %v3370
        %v3438 = vpop.f32.mrb[0].mxu0
        %v3439 = vadd.f32 0.0, %v3438
        %v3440 = vpop.f32.mrb[0].mxu0
        %3441 = vdwg.mxu0
        %s3442 = scalar_lea.vmem %s17, 16
        %v3443 = vld [vmem:[%s3442] sm:$0xff]
        %v3444 = vld [vmem:[%s3442 + $0x8] sm:$0x1]
        %v3446 = vsel %vm1255, %v3439, 0
        %v3449 = vsel %vm764, %v3444, 0
        %3451 = vmatprep.subr.mxu0 0.0
        %3452 = vmatpush1.msra.mxu0 %v3443
        %3453 = vmatprep.subr.mxu0 0.0
        %3454 = vmatpush1.msra.mxu0 %v3449
        %3455 = vmatprep.subr.mxu0 0.0
        %3456 = vmatpush1.msra.mxu0 0.0
        %3457 = vmatprep.subr.mxu0 0.0
        %3458 = vmatpush1.msra.mxu0 0.0
        %3459 = vmatprep.subr.mxu0 0.0
        %3460 = vmatpush1.msra.mxu0 0.0
        %3461 = vmatprep.subr.mxu0 0.0
        %3462 = vmatpush1.msra.mxu0 0.0
        %3463 = vmatprep.subr.mxu0 0.0
        %3464 = vmatpush1.msra.mxu0 0.0
        %3465 = vmatprep.subr.mxu0 0.0
        %3466 = vmatpush1.msra.mxu0 0.0
        %3467 = vmatprep.subr.mxu0 0.0
        %3468 = vmatpush1.msra.mxu0 0.0
        %3469 = vmatprep.subr.mxu0 0.0
        %3470 = vmatpush1.msra.mxu0 0.0
        %3471 = vmatprep.subr.mxu0 0.0
        %3472 = vmatpush1.msra.mxu0 0.0
        %3473 = vmatprep.subr.mxu0 0.0
        %3474 = vmatpush1.msra.mxu0 0.0
        %3475 = vmatprep.subr.mxu0 0.0
        %3476 = vmatpush1.msra.mxu0 0.0
        %3477 = vmatprep.subr.mxu0 0.0
        %3478 = vmatpush1.msra.mxu0 0.0
        %3479 = vmatprep.subr.mxu0 0.0
        %3480 = vmatpush1.msra.mxu0 0.0
        %3481 = vmatprep.subr.mxu0 0.0
        %3482 = vmatpush1.msra.mxu0 0.0
        %3483 = vmatprep.subr.mxu0 0.0
        %3484 = vmatpush1.msra.mxu0 0.0
        %3485 = vmatprep.subr.mxu0 0.0
        %3486 = vmatpush1.msra.mxu0 0.0
        %3487 = vmatprep.subr.mxu0 0.0
        %3488 = vmatpush1.msra.mxu0 0.0
        %3489 = vmatprep.subr.mxu0 0.0
        %3490 = vmatpush1.msra.mxu0 0.0
        %3491 = vmatprep.subr.mxu0 0.0
        %3492 = vmatpush1.msra.mxu0 0.0
        %3493 = vmatprep.subr.mxu0 0.0
        %3494 = vmatpush1.msra.mxu0 0.0
        %3495 = vmatprep.subr.mxu0 0.0
        %3496 = vmatpush1.msra.mxu0 0.0
        %3497 = vmatprep.subr.mxu0 0.0
        %3498 = vmatpush1.msra.mxu0 0.0
        %3499 = vmatprep.subr.mxu0 0.0
        %3500 = vmatpush1.msra.mxu0 0.0
        %3501 = vmatprep.subr.mxu0 0.0
        %3502 = vmatpush1.msra.mxu0 0.0
        %3503 = vmatprep.subr.mxu0 0.0
        %3504 = vmatpush1.msra.mxu0 0.0
        %3505 = vmatprep.subr.mxu0 0.0
        %3506 = vmatpush1.msra.mxu0 0.0
        %3507 = vmatprep.subr.mxu0 0.0
        %3508 = vmatpush1.msra.mxu0 0.0
        %3509 = vmatprep.subr.mxu0 0.0
        %3510 = vmatpush1.msra.mxu0 0.0
        %3511 = vmatprep.subr.mxu0 0.0
        %3512 = vmatpush1.msra.mxu0 0.0
        %3513 = vmatprep.subr.mxu0 0.0
        %3514 = vmatpush1.msra.mxu0 0.0
        %3515 = vmatprep.mubr.f32.mxu0 0.0
        %3516 = vmatmul.mubr.f32.gmra.mrb[0].mxu0 %v3446
        %v3517 = vpop.f32.mrb[0].mxu0
        %v3518 = vadd.f32 0.0, %v3517
        %v3519 = vpop.f32.mrb[0].mxu0
        %3520 = vdwg.mxu0
        %v3522 = vsel %vm1255, %v3362, 0
        %v3525 = vsel %vm764, %v3366, 0
        %3527 = vmatprep.subr.mxu0 0.0
        %3528 = vmatpush1.msra.mxu0 %v3365
        %3529 = vmatprep.subr.mxu0 0.0
        %3530 = vmatpush1.msra.mxu0 %v3525
        %3531 = vmatprep.subr.mxu0 0.0
        %3532 = vmatpush1.msra.mxu0 0.0
        %3533 = vmatprep.subr.mxu0 0.0
        %3534 = vmatpush1.msra.mxu0 0.0
        %3535 = vmatprep.subr.mxu0 0.0
        %3536 = vmatpush1.msra.mxu0 0.0
        %3537 = vmatprep.subr.mxu0 0.0
        %3538 = vmatpush1.msra.mxu0 0.0
        %3539 = vmatprep.subr.mxu0 0.0
        %3540 = vmatpush1.msra.mxu0 0.0
        %3541 = vmatprep.subr.mxu0 0.0
        %3542 = vmatpush1.msra.mxu0 0.0
        %3543 = vmatprep.subr.mxu0 0.0
        %3544 = vmatpush1.msra.mxu0 0.0
        %3545 = vmatprep.subr.mxu0 0.0
        %3546 = vmatpush1.msra.mxu0 0.0
        %3547 = vmatprep.subr.mxu0 0.0
        %3548 = vmatpush1.msra.mxu0 0.0
        %3549 = vmatprep.subr.mxu0 0.0
        %3550 = vmatpush1.msra.mxu0 0.0
        %3551 = vmatprep.subr.mxu0 0.0
        %3552 = vmatpush1.msra.mxu0 0.0
        %3553 = vmatprep.subr.mxu0 0.0
        %3554 = vmatpush1.msra.mxu0 0.0
        %3555 = vmatprep.subr.mxu0 0.0
        %3556 = vmatpush1.msra.mxu0 0.0
        %3557 = vmatprep.subr.mxu0 0.0
        %3558 = vmatpush1.msra.mxu0 0.0
        %3559 = vmatprep.subr.mxu0 0.0
        %3560 = vmatpush1.msra.mxu0 0.0
        %3561 = vmatprep.subr.mxu0 0.0
        %3562 = vmatpush1.msra.mxu0 0.0
        %3563 = vmatprep.subr.mxu0 0.0
        %3564 = vmatpush1.msra.mxu0 0.0
        %3565 = vmatprep.subr.mxu0 0.0
        %3566 = vmatpush1.msra.mxu0 0.0
        %3567 = vmatprep.subr.mxu0 0.0
        %3568 = vmatpush1.msra.mxu0 0.0
        %3569 = vmatprep.subr.mxu0 0.0
        %3570 = vmatpush1.msra.mxu0 0.0
        %3571 = vmatprep.subr.mxu0 0.0
        %3572 = vmatpush1.msra.mxu0 0.0
        %3573 = vmatprep.subr.mxu0 0.0
        %3574 = vmatpush1.msra.mxu0 0.0
        %3575 = vmatprep.subr.mxu0 0.0
        %3576 = vmatpush1.msra.mxu0 0.0
        %3577 = vmatprep.subr.mxu0 0.0
        %3578 = vmatpush1.msra.mxu0 0.0
        %3579 = vmatprep.subr.mxu0 0.0
        %3580 = vmatpush1.msra.mxu0 0.0
        %3581 = vmatprep.subr.mxu0 0.0
        %3582 = vmatpush1.msra.mxu0 0.0
        %3583 = vmatprep.subr.mxu0 0.0
        %3584 = vmatpush1.msra.mxu0 0.0
        %3585 = vmatprep.subr.mxu0 0.0
        %3586 = vmatpush1.msra.mxu0 0.0
        %3587 = vmatprep.subr.mxu0 0.0
        %3588 = vmatpush1.msra.mxu0 0.0
        %3589 = vmatprep.subr.mxu0 0.0
        %3590 = vmatpush1.msra.mxu0 0.0
        %3591 = vmatprep.mubr.f32.mxu0 0.0
        %3592 = vmatmul.mubr.f32.gmra.mrb[0].mxu0 %v3522
        %v3593 = vpop.f32.mrb[0].mxu0
        %v3594 = vadd.f32 %v3518, %v3593
        %v3595 = vpop.f32.mrb[0].mxu0
        %3596 = vdwg.mxu0
        %s3597 = scalar_lea.vmem %s16, 8
        %v3598 = vld [vmem:[%s3597] sm:$0xf]
        %v3600 = vsel %vm1084, %v3598, 0
        %3602 = vmatprep.subr.mxu0 0.0
        %3603 = vmatpush1.msra.mxu0 %v3290
        %3604 = vmatprep.subr.mxu0 0.0
        %3605 = vmatpush1.msra.mxu0 0.0
        %3606 = vmatprep.subr.mxu0 0.0
        %3607 = vmatpush1.msra.mxu0 0.0
        %3608 = vmatprep.subr.mxu0 0.0
        %3609 = vmatpush1.msra.mxu0 0.0
        %3610 = vmatprep.subr.mxu0 0.0
        %3611 = vmatpush1.msra.mxu0 0.0
        %3612 = vmatprep.subr.mxu0 0.0
        %3613 = vmatpush1.msra.mxu0 0.0
        %3614 = vmatprep.subr.mxu0 0.0
        %3615 = vmatpush1.msra.mxu0 0.0
        %3616 = vmatprep.subr.mxu0 0.0
        %3617 = vmatpush1.msra.mxu0 0.0
        %3618 = vmatprep.subr.mxu0 0.0
        %3619 = vmatpush1.msra.mxu0 0.0
        %3620 = vmatprep.subr.mxu0 0.0
        %3621 = vmatpush1.msra.mxu0 0.0
        %3622 = vmatprep.subr.mxu0 0.0
        %3623 = vmatpush1.msra.mxu0 0.0
        %3624 = vmatprep.subr.mxu0 0.0
        %3625 = vmatpush1.msra.mxu0 0.0
        %3626 = vmatprep.subr.mxu0 0.0
        %3627 = vmatpush1.msra.mxu0 0.0
        %3628 = vmatprep.subr.mxu0 0.0
        %3629 = vmatpush1.msra.mxu0 0.0
        %3630 = vmatprep.subr.mxu0 0.0
        %3631 = vmatpush1.msra.mxu0 0.0
        %3632 = vmatprep.subr.mxu0 0.0
        %3633 = vmatpush1.msra.mxu0 0.0
        %3634 = vmatprep.subr.mxu0 0.0
        %3635 = vmatpush1.msra.mxu0 0.0
        %3636 = vmatprep.subr.mxu0 0.0
        %3637 = vmatpush1.msra.mxu0 0.0
        %3638 = vmatprep.subr.mxu0 0.0
        %3639 = vmatpush1.msra.mxu0 0.0
        %3640 = vmatprep.subr.mxu0 0.0
        %3641 = vmatpush1.msra.mxu0 0.0
        %3642 = vmatprep.subr.mxu0 0.0
        %3643 = vmatpush1.msra.mxu0 0.0
        %3644 = vmatprep.subr.mxu0 0.0
        %3645 = vmatpush1.msra.mxu0 0.0
        %3646 = vmatprep.subr.mxu0 0.0
        %3647 = vmatpush1.msra.mxu0 0.0
        %3648 = vmatprep.subr.mxu0 0.0
        %3649 = vmatpush1.msra.mxu0 0.0
        %3650 = vmatprep.subr.mxu0 0.0
        %3651 = vmatpush1.msra.mxu0 0.0
        %3652 = vmatprep.subr.mxu0 0.0
        %3653 = vmatpush1.msra.mxu0 0.0
        %3654 = vmatprep.subr.mxu0 0.0
        %3655 = vmatpush1.msra.mxu0 0.0
        %3656 = vmatprep.subr.mxu0 0.0
        %3657 = vmatpush1.msra.mxu0 0.0
        %3658 = vmatprep.subr.mxu0 0.0
        %3659 = vmatpush1.msra.mxu0 0.0
        %3660 = vmatprep.subr.mxu0 0.0
        %3661 = vmatpush1.msra.mxu0 0.0
        %3662 = vmatprep.subr.mxu0 0.0
        %3663 = vmatpush1.msra.mxu0 0.0
        %3664 = vmatprep.subr.mxu0 0.0
        %3665 = vmatpush1.msra.mxu0 0.0
        %3666 = vmatprep.mubr.f32.mxu0 0.0
        %3667 = vmatmul.mubr.f32.gmra.mrb[0].mxu0 %v3600
        %v3668 = vpop.f32.mrb[0].mxu0
        %v3669 = vadd.f32 0.0, %v3668
        %v3670 = vpop.f32.mrb[0].mxu0
        %3671 = vdwg.mxu0
        %s3672 = scalar_lea.vmem %s17, 32
        %v3673 = vld [vmem:[%s3672] sm:$0xff]
        %v3674 = vld [vmem:[%s3672 + $0x8] sm:$0x1]
        %v3676 = vsel %vm1255, %v3669, 0
        %v3679 = vsel %vm764, %v3674, 0
        %3681 = vmatprep.subr.mxu0 0.0
        %3682 = vmatpush1.msra.mxu0 %v3673
        %3683 = vmatprep.subr.mxu0 0.0
        %3684 = vmatpush1.msra.mxu0 %v3679
        %3685 = vmatprep.subr.mxu0 0.0
        %3686 = vmatpush1.msra.mxu0 0.0
        %3687 = vmatprep.subr.mxu0 0.0
        %3688 = vmatpush1.msra.mxu0 0.0
        %3689 = vmatprep.subr.mxu0 0.0
        %3690 = vmatpush1.msra.mxu0 0.0
        %3691 = vmatprep.subr.mxu0 0.0
        %3692 = vmatpush1.msra.mxu0 0.0
        %3693 = vmatprep.subr.mxu0 0.0
        %3694 = vmatpush1.msra.mxu0 0.0
        %3695 = vmatprep.subr.mxu0 0.0
        %3696 = vmatpush1.msra.mxu0 0.0
        %3697 = vmatprep.subr.mxu0 0.0
        %3698 = vmatpush1.msra.mxu0 0.0
        %3699 = vmatprep.subr.mxu0 0.0
        %3700 = vmatpush1.msra.mxu0 0.0
        %3701 = vmatprep.subr.mxu0 0.0
        %3702 = vmatpush1.msra.mxu0 0.0
        %3703 = vmatprep.subr.mxu0 0.0
        %3704 = vmatpush1.msra.mxu0 0.0
        %3705 = vmatprep.subr.mxu0 0.0
        %3706 = vmatpush1.msra.mxu0 0.0
        %3707 = vmatprep.subr.mxu0 0.0
        %3708 = vmatpush1.msra.mxu0 0.0
        %3709 = vmatprep.subr.mxu0 0.0
        %3710 = vmatpush1.msra.mxu0 0.0
        %3711 = vmatprep.subr.mxu0 0.0
        %3712 = vmatpush1.msra.mxu0 0.0
        %3713 = vmatprep.subr.mxu0 0.0
        %3714 = vmatpush1.msra.mxu0 0.0
        %3715 = vmatprep.subr.mxu0 0.0
        %3716 = vmatpush1.msra.mxu0 0.0
        %3717 = vmatprep.subr.mxu0 0.0
        %3718 = vmatpush1.msra.mxu0 0.0
        %3719 = vmatprep.subr.mxu0 0.0
        %3720 = vmatpush1.msra.mxu0 0.0
        %3721 = vmatprep.subr.mxu0 0.0
        %3722 = vmatpush1.msra.mxu0 0.0
        %3723 = vmatprep.subr.mxu0 0.0
        %3724 = vmatpush1.msra.mxu0 0.0
        %3725 = vmatprep.subr.mxu0 0.0
        %3726 = vmatpush1.msra.mxu0 0.0
        %3727 = vmatprep.subr.mxu0 0.0
        %3728 = vmatpush1.msra.mxu0 0.0
        %3729 = vmatprep.subr.mxu0 0.0
        %3730 = vmatpush1.msra.mxu0 0.0
        %3731 = vmatprep.subr.mxu0 0.0
        %3732 = vmatpush1.msra.mxu0 0.0
        %3733 = vmatprep.subr.mxu0 0.0
        %3734 = vmatpush1.msra.mxu0 0.0
        %3735 = vmatprep.subr.mxu0 0.0
        %3736 = vmatpush1.msra.mxu0 0.0
        %3737 = vmatprep.subr.mxu0 0.0
        %3738 = vmatpush1.msra.mxu0 0.0
        %3739 = vmatprep.subr.mxu0 0.0
        %3740 = vmatpush1.msra.mxu0 0.0
        %3741 = vmatprep.subr.mxu0 0.0
        %3742 = vmatpush1.msra.mxu0 0.0
        %3743 = vmatprep.subr.mxu0 0.0
        %3744 = vmatpush1.msra.mxu0 0.0
        %3745 = vmatprep.mubr.f32.mxu0 0.0
        %3746 = vmatmul.mubr.f32.gmra.mrb[0].mxu0 %v3676
        %v3747 = vpop.f32.mrb[0].mxu0
        %v3748 = vadd.f32 0.0, %v3747
        %v3749 = vpop.f32.mrb[0].mxu0
        %3750 = vdwg.mxu0
        %v3751 = vadd.f32 %v3594, %v3748
        %v3752 = vld [vmem:[%s18] sm:$0xf]
        %3754 = vset.pattern.permute.xlu0 0
        %3755 = vperm.xlu0 %3754, %v3752
        %v3756 = vpop.permute.xlu0 %3755
        %v3758 = vadd.f32 %v3751, %v3756
        %vm3759 = vcmask 134144
        %3760 = vst.msk [vmem:[%s593] sm:$0xf] %vm3759, %v3758
        %s3761 = sand.u32 %s445, 1
        %s3762 = scalar_lea.sflag [#allocation3], %s3761
        %s3763 = sand.u32 %s445, 1
        %s3764 = smul.addr %s3763, 4
        %s3765 = scalar_lea.vmem [#allocation2], %s3764
        // Predicated region
        $region97: #{tpu_custom_call.1} parent=95 // pred_check
          %p3766 = pneg %p455
        $region98: #{tpu_custom_call.1} parent=95 // pred_check_branch
          %3768 = sbr.rel (%p3766) target = $region100
        $region99: #{tpu_custom_call.1} parent=95 // pred_region
          %s3770 = ssub.s32 64, 64
          %3771 = vsyncadd %s3762, %s3770
          %s3772 = smul.addr %s33, 64
          %s3773 = scalar_lea.hbm %s19, %s3772
          %s3775 = sshll.u32 %s3765, 4
          %s3776 = int_to_ptr.vmem [resolvable:$true] %s3775
          %3778 = dma.vmem_to_hbm [thread:$0]  %s3776, 64, %s3773, %s3762
        $region100: #{tpu_custom_call.1} parent=95 // pred_fallthru
          _
      $region96: #{tpu_custom_call.1} parent=5 // pred_fallthru
        _
      %p3779 = scmp.le.s32.totalorder 2, %s28
      // Predicated region
      $region101: #{tpu_custom_call.1} parent=5 // pred_check
        %p3780 = pneg %p3779
      $region102: #{tpu_custom_call.1} parent=5 // pred_check_branch
        %3782 = sbr.rel (%p3780) target = $region104
      $region103: #{tpu_custom_call.1} parent=5 // pred_region
        %s3783 = ssub.s32 %s28, 2
        // Predicated region
        $region105: #{tpu_custom_call.1} parent=103 // pred_check
          %p3784 = pneg %p461
        $region106: #{tpu_custom_call.1} parent=103 // pred_check_branch
          %3786 = sbr.rel (%p3784) target = $region108
        $region107: #{tpu_custom_call.1} parent=103 // pred_region
          %s3787 = sand.u32 %s446, 1
          %s3788 = scalar_lea.sflag [#allocation3], %s3787
          %s3789 = sand.u32 %s446, 1
          %s3790 = smul.addr %s3789, 4
          %s3791 = scalar_lea.vmem [#allocation2], %s3790
          %3792 = dma.done %s3788, 64
        $region108: #{tpu_custom_call.1} parent=103 // pred_fallthru
          _
      $region104: #{tpu_custom_call.1} parent=5 // pred_fallthru
        _
    $region6: #{tpu_custom_call.1} parent=1 // loop_footer
      %s32 = sadd.s32 1, %s28
    $region7: #{tpu_custom_call.1} parent=1 // loop_footer_branch
      %27 = sbr.rel target = $region3
    $region8: #{tpu_custom_call.1} parent=1 // loop_exit
      _
    %3793 = vsyncpa [#allocation3], 1
    %s3794 = scalar_lea.sflag [#allocation3], 1
    %3795 = vsyncpa %s3794, 1

</llo_original>
